<compile_context>
chip_gen: v6e
topology: v6e:2x2x1
jax: 0.10.0
libtpu: 0.0.40
codegen_flags: <defaults>
</compile_context>

<pallas_src>
import jax
import jax.numpy as jnp
from jax.experimental import pallas as pl
from jax.experimental.pallas import tpu as pltpu


_EPS = 1e-5
_COMPILER_PARAMS = pltpu.CompilerParams(
    dimension_semantics=("arbitrary",),
    vmem_limit_bytes=32 * 1024 * 1024,
)


def _vspec(shape):
    """Full-array VMEM block for a grid=(1,) pallas_call."""
    nd = len(shape)

    def idx(i):
        return (0,) * nd

    return pl.BlockSpec(shape, idx)


# ----------------------------------------------------------------------------
# Static plan: stride decomposition of ConvTranspose2d
# ----------------------------------------------------------------------------
def _transposed_conv_plan(H, W, KH, KW, s, p, op):
    """Plan for y[oh] = sum_kh x[(oh + p - kh)/s] * w[kh] (exact division only).

    Fast path: output phase oh = s*q + rh only touches taps kh === (rh+p) mod s,
    giving s*s stride-1 sub-convolutions on the raw (un-dilated) input.  Per
    phase the W taps are folded into one banded block-Toeplitz matrix, so the
    kernel only loops over the n_h row taps.
    """
    OH = (H - 1) * s - 2 * p + KH + op
    OW = (W - 1) * s - 2 * p + KW + op
    fast = (KH % s == 0) and (KW % s == 0) and (OH % s == 0) and (OW % s == 0)
    if not fast:
        # Generic fallback: caller zero-inserts + pads; a single "phase" then
        # runs the classic valid conv with the spatially flipped kernel.
        phase = dict(
            row_taps=[(kh, KH - 1 - kh) for kh in range(KH)],
            sw_min=0,
            col_taps=[(kw, KW - 1 - kw) for kw in range(KW)],
        )
        return dict(fast=False, phases=[phase], OHp=OH, OWp=OW, OH=OH, OW=OW,
                    Wwide=OW + KW - 1, pad=None)
    OHp, OWp = OH // s, OW // s
    n_h, n_w = KH // s, KW // s
    dh = [(r + p) // s for r in range(s)]
    dw = [(r + p) // s for r in range(s)]
    Lh = max(0, (n_h - 1) - min(dh))
    Lw = max(0, (n_w - 1) - min(dw))
    Rh = max(0, (OHp - 1) + max(dh) - (H - 1))
    Rw = max(0, (OWp - 1) + max(dw) - (W - 1))
    Wwide = OWp + n_w - 1
    phases = []
    for rh in range(s):
        kh0 = (rh + p) % s
        for rw in range(s):
            kw0 = (rw + p) % s
            phases.append(dict(
                row_taps=[(Lh + dh[rh] - jh, kh0 + jh * s) for jh in range(n_h)],
                sw_min=Lw + dw[rw] - (n_w - 1),
                col_taps=[(n_w - 1 - jw, kw0 + jw * s) for jw in range(n_w)],
            ))
    return dict(fast=True, phases=phases, OHp=OHp, OWp=OWp, OH=OH, OW=OW,
                Wwide=Wwide, pad=(Lh, Rh, Lw, Rw))


def _dilate_and_pad(x, KH, KW, s, p, op):
    """Fallback-only: zero-insertion + padding (classic transposed-conv rewrite)."""
    B, H, W, C = x.shape
    ph, pw = KH - 1 - p, KW - 1 - p
    if ph < 0 or pw < 0:
        # TODO(synk): padding > kernel_size - 1 would need output cropping.
        raise NotImplementedError("padding > kernel_size - 1 is not supported")
    if s > 1:
        xd = jnp.zeros((B, (H - 1) * s + 1, (W - 1) * s + 1, C), x.dtype)
        xd = xd.at[:, ::s, ::s, :].set(x)
    else:
        xd = x
    return jnp.pad(xd, ((0, 0), (ph, ph + op), (pw, pw + op), (0, 0)))


def _convt_constants(w_t, b, gamma, beta, phases, OWp, Wwide):
    """Banded block-Toeplitz bf16 weights (one per phase x row-tap),
    lane-tiled bias/gamma/beta and per-channel selection matrices for BN."""
    Cin, Cout, KH, KW = w_t.shape
    mats = []
    for ph in phases:
        for (_, kh) in ph["row_taps"]:
            T = jnp.zeros((Wwide * Cin, OWp * Cout), jnp.float32)
            for (shift, kw) in ph["col_taps"]:
                sel = jnp.eye(Wwide, OWp, k=-shift, dtype=jnp.float32)
                T = T + jnp.kron(sel, w_t[:, :, kh, kw])
            mats.append(T)
    wbd = jnp.stack(mats, axis=0).astype(jnp.bfloat16)   # (n_ph*n_rt, K, N)
    N = OWp * Cout
    bias_l = jnp.tile(b, OWp).reshape(1, N)
    gamma_l = jnp.tile(gamma, OWp).reshape(1, N)
    beta_l = jnp.tile(beta, OWp).reshape(1, N)
    smat = jnp.tile(jnp.eye(Cout, dtype=jnp.float32), (OWp, 1))   # (N, Cout)
    stmat = smat.T                                                # (Cout, N)
    return wbd, bias_l, gamma_l, beta_l, smat, stmat


def _phase_plan(phases):
    """Static (row offsets, wide-slice start) per phase for the kernel body."""
    return tuple((tuple(sh for (sh, _) in ph["row_taps"]), ph["sw_min"])
                 for ph in phases)


def _merge_phases(y, ps, B, OHp, OWp, Cout):
    """(ps*ps, B, OHp, OWp*Cout) phase stack -> NHWC (B, OHp*ps, OWp*ps, Cout)."""
    if ps == 1:
        return y.reshape(B, OHp, OWp, Cout)
    y = y.reshape(ps, ps, B, OHp, OWp, Cout)
    y = y.transpose(2, 3, 0, 4, 1, 5)
    return y.reshape(B, OHp * ps, OWp * ps, Cout)


# ----------------------------------------------------------------------------
# Fused kernel body: stride-decomposed conv + BatchNorm(batch stats) + tanh
# ----------------------------------------------------------------------------
def _convt_bn_tanh_body(x_val, wbd_ref, bias_ref, gamma_ref, beta_ref,
                        smat_ref, stmat_ref, o_ref, *,
                        phase_plan, B, OHp, OWp, Wwide, Cin, Cout, eps):
    K = Wwide * Cin
    N = OWp * Cout
    n_ph = len(phase_plan)
    n_rt = len(phase_plan[0][0])
    count = float(n_ph * B * OHp * OWp)

    smat = smat_ref[...]                    # (N, Cout)
    stmat = stmat_ref[...]                  # (Cout, N)
    bias_l = bias_ref[...][None]            # (1, 1, N)
    gamma_l = gamma_ref[...][None]
    beta_l = beta_ref[...][None]

    dn = (((2,), (1,)), ((0,), (0,)))       # batched matmul: bhk,bkn->bhn

    # Pass 1: per-phase conv (bf16 MXU, f32 accumulation) + per-channel sums.
    pre = []
    csum = jnp.zeros((1, Cout), jnp.float32)
    for p_idx, (row_offs, sw_min) in enumerate(phase_plan):
        acc = jnp.zeros((B, OHp, N), jnp.float32)
        for t_idx, sh in enumerate(row_offs):
            sl = x_val[:, sh:sh + OHp, sw_min * Cin:(sw_min + Wwide) * Cin]
            sl = sl.astype(jnp.bfloat16)
            w = wbd_ref[p_idx * n_rt + t_idx]              # (K, N) bf16
            wb = jnp.broadcast_to(w[None], (B, K, N))
            acc = acc + jax.lax.dot_general(
                sl, wb, dimension_numbers=dn,
                preferred_element_type=jnp.float32)
        acc = acc + bias_l
        pre.append(acc)
        red = jnp.sum(jnp.sum(acc, axis=0), axis=0, keepdims=True)      # (1, N)
        csum = csum + jnp.dot(red, smat)                                 # (1, Cout)

    mean_c = csum * (1.0 / count)
    mean_l = jnp.dot(mean_c, stmat)[None]                                # (1,1,N)

    # Pass 2: per-channel (biased) variance over the whole batch/spatial extent.
    cent = []
    vsum = jnp.zeros((1, Cout), jnp.float32)
    for acc in pre:
        d = acc - mean_l
        cent.append(d)
        red = jnp.sum(jnp.sum(d * d, axis=0), axis=0, keepdims=True)
        vsum = vsum + jnp.dot(red, smat)

    inv_c = jax.lax.rsqrt(vsum * (1.0 / count) + eps)                    # (1, Cout)
    scale_l = jnp.dot(inv_c, stmat)[None] * gamma_l                      # (1,1,N)

    # Pass 3: affine + tanh, store each phase slab.
    for p_idx, d in enumerate(cent):
        o_ref[p_idx] = jnp.tanh(d * scale_l + beta_l)


def _make_convt_kernel(phase_plan, *, B, OHp, OWp, Wwide, Cin, Cout, eps):
    def kernel(x_ref, wbd_ref, bias_ref, gamma_ref, beta_ref,
               smat_ref, stmat_ref, o_ref):
        _convt_bn_tanh_body(x_ref[...], wbd_ref, bias_ref, gamma_ref, beta_ref,
                            smat_ref, stmat_ref, o_ref,
                            phase_plan=phase_plan, B=B, OHp=OHp, OWp=OWp,
                            Wwide=Wwide, Cin=Cin, Cout=Cout, eps=eps)

    return kernel


def _make_linear_convt_kernel(phase_plan, *, B, OHp, OWp, Wwide, Cin, Cout,
                              eps, FL, Lh, Lw):
    def kernel(z_ref, wg_ref, bg_ref, wbd_ref, bias_ref, gamma_ref, beta_ref,
               smat_ref, stmat_ref, o_ref, xpad_ref):
        # Fused init_decoder Linear: a single matmul produces the whole NHWC,
        # lane-packed feature map; its rows are written straight into the
        # zero-padded VMEM scratch that feeds the conv below (no HBM trip).
        xpad_ref[...] = jnp.zeros(xpad_ref.shape, xpad_ref.dtype)
        full = jnp.dot(z_ref[...], wg_ref[...],
                       preferred_element_type=jnp.float32) + bg_ref[...]
        row_w = FL * Cin
        for h in range(FL):
            row = full[:, h * row_w:(h + 1) * row_w]
            xpad_ref[:, Lh + h:Lh + h + 1, Lw * Cin:(Lw + FL) * Cin] = row[:, None, :]
        _convt_bn_tanh_body(xpad_ref[...], wbd_ref, bias_ref, gamma_ref,
                            beta_ref, smat_ref, stmat_ref, o_ref,
                            phase_plan=phase_plan, B=B, OHp=OHp, OWp=OWp,
                            Wwide=Wwide, Cin=Cin, Cout=Cout, eps=eps)

    return kernel


# ----------------------------------------------------------------------------
# Layer wrappers
# ----------------------------------------------------------------------------
def conv_transpose2d_bn_tanh(x, w_t, b, gamma, beta, stride, padding,
                             output_padding, eps=_EPS):
    """Fused ConvTranspose2d + BatchNorm2d(batch stats) + Tanh.  x is NHWC."""
    B, H, W, Cin = x.shape
    Cin_w, Cout, KH, KW = w_t.shape
    assert Cin == Cin_w
    plan = _transposed_conv_plan(H, W, KH, KW, stride, padding, output_padding)
    if plan["fast"]:
        Lh, Rh, Lw, Rw = plan["pad"]
        x_pad = jnp.pad(x, ((0, 0), (Lh, Rh), (Lw, Rw), (0, 0)))
        ps = stride
    else:
        x_pad = _dilate_and_pad(x, KH, KW, stride, padding, output_padding)
        ps = 1
    phases = plan["phases"]
    OHp, OWp, Wwide = plan["OHp"], plan["OWp"], plan["Wwide"]
    Hp, Wp = x_pad.shape[1], x_pad.shape[2]
    x_pack = x_pad.reshape(B, Hp, Wp * Cin)                 # lane-packed NHWC
    wbd, bias_l, gamma_l, beta_l, smat, stmat = _convt_constants(
        w_t, b, gamma, beta, phases, OWp, Wwide)
    pplan = _phase_plan(phases)
    n_ph, N = len(phases), OWp * Cout
    kernel = _make_convt_kernel(pplan, B=B, OHp=OHp, OWp=OWp, Wwide=Wwide,
                                Cin=Cin, Cout=Cout, eps=eps)
    args = (x_pack, wbd, bias_l, gamma_l, beta_l, smat, stmat)
    y = pl.pallas_call(
        kernel,
        grid=(1,),
        in_specs=[_vspec(a.shape) for a in args],
        out_specs=_vspec((n_ph, B, OHp, N)),
        out_shape=jax.ShapeDtypeStruct((n_ph, B, OHp, N), jnp.float32),
        compiler_params=_COMPILER_PARAMS,
    )(*args)
    return _merge_phases(y, ps, B, OHp, OWp, Cout)


def linear_convt_bn_tanh(z, lin_w, lin_b, final_length, w_t, b, gamma, beta,
                         stride, padding, output_padding, eps=_EPS):
    """init_decoder Linear fused with the first ConvTranspose2d+BN+Tanh block."""
    B, z_dim = z.shape
    Cin, Cout, KH, KW = w_t.shape
    FL = final_length
    plan = _transposed_conv_plan(FL, FL, KH, KW, stride, padding, output_padding)
    if not plan["fast"]:
        # Rare configs: run the Linear standalone, then the generic conv path.
        h = _pallas_linear(z, lin_w, lin_b)
        h = h.reshape(B, Cin, FL, FL).transpose(0, 2, 3, 1)
        return conv_transpose2d_bn_tanh(h, w_t, b, gamma, beta, stride,
                                        padding, output_padding, eps)
    Lh, Rh, Lw, Rw = plan["pad"]
    Hp, Wp = FL + Lh + Rh, FL + Lw + Rw
    OHp, OWp, Wwide = plan["OHp"], plan["OWp"], plan["Wwide"]
    phases = plan["phases"]
    # Regroup the Linear weight/bias so dot(z, wg) directly produces the NHWC,
    # lane-packed (h, w*Cin + c) feature map (PyTorch column order is
    # NCHW-flat: c*FL*FL + h*FL + w).
    wg = lin_w.reshape(z_dim, Cin, FL, FL).transpose(0, 2, 3, 1).reshape(
        z_dim, FL * FL * Cin)
    bg = lin_b.reshape(Cin, FL, FL).transpose(1, 2, 0).reshape(1, FL * FL * Cin)
    wbd, bias_l, gamma_l, beta_l, smat, stmat = _convt_constants(
        w_t, b, gamma, beta, phases, OWp, Wwide)
    pplan = _phase_plan(phases)
    n_ph, N = len(phases), OWp * Cout
    kernel = _make_linear_convt_kernel(pplan, B=B, OHp=OHp, OWp=OWp,
                                       Wwide=Wwide, Cin=Cin, Cout=Cout,
                                       eps=eps, FL=FL, Lh=Lh, Lw=Lw)
    args = (z, wg, bg, wbd, bias_l, gamma_l, beta_l, smat, stmat)
    y = pl.pallas_call(
        kernel,
        grid=(1,),
        in_specs=[_vspec(a.shape) for a in args],
        out_specs=_vspec((n_ph, B, OHp, N)),
        out_shape=jax.ShapeDtypeStruct((n_ph, B, OHp, N), jnp.float32),
        scratch_shapes=[pltpu.VMEM((B, Hp, Wp * Cin), jnp.float32)],
        compiler_params=_COMPILER_PARAMS,
    )(*args)
    return _merge_phases(y, stride, B, OHp, OWp, Cout)


def _linear_kernel(z_ref, w_ref, b_ref, o_ref):
    o_ref[...] = jnp.dot(z_ref[...], w_ref[...],
                         preferred_element_type=jnp.float32) + b_ref[...]


def _pallas_linear(z, w, b):
    B = z.shape[0]
    N = w.shape[1]
    args = (z, w, b.reshape(1, N))
    return pl.pallas_call(
        _linear_kernel,
        grid=(1,),
        in_specs=[_vspec(a.shape) for a in args],
        out_specs=_vspec((B, N)),
        out_shape=jax.ShapeDtypeStruct((B, N), jnp.float32),
        compiler_params=_COMPILER_PARAMS,
    )(*args)


def _make_final_conv_kernel(k, OH, OW):
    def kernel(x_ref, w_ref, b_ref, o_ref):
        xv = x_ref[...]                                   # (B, H, W) f32
        acc = jnp.zeros(o_ref.shape, jnp.float32)
        for i in range(k):                                # pure-VPU shift-add
            for j in range(k):
                acc = acc + w_ref[i, j] * xv[:, i:i + OH, j:j + OW]
        o_ref[...] = jax.nn.sigmoid(acc + b_ref[0])

    return kernel


def conv2d_1ch_sigmoid(x, w, b):
    """Conv2d(1, 1, k, valid) + Sigmoid as a pure-VPU stencil kernel."""
    B, H, W, C = x.shape
    assert C == 1
    k = w.shape[0]
    OH, OW = H - k + 1, W - k + 1
    x3 = x.reshape(B, H, W)
    return pl.pallas_call(
        _make_final_conv_kernel(k, OH, OW),
        grid=(1,),
        in_specs=[_vspec((B, H, W)),
                  pl.BlockSpec(memory_space=pltpu.MemorySpace.SMEM),
                  pl.BlockSpec(memory_space=pltpu.MemorySpace.SMEM)],
        out_specs=_vspec((B, OH, OW)),
        out_shape=jax.ShapeDtypeStruct((B, OH, OW), jnp.float32),
        compiler_params=_COMPILER_PARAMS,
    )(x3, w, b)


# ----------------------------------------------------------------------------
# Decoder forward (mirrors VAE2DCNN_decoder.forward)
# ----------------------------------------------------------------------------
def _layer_cfgs(channels, kernels, strides, paddings, outpads):
    cfgs = []
    for i in range(len(channels) - 1, 0, -1):
        cfgs.append((channels[i], channels[i - 1], kernels[i], strides[i],
                     paddings[i], outpads[i]))
    cfgs.append((channels[0], 1, kernels[0], strides[0], paddings[0], outpads[0]))
    return cfgs


def vae2dcnn_decoder(z, params, *, channels, final_length, dec_kernels,
                     dec_strides, dec_paddings, dec_outpads):
    cfgs = _layer_cfgs(channels, dec_kernels, dec_strides, dec_paddings,
                       dec_outpads)
    h = None
    for li, (cin, cout, k, s, p, op) in enumerate(cfgs):
        pc = params["convt"][li]
        if li == 0:
            h = linear_convt_bn_tanh(z, params["lin_w"], params["lin_b"],
                                     final_length, pc["w"], pc["b"],
                                     pc["gamma"], pc["beta"], s, p, op)
        else:
            h = conv_transpose2d_bn_tanh(h, pc["w"], pc["b"], pc["gamma"],
                                         pc["beta"], s, p, op)
    pf = params["conv_f"]
    h = conv2d_1ch_sigmoid(h, pf["w"], pf["b"])           # (B, OH, OW)
    return h[:, None, :, :]                                # NCHW like PyTorch


# ----------------------------------------------------------------------------
# Parameters
# ----------------------------------------------------------------------------
def init_params(key, z_dim, final_length, channels, dec_kernels, dec_strides,
                dec_paddings, dec_outpads, f_kernel):
    cfgs = _layer_cfgs(channels, dec_kernels, dec_strides, dec_paddings,
                       dec_outpads)
    keys = iter(jax.random.split(key, 4 + 2 * len(cfgs)))
    scale = 0.1
    lin_out = final_length ** 2 * channels[-1]
    params = dict(
        lin_w=scale * jax.random.normal(next(keys), (z_dim, lin_out), jnp.float32),
        lin_b=scale * jax.random.normal(next(keys), (lin_out,), jnp.float32),
        convt=[],
    )
    for (cin, cout, k, s, p, op) in cfgs:
        params["convt"].append(dict(
            w=scale * jax.random.normal(next(keys), (cin, cout, k, k), jnp.float32),
            b=scale * jax.random.normal(next(keys), (cout,), jnp.float32),
            gamma=jnp.ones((cout,), jnp.float32),     # BatchNorm2d default init
            beta=jnp.zeros((cout,), jnp.float32),
        ))
    params["conv_f"] = dict(
        w=scale * jax.random.normal(next(keys), (f_kernel, f_kernel), jnp.float32),
        b=scale * jax.random.normal(next(keys), (1,), jnp.float32),
    )
    return params


# ----------------------------------------------------------------------------
# Pure-JAX reference (for a numerical sanity check of the Pallas path)
# ----------------------------------------------------------------------------
def _reference_decoder(z, params, *, channels, final_length, dec_kernels,
                       dec_strides, dec_paddings, dec_outpads, eps=_EPS):
    B = z.shape[0]
    cfgs = _layer_cfgs(channels, dec_kernels, dec_strides, dec_paddings,
                       dec_outpads)
    h = z @ params["lin_w"] + params["lin_b"]
    h = h.reshape(B, channels[-1], final_length, final_length).transpose(0, 2, 3, 1)
    for li, (cin, cout, k, s, p, op) in enumerate(cfgs):
        pc = params["convt"][li]
        w_hwio = jnp.flip(pc["w"], (2, 3)).transpose(2, 3, 0, 1)
        h = jax.lax.conv_general_dilated(
            h, w_hwio, window_strides=(1, 1),
            padding=[(k - 1 - p, k - 1 - p + op), (k - 1 - p, k - 1 - p + op)],
            lhs_dilation=(s, s),
            dimension_numbers=("NHWC", "HWIO", "NHWC")) + pc["b"]
        mean = h.mean(axis=(0, 1, 2))
        var = ((h - mean) ** 2).mean(axis=(0, 1, 2))
        h = jnp.tanh((h - mean) * jax.lax.rsqrt(var + eps) * pc["gamma"]
                     + pc["beta"])
    pf = params["conv_f"]
    h = jax.lax.conv_general_dilated(
        h, pf["w"][:, :, None, None], window_strides=(1, 1), padding="VALID",
        dimension_numbers=("NHWC", "HWIO", "NHWC")) + pf["b"]
    h = jax.nn.sigmoid(h)
    return h.transpose(0, 3, 1, 2)


# ----------------------------------------------------------------------------
if __name__ == "__main__":
    B = 2
    z_dim = 16
    final_length = 4
    channels = [4, 8]
    dec_kernels = [4, 4]
    dec_strides = [2, 2]
    dec_paddings = [1, 1]
    dec_outpads = [0, 0]
    f_kernel = 3

    key = jax.random.PRNGKey(0)
    kp, kz = jax.random.split(key)
    params = init_params(kp, z_dim, final_length, channels, dec_kernels,
                         dec_strides, dec_paddings, dec_outpads, f_kernel)
    z = jax.random.normal(kz, (B, z_dim), jnp.float32)

    fwd = jax.jit(lambda zz: vae2dcnn_decoder(
        zz, params, channels=channels, final_length=final_length,
        dec_kernels=dec_kernels, dec_strides=dec_strides,
        dec_paddings=dec_paddings, dec_outpads=dec_outpads))
    out = jax.block_until_ready(fwd(z))

    # expected: 4 -> 8 -> 16 (two stride-2 transposed convs) -> 14 (valid 3x3)
    assert out.shape == (B, 1, 14, 14), out.shape
    assert bool(jnp.all(jnp.isfinite(out)))
    assert bool(jnp.all((out >= 0.0) & (out <= 1.0))), "sigmoid range violated"

    ref = _reference_decoder(z, params, channels=channels,
                             final_length=final_length,
                             dec_kernels=dec_kernels, dec_strides=dec_strides,
                             dec_paddings=dec_paddings, dec_outpads=dec_outpads)
    max_err = float(jnp.max(jnp.abs(out - ref)))
    assert max_err < 3e-2, f"mismatch vs pure-JAX reference: {max_err}"

    print("KERNEL_OK")
</pallas_src>

<mosaic_0001>
module attributes {stable_mosaic.version = 11 : i64} {
  func.func @kernel(%arg0: i32, %arg1: memref<2x16xf32, #tpu.memory_space<vmem>>, %arg2: memref<16x128xf32, #tpu.memory_space<vmem>>, %arg3: memref<1x128xf32, #tpu.memory_space<vmem>>, %arg4: memref<8x40x16xbf16, #tpu.memory_space<vmem>>, %arg5: memref<1x16xf32, #tpu.memory_space<vmem>>, %arg6: memref<1x16xf32, #tpu.memory_space<vmem>>, %arg7: memref<1x16xf32, #tpu.memory_space<vmem>>, %arg8: memref<16x4xf32, #tpu.memory_space<vmem>>, %arg9: memref<4x16xf32, #tpu.memory_space<vmem>>, %arg10: memref<4x2x4x16xf32, #tpu.memory_space<vmem>>, %arg11: memref<2x6x48xf32, #tpu.memory_space<vmem>>) attributes {dimension_semantics = [#tpu.dimension_semantics<arbitrary>], iteration_bounds = array<i64: 1>, scalar_prefetch = 0 : i64, scratch_operands = 1 : i64, tpu.core_type = #tpu.core_type<tc>, window_params = [{pipeline_mode = #tpu.pipeline_mode<synchronous>, transform_indices = @transform_0, window_bounds = array<i64: 2, 16>}, {pipeline_mode = #tpu.pipeline_mode<synchronous>, transform_indices = @transform_1, window_bounds = array<i64: 16, 128>}, {pipeline_mode = #tpu.pipeline_mode<synchronous>, transform_indices = @transform_2, window_bounds = array<i64: 1, 128>}, {pipeline_mode = #tpu.pipeline_mode<synchronous>, transform_indices = @transform_3, window_bounds = array<i64: 8, 40, 16>}, {pipeline_mode = #tpu.pipeline_mode<synchronous>, transform_indices = @transform_4, window_bounds = array<i64: 1, 16>}, {pipeline_mode = #tpu.pipeline_mode<synchronous>, transform_indices = @transform_5, window_bounds = array<i64: 1, 16>}, {pipeline_mode = #tpu.pipeline_mode<synchronous>, transform_indices = @transform_6, window_bounds = array<i64: 1, 16>}, {pipeline_mode = #tpu.pipeline_mode<synchronous>, transform_indices = @transform_7, window_bounds = array<i64: 16, 4>}, {pipeline_mode = #tpu.pipeline_mode<synchronous>, transform_indices = @transform_8, window_bounds = array<i64: 4, 16>}, {pipeline_mode = #tpu.pipeline_mode<synchronous>, transform_indices = @transform_9, window_bounds = array<i64: 4, 2, 4, 16>}]} {
    %cst = arith.constant 0.000000e+00 : f32
    %0 = vector.broadcast %cst : f32 to vector<2x6x48xf32>
    %c0 = arith.constant 0 : index
    %c0_0 = arith.constant 0 : index
    %c0_1 = arith.constant 0 : index
    %1 = vector.load %arg11[%c0, %c0_0, %c0_1] : memref<2x6x48xf32, #tpu.memory_space<vmem>>, vector<2x6x48xf32>
    tpu.vector_store %arg11[%c0, %c0_0, %c0_1], %0 {strides = array<i32>} : memref<2x6x48xf32, #tpu.memory_space<vmem>>, vector<2x6x48xf32>,
    %c0_2 = arith.constant 0 : index
    %c0_3 = arith.constant 0 : index
    %2 = vector.load %arg1[%c0_2, %c0_3] : memref<2x16xf32, #tpu.memory_space<vmem>>, vector<2x16xf32>
    %c0_4 = arith.constant 0 : index
    %c0_5 = arith.constant 0 : index
    %3 = vector.load %arg2[%c0_4, %c0_5] : memref<16x128xf32, #tpu.memory_space<vmem>>, vector<16x128xf32>
    %cst_6 = arith.constant dense<0.000000e+00> : vector<2x128xf32>
    %4 = tpu.matmul %2, %3, %cst_6 {dimension_numbers = #tpu.dot_dimension_numbers<[1], [0], [0], [1], [0, 0, 1, 1], [], []>} : vector<2x16xf32>, vector<16x128xf32>, vector<2x128xf32> -> vector<2x128xf32>
    %c0_7 = arith.constant 0 : index
    %c0_8 = arith.constant 0 : index
    %5 = vector.load %arg3[%c0_7, %c0_8] : memref<1x128xf32, #tpu.memory_space<vmem>>, vector<1x128xf32>
    %6 = vector.broadcast %5 : vector<1x128xf32> to vector<2x128xf32>
    %7 = arith.addf %4, %6 : vector<2x128xf32>
    %8 = vector.extract_strided_slice %7 {offsets = [0, 0], sizes = [2, 32], strides = [1, 1]} : vector<2x128xf32> to vector<2x32xf32>
    %9 = vector.shape_cast %8 : vector<2x32xf32> to vector<2x1x32xf32>
    %c0_9 = arith.constant 0 : index
    %c1 = arith.constant 1 : index
    %c8 = arith.constant 8 : index
    %10 = vector.load %arg11[%c0_9, %c1, %c8] : memref<2x6x48xf32, #tpu.memory_space<vmem>>, vector<2x1x32xf32>
    tpu.vector_store %arg11[%c0_9, %c1, %c8], %9 {strides = array<i32>} : memref<2x6x48xf32, #tpu.memory_space<vmem>>, vector<2x1x32xf32>,
    %11 = vector.extract_strided_slice %7 {offsets = [0, 32], sizes = [2, 32], strides = [1, 1]} : vector<2x128xf32> to vector<2x32xf32>
    %12 = vector.shape_cast %11 : vector<2x32xf32> to vector<2x1x32xf32>
    %c0_10 = arith.constant 0 : index
    %c2 = arith.constant 2 : index
    %c8_11 = arith.constant 8 : index
    %13 = vector.load %arg11[%c0_10, %c2, %c8_11] : memref<2x6x48xf32, #tpu.memory_space<vmem>>, vector<2x1x32xf32>
    tpu.vector_store %arg11[%c0_10, %c2, %c8_11], %12 {strides = array<i32>} : memref<2x6x48xf32, #tpu.memory_space<vmem>>, vector<2x1x32xf32>,
    %14 = vector.extract_strided_slice %7 {offsets = [0, 64], sizes = [2, 32], strides = [1, 1]} : vector<2x128xf32> to vector<2x32xf32>
    %15 = vector.shape_cast %14 : vector<2x32xf32> to vector<2x1x32xf32>
    %c0_12 = arith.constant 0 : index
    %c3 = arith.constant 3 : index
    %c8_13 = arith.constant 8 : index
    %16 = vector.load %arg11[%c0_12, %c3, %c8_13] : memref<2x6x48xf32, #tpu.memory_space<vmem>>, vector<2x1x32xf32>
    tpu.vector_store %arg11[%c0_12, %c3, %c8_13], %15 {strides = array<i32>} : memref<2x6x48xf32, #tpu.memory_space<vmem>>, vector<2x1x32xf32>,
    %17 = vector.extract_strided_slice %7 {offsets = [0, 96], sizes = [2, 32], strides = [1, 1]} : vector<2x128xf32> to vector<2x32xf32>
    %18 = vector.shape_cast %17 : vector<2x32xf32> to vector<2x1x32xf32>
    %c0_14 = arith.constant 0 : index
    %c4 = arith.constant 4 : index
    %c8_15 = arith.constant 8 : index
    %19 = vector.load %arg11[%c0_14, %c4, %c8_15] : memref<2x6x48xf32, #tpu.memory_space<vmem>>, vector<2x1x32xf32>
    tpu.vector_store %arg11[%c0_14, %c4, %c8_15], %18 {strides = array<i32>} : memref<2x6x48xf32, #tpu.memory_space<vmem>>, vector<2x1x32xf32>,
    %c0_16 = arith.constant 0 : index
    %c0_17 = arith.constant 0 : index
    %c0_18 = arith.constant 0 : index
    %20 = vector.load %arg11[%c0_16, %c0_17, %c0_18] : memref<2x6x48xf32, #tpu.memory_space<vmem>>, vector<2x6x48xf32>
    %c0_19 = arith.constant 0 : index
    %c0_20 = arith.constant 0 : index
    %21 = vector.load %arg8[%c0_19, %c0_20] : memref<16x4xf32, #tpu.memory_space<vmem>>, vector<16x4xf32>
    %c0_21 = arith.constant 0 : index
    %c0_22 = arith.constant 0 : index
    %22 = vector.load %arg9[%c0_21, %c0_22] : memref<4x16xf32, #tpu.memory_space<vmem>>, vector<4x16xf32>
    %c0_23 = arith.constant 0 : index
    %c0_24 = arith.constant 0 : index
    %23 = vector.load %arg5[%c0_23, %c0_24] : memref<1x16xf32, #tpu.memory_space<vmem>>, vector<1x16xf32>
    %24 = vector.shape_cast %23 : vector<1x16xf32> to vector<1x1x16xf32>
    %c0_25 = arith.constant 0 : index
    %c0_26 = arith.constant 0 : index
    %25 = vector.load %arg6[%c0_25, %c0_26] : memref<1x16xf32, #tpu.memory_space<vmem>>, vector<1x16xf32>
    %26 = vector.shape_cast %25 : vector<1x16xf32> to vector<1x1x16xf32>
    %c0_27 = arith.constant 0 : index
    %c0_28 = arith.constant 0 : index
    %27 = vector.load %arg7[%c0_27, %c0_28] : memref<1x16xf32, #tpu.memory_space<vmem>>, vector<1x16xf32>
    %28 = vector.shape_cast %27 : vector<1x16xf32> to vector<1x1x16xf32>
    %cst_29 = arith.constant 0.000000e+00 : f32
    %29 = vector.broadcast %cst_29 : f32 to vector<1x4xf32>
    %cst_30 = arith.constant 0.000000e+00 : f32
    %30 = vector.broadcast %cst_30 : f32 to vector<2x4x16xf32>
    %31 = vector.extract_strided_slice %20 {offsets = [0, 1, 0], sizes = [2, 4, 40], strides = [1, 1, 1]} : vector<2x6x48xf32> to vector<2x4x40xf32>
    %32 = arith.truncf %31 : vector<2x4x40xf32> to vector<2x4x40xbf16>
    %c0_31 = arith.constant 0 : index
    %c0_32 = arith.constant 0 : index
    %c0_33 = arith.constant 0 : index
    %33 = vector.load %arg4[%c0_31, %c0_32, %c0_33] : memref<8x40x16xbf16, #tpu.memory_space<vmem>>, vector<1x40x16xbf16>
    %34 = vector.shape_cast %33 : vector<1x40x16xbf16> to vector<40x16xbf16>
    %35 = vector.shape_cast %34 : vector<40x16xbf16> to vector<1x40x16xbf16>
    %36 = vector.shape_cast %35 : vector<1x40x16xbf16> to vector<1x40x16xbf16>
    %37 = vector.broadcast %36 : vector<1x40x16xbf16> to vector<2x40x16xbf16>
    %cst_34 = arith.constant dense<0.000000e+00> : vector<2x4x16xf32>
    %38 = tpu.matmul %32, %37, %cst_34 {dimension_numbers = #tpu.dot_dimension_numbers<[2], [1], [1], [2], [0, 0, 0, 1, 1, 2], [0], [0]>} : vector<2x4x40xbf16>, vector<2x40x16xbf16>, vector<2x4x16xf32> -> vector<2x4x16xf32>
    %39 = arith.addf %30, %38 : vector<2x4x16xf32>
    %40 = vector.extract_strided_slice %20 {offsets = [0, 0, 0], sizes = [2, 4, 40], strides = [1, 1, 1]} : vector<2x6x48xf32> to vector<2x4x40xf32>
    %41 = arith.truncf %40 : vector<2x4x40xf32> to vector<2x4x40xbf16>
    %c1_35 = arith.constant 1 : index
    %c0_36 = arith.constant 0 : index
    %c0_37 = arith.constant 0 : index
    %42 = vector.load %arg4[%c1_35, %c0_36, %c0_37] : memref<8x40x16xbf16, #tpu.memory_space<vmem>>, vector<1x40x16xbf16>
    %43 = vector.shape_cast %42 : vector<1x40x16xbf16> to vector<40x16xbf16>
    %44 = vector.shape_cast %43 : vector<40x16xbf16> to vector<1x40x16xbf16>
    %45 = vector.shape_cast %44 : vector<1x40x16xbf16> to vector<1x40x16xbf16>
    %46 = vector.broadcast %45 : vector<1x40x16xbf16> to vector<2x40x16xbf16>
    %cst_38 = arith.constant dense<0.000000e+00> : vector<2x4x16xf32>
    %47 = tpu.matmul %41, %46, %cst_38 {dimension_numbers = #tpu.dot_dimension_numbers<[2], [1], [1], [2], [0, 0, 0, 1, 1, 2], [0], [0]>} : vector<2x4x40xbf16>, vector<2x40x16xbf16>, vector<2x4x16xf32> -> vector<2x4x16xf32>
    %48 = arith.addf %39, %47 : vector<2x4x16xf32>
    %49 = vector.broadcast %24 : vector<1x1x16xf32> to vector<2x4x16xf32>
    %50 = arith.addf %48, %49 : vector<2x4x16xf32>
    %cst_39 = arith.constant dense<0.000000e+00> : vector<4x16xf32>
    %51 = vector.multi_reduction <add>, %50, %cst_39 [0] : vector<2x4x16xf32> to vector<4x16xf32>
    %cst_40 = arith.constant dense<0.000000e+00> : vector<16xf32>
    %52 = vector.multi_reduction <add>, %51, %cst_40 [0] : vector<4x16xf32> to vector<16xf32>
    %53 = vector.shape_cast %52 : vector<16xf32> to vector<1x16xf32>
    %cst_41 = arith.constant dense<0.000000e+00> : vector<1x4xf32>
    %54 = tpu.matmul %53, %21, %cst_41 {dimension_numbers = #tpu.dot_dimension_numbers<[1], [0], [0], [1], [0, 0, 1, 1], [], []>} : vector<1x16xf32>, vector<16x4xf32>, vector<1x4xf32> -> vector<1x4xf32>
    %55 = arith.addf %29, %54 : vector<1x4xf32>
    %cst_42 = arith.constant 0.000000e+00 : f32
    %56 = vector.broadcast %cst_42 : f32 to vector<2x4x16xf32>
    %57 = vector.extract_strided_slice %20 {offsets = [0, 1, 8], sizes = [2, 4, 40], strides = [1, 1, 1]} : vector<2x6x48xf32> to vector<2x4x40xf32>
    %58 = arith.truncf %57 : vector<2x4x40xf32> to vector<2x4x40xbf16>
    %c2_43 = arith.constant 2 : index
    %c0_44 = arith.constant 0 : index
    %c0_45 = arith.constant 0 : index
    %59 = vector.load %arg4[%c2_43, %c0_44, %c0_45] : memref<8x40x16xbf16, #tpu.memory_space<vmem>>, vector<1x40x16xbf16>
    %60 = vector.shape_cast %59 : vector<1x40x16xbf16> to vector<40x16xbf16>
    %61 = vector.shape_cast %60 : vector<40x16xbf16> to vector<1x40x16xbf16>
    %62 = vector.shape_cast %61 : vector<1x40x16xbf16> to vector<1x40x16xbf16>
    %63 = vector.broadcast %62 : vector<1x40x16xbf16> to vector<2x40x16xbf16>
    %cst_46 = arith.constant dense<0.000000e+00> : vector<2x4x16xf32>
    %64 = tpu.matmul %58, %63, %cst_46 {dimension_numbers = #tpu.dot_dimension_numbers<[2], [1], [1], [2], [0, 0, 0, 1, 1, 2], [0], [0]>} : vector<2x4x40xbf16>, vector<2x40x16xbf16>, vector<2x4x16xf32> -> vector<2x4x16xf32>
    %65 = arith.addf %56, %64 : vector<2x4x16xf32>
    %66 = vector.extract_strided_slice %20 {offsets = [0, 0, 8], sizes = [2, 4, 40], strides = [1, 1, 1]} : vector<2x6x48xf32> to vector<2x4x40xf32>
    %67 = arith.truncf %66 : vector<2x4x40xf32> to vector<2x4x40xbf16>
    %c3_47 = arith.constant 3 : index
    %c0_48 = arith.constant 0 : index
    %c0_49 = arith.constant 0 : index
    %68 = vector.load %arg4[%c3_47, %c0_48, %c0_49] : memref<8x40x16xbf16, #tpu.memory_space<vmem>>, vector<1x40x16xbf16>
    %69 = vector.shape_cast %68 : vector<1x40x16xbf16> to vector<40x16xbf16>
    %70 = vector.shape_cast %69 : vector<40x16xbf16> to vector<1x40x16xbf16>
    %71 = vector.shape_cast %70 : vector<1x40x16xbf16> to vector<1x40x16xbf16>
    %72 = vector.broadcast %71 : vector<1x40x16xbf16> to vector<2x40x16xbf16>
    %cst_50 = arith.constant dense<0.000000e+00> : vector<2x4x16xf32>
    %73 = tpu.matmul %67, %72, %cst_50 {dimension_numbers = #tpu.dot_dimension_numbers<[2], [1], [1], [2], [0, 0, 0, 1, 1, 2], [0], [0]>} : vector<2x4x40xbf16>, vector<2x40x16xbf16>, vector<2x4x16xf32> -> vector<2x4x16xf32>
    %74 = arith.addf %65, %73 : vector<2x4x16xf32>
    %75 = vector.broadcast %24 : vector<1x1x16xf32> to vector<2x4x16xf32>
    %76 = arith.addf %74, %75 : vector<2x4x16xf32>
    %cst_51 = arith.constant dense<0.000000e+00> : vector<4x16xf32>
    %77 = vector.multi_reduction <add>, %76, %cst_51 [0] : vector<2x4x16xf32> to vector<4x16xf32>
    %cst_52 = arith.constant dense<0.000000e+00> : vector<16xf32>
    %78 = vector.multi_reduction <add>, %77, %cst_52 [0] : vector<4x16xf32> to vector<16xf32>
    %79 = vector.shape_cast %78 : vector<16xf32> to vector<1x16xf32>
    %cst_53 = arith.constant dense<0.000000e+00> : vector<1x4xf32>
    %80 = tpu.matmul %79, %21, %cst_53 {dimension_numbers = #tpu.dot_dimension_numbers<[1], [0], [0], [1], [0, 0, 1, 1], [], []>} : vector<1x16xf32>, vector<16x4xf32>, vector<1x4xf32> -> vector<1x4xf32>
    %81 = arith.addf %55, %80 : vector<1x4xf32>
    %cst_54 = arith.constant 0.000000e+00 : f32
    %82 = vector.broadcast %cst_54 : f32 to vector<2x4x16xf32>
    %83 = vector.extract_strided_slice %20 {offsets = [0, 2, 0], sizes = [2, 4, 40], strides = [1, 1, 1]} : vector<2x6x48xf32> to vector<2x4x40xf32>
    %84 = arith.truncf %83 : vector<2x4x40xf32> to vector<2x4x40xbf16>
    %c4_55 = arith.constant 4 : index
    %c0_56 = arith.constant 0 : index
    %c0_57 = arith.constant 0 : index
    %85 = vector.load %arg4[%c4_55, %c0_56, %c0_57] : memref<8x40x16xbf16, #tpu.memory_space<vmem>>, vector<1x40x16xbf16>
    %86 = vector.shape_cast %85 : vector<1x40x16xbf16> to vector<40x16xbf16>
    %87 = vector.shape_cast %86 : vector<40x16xbf16> to vector<1x40x16xbf16>
    %88 = vector.shape_cast %87 : vector<1x40x16xbf16> to vector<1x40x16xbf16>
    %89 = vector.broadcast %88 : vector<1x40x16xbf16> to vector<2x40x16xbf16>
    %cst_58 = arith.constant dense<0.000000e+00> : vector<2x4x16xf32>
    %90 = tpu.matmul %84, %89, %cst_58 {dimension_numbers = #tpu.dot_dimension_numbers<[2], [1], [1], [2], [0, 0, 0, 1, 1, 2], [0], [0]>} : vector<2x4x40xbf16>, vector<2x40x16xbf16>, vector<2x4x16xf32> -> vector<2x4x16xf32>
    %91 = arith.addf %82, %90 : vector<2x4x16xf32>
    %92 = vector.extract_strided_slice %20 {offsets = [0, 1, 0], sizes = [2, 4, 40], strides = [1, 1, 1]} : vector<2x6x48xf32> to vector<2x4x40xf32>
    %93 = arith.truncf %92 : vector<2x4x40xf32> to vector<2x4x40xbf16>
    %c5 = arith.constant 5 : index
    %c0_59 = arith.constant 0 : index
    %c0_60 = arith.constant 0 : index
    %94 = vector.load %arg4[%c5, %c0_59, %c0_60] : memref<8x40x16xbf16, #tpu.memory_space<vmem>>, vector<1x40x16xbf16>
    %95 = vector.shape_cast %94 : vector<1x40x16xbf16> to vector<40x16xbf16>
    %96 = vector.shape_cast %95 : vector<40x16xbf16> to vector<1x40x16xbf16>
    %97 = vector.shape_cast %96 : vector<1x40x16xbf16> to vector<1x40x16xbf16>
    %98 = vector.broadcast %97 : vector<1x40x16xbf16> to vector<2x40x16xbf16>
    %cst_61 = arith.constant dense<0.000000e+00> : vector<2x4x16xf32>
    %99 = tpu.matmul %93, %98, %cst_61 {dimension_numbers = #tpu.dot_dimension_numbers<[2], [1], [1], [2], [0, 0, 0, 1, 1, 2], [0], [0]>} : vector<2x4x40xbf16>, vector<2x40x16xbf16>, vector<2x4x16xf32> -> vector<2x4x16xf32>
    %100 = arith.addf %91, %99 : vector<2x4x16xf32>
    %101 = vector.broadcast %24 : vector<1x1x16xf32> to vector<2x4x16xf32>
    %102 = arith.addf %100, %101 : vector<2x4x16xf32>
    %cst_62 = arith.constant dense<0.000000e+00> : vector<4x16xf32>
    %103 = vector.multi_reduction <add>, %102, %cst_62 [0] : vector<2x4x16xf32> to vector<4x16xf32>
    %cst_63 = arith.constant dense<0.000000e+00> : vector<16xf32>
    %104 = vector.multi_reduction <add>, %103, %cst_63 [0] : vector<4x16xf32> to vector<16xf32>
    %105 = vector.shape_cast %104 : vector<16xf32> to vector<1x16xf32>
    %cst_64 = arith.constant dense<0.000000e+00> : vector<1x4xf32>
    %106 = tpu.matmul %105, %21, %cst_64 {dimension_numbers = #tpu.dot_dimension_numbers<[1], [0], [0], [1], [0, 0, 1, 1], [], []>} : vector<1x16xf32>, vector<16x4xf32>, vector<1x4xf32> -> vector<1x4xf32>
    %107 = arith.addf %81, %106 : vector<1x4xf32>
    %cst_65 = arith.constant 0.000000e+00 : f32
    %108 = vector.broadcast %cst_65 : f32 to vector<2x4x16xf32>
    %109 = vector.extract_strided_slice %20 {offsets = [0, 2, 8], sizes = [2, 4, 40], strides = [1, 1, 1]} : vector<2x6x48xf32> to vector<2x4x40xf32>
    %110 = arith.truncf %109 : vector<2x4x40xf32> to vector<2x4x40xbf16>
    %c6 = arith.constant 6 : index
    %c0_66 = arith.constant 0 : index
    %c0_67 = arith.constant 0 : index
    %111 = vector.load %arg4[%c6, %c0_66, %c0_67] : memref<8x40x16xbf16, #tpu.memory_space<vmem>>, vector<1x40x16xbf16>
    %112 = vector.shape_cast %111 : vector<1x40x16xbf16> to vector<40x16xbf16>
    %113 = vector.shape_cast %112 : vector<40x16xbf16> to vector<1x40x16xbf16>
    %114 = vector.shape_cast %113 : vector<1x40x16xbf16> to vector<1x40x16xbf16>
    %115 = vector.broadcast %114 : vector<1x40x16xbf16> to vector<2x40x16xbf16>
    %cst_68 = arith.constant dense<0.000000e+00> : vector<2x4x16xf32>
    %116 = tpu.matmul %110, %115, %cst_68 {dimension_numbers = #tpu.dot_dimension_numbers<[2], [1], [1], [2], [0, 0, 0, 1, 1, 2], [0], [0]>} : vector<2x4x40xbf16>, vector<2x40x16xbf16>, vector<2x4x16xf32> -> vector<2x4x16xf32>
    %117 = arith.addf %108, %116 : vector<2x4x16xf32>
    %118 = vector.extract_strided_slice %20 {offsets = [0, 1, 8], sizes = [2, 4, 40], strides = [1, 1, 1]} : vector<2x6x48xf32> to vector<2x4x40xf32>
    %119 = arith.truncf %118 : vector<2x4x40xf32> to vector<2x4x40xbf16>
    %c7 = arith.constant 7 : index
    %c0_69 = arith.constant 0 : index
    %c0_70 = arith.constant 0 : index
    %120 = vector.load %arg4[%c7, %c0_69, %c0_70] : memref<8x40x16xbf16, #tpu.memory_space<vmem>>, vector<1x40x16xbf16>
    %121 = vector.shape_cast %120 : vector<1x40x16xbf16> to vector<40x16xbf16>
    %122 = vector.shape_cast %121 : vector<40x16xbf16> to vector<1x40x16xbf16>
    %123 = vector.shape_cast %122 : vector<1x40x16xbf16> to vector<1x40x16xbf16>
    %124 = vector.broadcast %123 : vector<1x40x16xbf16> to vector<2x40x16xbf16>
    %cst_71 = arith.constant dense<0.000000e+00> : vector<2x4x16xf32>
    %125 = tpu.matmul %119, %124, %cst_71 {dimension_numbers = #tpu.dot_dimension_numbers<[2], [1], [1], [2], [0, 0, 0, 1, 1, 2], [0], [0]>} : vector<2x4x40xbf16>, vector<2x40x16xbf16>, vector<2x4x16xf32> -> vector<2x4x16xf32>
    %126 = arith.addf %117, %125 : vector<2x4x16xf32>
    %127 = vector.broadcast %24 : vector<1x1x16xf32> to vector<2x4x16xf32>
    %128 = arith.addf %126, %127 : vector<2x4x16xf32>
    %cst_72 = arith.constant dense<0.000000e+00> : vector<4x16xf32>
    %129 = vector.multi_reduction <add>, %128, %cst_72 [0] : vector<2x4x16xf32> to vector<4x16xf32>
    %cst_73 = arith.constant dense<0.000000e+00> : vector<16xf32>
    %130 = vector.multi_reduction <add>, %129, %cst_73 [0] : vector<4x16xf32> to vector<16xf32>
    %131 = vector.shape_cast %130 : vector<16xf32> to vector<1x16xf32>
    %cst_74 = arith.constant dense<0.000000e+00> : vector<1x4xf32>
    %132 = tpu.matmul %131, %21, %cst_74 {dimension_numbers = #tpu.dot_dimension_numbers<[1], [0], [0], [1], [0, 0, 1, 1], [], []>} : vector<1x16xf32>, vector<16x4xf32>, vector<1x4xf32> -> vector<1x4xf32>
    %133 = arith.addf %107, %132 : vector<1x4xf32>
    %cst_75 = arith.constant 7.812500e-03 : f32
    %134 = vector.broadcast %cst_75 : f32 to vector<1x4xf32>
    %135 = arith.mulf %133, %134 : vector<1x4xf32>
    %cst_76 = arith.constant dense<0.000000e+00> : vector<1x16xf32>
    %136 = tpu.matmul %135, %22, %cst_76 {dimension_numbers = #tpu.dot_dimension_numbers<[1], [0], [0], [1], [0, 0, 1, 1], [], []>} : vector<1x4xf32>, vector<4x16xf32>, vector<1x16xf32> -> vector<1x16xf32>
    %137 = vector.shape_cast %136 : vector<1x16xf32> to vector<1x1x16xf32>
    %cst_77 = arith.constant 0.000000e+00 : f32
    %138 = vector.broadcast %cst_77 : f32 to vector<1x4xf32>
    %139 = vector.broadcast %137 : vector<1x1x16xf32> to vector<2x4x16xf32>
    %140 = arith.subf %50, %139 : vector<2x4x16xf32>
    %141 = arith.mulf %140, %140 : vector<2x4x16xf32>
    %cst_78 = arith.constant dense<0.000000e+00> : vector<4x16xf32>
    %142 = vector.multi_reduction <add>, %141, %cst_78 [0] : vector<2x4x16xf32> to vector<4x16xf32>
    %cst_79 = arith.constant dense<0.000000e+00> : vector<16xf32>
    %143 = vector.multi_reduction <add>, %142, %cst_79 [0] : vector<4x16xf32> to vector<16xf32>
    %144 = vector.shape_cast %143 : vector<16xf32> to vector<1x16xf32>
    %cst_80 = arith.constant dense<0.000000e+00> : vector<1x4xf32>
    %145 = tpu.matmul %144, %21, %cst_80 {dimension_numbers = #tpu.dot_dimension_numbers<[1], [0], [0], [1], [0, 0, 1, 1], [], []>} : vector<1x16xf32>, vector<16x4xf32>, vector<1x4xf32> -> vector<1x4xf32>
    %146 = arith.addf %138, %145 : vector<1x4xf32>
    %147 = vector.broadcast %137 : vector<1x1x16xf32> to vector<2x4x16xf32>
    %148 = arith.subf %76, %147 : vector<2x4x16xf32>
    %149 = arith.mulf %148, %148 : vector<2x4x16xf32>
    %cst_81 = arith.constant dense<0.000000e+00> : vector<4x16xf32>
    %150 = vector.multi_reduction <add>, %149, %cst_81 [0] : vector<2x4x16xf32> to vector<4x16xf32>
    %cst_82 = arith.constant dense<0.000000e+00> : vector<16xf32>
    %151 = vector.multi_reduction <add>, %150, %cst_82 [0] : vector<4x16xf32> to vector<16xf32>
    %152 = vector.shape_cast %151 : vector<16xf32> to vector<1x16xf32>
    %cst_83 = arith.constant dense<0.000000e+00> : vector<1x4xf32>
    %153 = tpu.matmul %152, %21, %cst_83 {dimension_numbers = #tpu.dot_dimension_numbers<[1], [0], [0], [1], [0, 0, 1, 1], [], []>} : vector<1x16xf32>, vector<16x4xf32>, vector<1x4xf32> -> vector<1x4xf32>
    %154 = arith.addf %146, %153 : vector<1x4xf32>
    %155 = vector.broadcast %137 : vector<1x1x16xf32> to vector<2x4x16xf32>
    %156 = arith.subf %102, %155 : vector<2x4x16xf32>
    %157 = arith.mulf %156, %156 : vector<2x4x16xf32>
    %cst_84 = arith.constant dense<0.000000e+00> : vector<4x16xf32>
    %158 = vector.multi_reduction <add>, %157, %cst_84 [0] : vector<2x4x16xf32> to vector<4x16xf32>
    %cst_85 = arith.constant dense<0.000000e+00> : vector<16xf32>
    %159 = vector.multi_reduction <add>, %158, %cst_85 [0] : vector<4x16xf32> to vector<16xf32>
    %160 = vector.shape_cast %159 : vector<16xf32> to vector<1x16xf32>
    %cst_86 = arith.constant dense<0.000000e+00> : vector<1x4xf32>
    %161 = tpu.matmul %160, %21, %cst_86 {dimension_numbers = #tpu.dot_dimension_numbers<[1], [0], [0], [1], [0, 0, 1, 1], [], []>} : vector<1x16xf32>, vector<16x4xf32>, vector<1x4xf32> -> vector<1x4xf32>
    %162 = arith.addf %154, %161 : vector<1x4xf32>
    %163 = vector.broadcast %137 : vector<1x1x16xf32> to vector<2x4x16xf32>
    %164 = arith.subf %128, %163 : vector<2x4x16xf32>
    %165 = arith.mulf %164, %164 : vector<2x4x16xf32>
    %cst_87 = arith.constant dense<0.000000e+00> : vector<4x16xf32>
    %166 = vector.multi_reduction <add>, %165, %cst_87 [0] : vector<2x4x16xf32> to vector<4x16xf32>
    %cst_88 = arith.constant dense<0.000000e+00> : vector<16xf32>
    %167 = vector.multi_reduction <add>, %166, %cst_88 [0] : vector<4x16xf32> to vector<16xf32>
    %168 = vector.shape_cast %167 : vector<16xf32> to vector<1x16xf32>
    %cst_89 = arith.constant dense<0.000000e+00> : vector<1x4xf32>
    %169 = tpu.matmul %168, %21, %cst_89 {dimension_numbers = #tpu.dot_dimension_numbers<[1], [0], [0], [1], [0, 0, 1, 1], [], []>} : vector<1x16xf32>, vector<16x4xf32>, vector<1x4xf32> -> vector<1x4xf32>
    %170 = arith.addf %162, %169 : vector<1x4xf32>
    %cst_90 = arith.constant 7.812500e-03 : f32
    %171 = vector.broadcast %cst_90 : f32 to vector<1x4xf32>
    %172 = arith.mulf %170, %171 : vector<1x4xf32>
    %cst_91 = arith.constant 9.99999974E-6 : f32
    %173 = vector.broadcast %cst_91 : f32 to vector<1x4xf32>
    %174 = arith.addf %172, %173 : vector<1x4xf32>
    %175 = math.rsqrt %174 : vector<1x4xf32>
    %cst_92 = arith.constant dense<0.000000e+00> : vector<1x16xf32>
    %176 = tpu.matmul %175, %22, %cst_92 {dimension_numbers = #tpu.dot_dimension_numbers<[1], [0], [0], [1], [0, 0, 1, 1], [], []>} : vector<1x4xf32>, vector<4x16xf32>, vector<1x16xf32> -> vector<1x16xf32>
    %177 = vector.shape_cast %176 : vector<1x16xf32> to vector<1x1x16xf32>
    %178 = arith.mulf %177, %26 : vector<1x1x16xf32>
    %179 = vector.broadcast %178 : vector<1x1x16xf32> to vector<2x4x16xf32>
    %180 = arith.mulf %140, %179 : vector<2x4x16xf32>
    %181 = vector.broadcast %28 : vector<1x1x16xf32> to vector<2x4x16xf32>
    %182 = arith.addf %180, %181 : vector<2x4x16xf32>
    %183 = math.tanh %182 : vector<2x4x16xf32>
    %c0_93 = arith.constant 0 : index
    %c0_94 = arith.constant 0 : index
    %c0_95 = arith.constant 0 : index
    %c0_96 = arith.constant 0 : index
    %184 = vector.load %arg10[%c0_93, %c0_94, %c0_95, %c0_96] : memref<4x2x4x16xf32, #tpu.memory_space<vmem>>, vector<1x2x4x16xf32>
    %185 = vector.shape_cast %184 : vector<1x2x4x16xf32> to vector<2x4x16xf32>
    %186 = vector.shape_cast %183 : vector<2x4x16xf32> to vector<1x2x4x16xf32>
    tpu.vector_store %arg10[%c0_93, %c0_94, %c0_95, %c0_96], %186 {strides = array<i32>} : memref<4x2x4x16xf32, #tpu.memory_space<vmem>>, vector<1x2x4x16xf32>,
    %187 = vector.broadcast %178 : vector<1x1x16xf32> to vector<2x4x16xf32>
    %188 = arith.mulf %148, %187 : vector<2x4x16xf32>
    %189 = vector.broadcast %28 : vector<1x1x16xf32> to vector<2x4x16xf32>
    %190 = arith.addf %188, %189 : vector<2x4x16xf32>
    %191 = math.tanh %190 : vector<2x4x16xf32>
    %c1_97 = arith.constant 1 : index
    %c0_98 = arith.constant 0 : index
    %c0_99 = arith.constant 0 : index
    %c0_100 = arith.constant 0 : index
    %192 = vector.load %arg10[%c1_97, %c0_98, %c0_99, %c0_100] : memref<4x2x4x16xf32, #tpu.memory_space<vmem>>, vector<1x2x4x16xf32>
    %193 = vector.shape_cast %192 : vector<1x2x4x16xf32> to vector<2x4x16xf32>
    %194 = vector.shape_cast %191 : vector<2x4x16xf32> to vector<1x2x4x16xf32>
    tpu.vector_store %arg10[%c1_97, %c0_98, %c0_99, %c0_100], %194 {strides = array<i32>} : memref<4x2x4x16xf32, #tpu.memory_space<vmem>>, vector<1x2x4x16xf32>,
    %195 = vector.broadcast %178 : vector<1x1x16xf32> to vector<2x4x16xf32>
    %196 = arith.mulf %156, %195 : vector<2x4x16xf32>
    %197 = vector.broadcast %28 : vector<1x1x16xf32> to vector<2x4x16xf32>
    %198 = arith.addf %196, %197 : vector<2x4x16xf32>
    %199 = math.tanh %198 : vector<2x4x16xf32>
    %c2_101 = arith.constant 2 : index
    %c0_102 = arith.constant 0 : index
    %c0_103 = arith.constant 0 : index
    %c0_104 = arith.constant 0 : index
    %200 = vector.load %arg10[%c2_101, %c0_102, %c0_103, %c0_104] : memref<4x2x4x16xf32, #tpu.memory_space<vmem>>, vector<1x2x4x16xf32>
    %201 = vector.shape_cast %200 : vector<1x2x4x16xf32> to vector<2x4x16xf32>
    %202 = vector.shape_cast %199 : vector<2x4x16xf32> to vector<1x2x4x16xf32>
    tpu.vector_store %arg10[%c2_101, %c0_102, %c0_103, %c0_104], %202 {strides = array<i32>} : memref<4x2x4x16xf32, #tpu.memory_space<vmem>>, vector<1x2x4x16xf32>,
    %203 = vector.broadcast %178 : vector<1x1x16xf32> to vector<2x4x16xf32>
    %204 = arith.mulf %164, %203 : vector<2x4x16xf32>
    %205 = vector.broadcast %28 : vector<1x1x16xf32> to vector<2x4x16xf32>
    %206 = arith.addf %204, %205 : vector<2x4x16xf32>
    %207 = math.tanh %206 : vector<2x4x16xf32>
    %c3_105 = arith.constant 3 : index
    %c0_106 = arith.constant 0 : index
    %c0_107 = arith.constant 0 : index
    %c0_108 = arith.constant 0 : index
    %208 = vector.load %arg10[%c3_105, %c0_106, %c0_107, %c0_108] : memref<4x2x4x16xf32, #tpu.memory_space<vmem>>, vector<1x2x4x16xf32>
    %209 = vector.shape_cast %208 : vector<1x2x4x16xf32> to vector<2x4x16xf32>
    %210 = vector.shape_cast %207 : vector<2x4x16xf32> to vector<1x2x4x16xf32>
    tpu.vector_store %arg10[%c3_105, %c0_106, %c0_107, %c0_108], %210 {strides = array<i32>} : memref<4x2x4x16xf32, #tpu.memory_space<vmem>>, vector<1x2x4x16xf32>,
    return
  }
  func.func @transform_0(%arg0: i32) -> (i32, i32) {
    %c0_i32 = arith.constant 0 : i32
    %c0_i32_0 = arith.constant 0 : i32
    %c0_i32_1 = arith.constant 0 : i32
    return %c0_i32, %c0_i32_0 : i32, i32
  }
  func.func @transform_1(%arg0: i32) -> (i32, i32) {
    %c0_i32 = arith.constant 0 : i32
    %c0_i32_0 = arith.constant 0 : i32
    %c0_i32_1 = arith.constant 0 : i32
    return %c0_i32, %c0_i32_0 : i32, i32
  }
  func.func @transform_2(%arg0: i32) -> (i32, i32) {
    %c0_i32 = arith.constant 0 : i32
    %c0_i32_0 = arith.constant 0 : i32
    %c0_i32_1 = arith.constant 0 : i32
    return %c0_i32, %c0_i32_0 : i32, i32
  }
  func.func @transform_3(%arg0: i32) -> (i32, i32, i32) {
    %c0_i32 = arith.constant 0 : i32
    %c0_i32_0 = arith.constant 0 : i32
    %c0_i32_1 = arith.constant 0 : i32
    %c0_i32_2 = arith.constant 0 : i32
    return %c0_i32, %c0_i32_0, %c0_i32_1 : i32, i32, i32
  }
  func.func @transform_4(%arg0: i32) -> (i32, i32) {
    %c0_i32 = arith.constant 0 : i32
    %c0_i32_0 = arith.constant 0 : i32
    %c0_i32_1 = arith.constant 0 : i32
    return %c0_i32, %c0_i32_0 : i32, i32
  }
  func.func @transform_5(%arg0: i32) -> (i32, i32) {
    %c0_i32 = arith.constant 0 : i32
    %c0_i32_0 = arith.constant 0 : i32
    %c0_i32_1 = arith.constant 0 : i32
    return %c0_i32, %c0_i32_0 : i32, i32
  }
  func.func @transform_6(%arg0: i32) -> (i32, i32) {
    %c0_i32 = arith.constant 0 : i32
    %c0_i32_0 = arith.constant 0 : i32
    %c0_i32_1 = arith.constant 0 : i32
    return %c0_i32, %c0_i32_0 : i32, i32
  }
  func.func @transform_7(%arg0: i32) -> (i32, i32) {
    %c0_i32 = arith.constant 0 : i32
    %c0_i32_0 = arith.constant 0 : i32
    %c0_i32_1 = arith.constant 0 : i32
    return %c0_i32, %c0_i32_0 : i32, i32
  }
  func.func @transform_8(%arg0: i32) -> (i32, i32) {
    %c0_i32 = arith.constant 0 : i32
    %c0_i32_0 = arith.constant 0 : i32
    %c0_i32_1 = arith.constant 0 : i32
    return %c0_i32, %c0_i32_0 : i32, i32
  }
  func.func @transform_9(%arg0: i32) -> (i32, i32, i32, i32) {
    %c0_i32 = arith.constant 0 : i32
    %c0_i32_0 = arith.constant 0 : i32
    %c0_i32_1 = arith.constant 0 : i32
    %c0_i32_2 = arith.constant 0 : i32
    %c0_i32_3 = arith.constant 0 : i32
    return %c0_i32, %c0_i32_0, %c0_i32_1, %c0_i32_2 : i32, i32, i32, i32
  }
}

module attributes {stable_mosaic.version = 11 : i64} {
  func.func @kernel(%arg0: i32, %arg1: memref<2x10x40xf32, #tpu.memory_space<vmem>>, %arg2: memref<8x36x8xbf16, #tpu.memory_space<vmem>>, %arg3: memref<1x8xf32, #tpu.memory_space<vmem>>, %arg4: memref<1x8xf32, #tpu.memory_space<vmem>>, %arg5: memref<1x8xf32, #tpu.memory_space<vmem>>, %arg6: memref<8x1xf32, #tpu.memory_space<vmem>>, %arg7: memref<1x8xf32, #tpu.memory_space<vmem>>, %arg8: memref<4x2x8x8xf32, #tpu.memory_space<vmem>>) attributes {dimension_semantics = [#tpu.dimension_semantics<arbitrary>], iteration_bounds = array<i64: 1>, scalar_prefetch = 0 : i64, scratch_operands = 0 : i64, tpu.core_type = #tpu.core_type<tc>, window_params = [{pipeline_mode = #tpu.pipeline_mode<synchronous>, transform_indices = @transform_0, window_bounds = array<i64: 2, 10, 40>}, {pipeline_mode = #tpu.pipeline_mode<synchronous>, transform_indices = @transform_1, window_bounds = array<i64: 8, 36, 8>}, {pipeline_mode = #tpu.pipeline_mode<synchronous>, transform_indices = @transform_2, window_bounds = array<i64: 1, 8>}, {pipeline_mode = #tpu.pipeline_mode<synchronous>, transform_indices = @transform_3, window_bounds = array<i64: 1, 8>}, {pipeline_mode = #tpu.pipeline_mode<synchronous>, transform_indices = @transform_4, window_bounds = array<i64: 1, 8>}, {pipeline_mode = #tpu.pipeline_mode<synchronous>, transform_indices = @transform_5, window_bounds = array<i64: 8, 1>}, {pipeline_mode = #tpu.pipeline_mode<synchronous>, transform_indices = @transform_6, window_bounds = array<i64: 1, 8>}, {pipeline_mode = #tpu.pipeline_mode<synchronous>, transform_indices = @transform_7, window_bounds = array<i64: 4, 2, 8, 8>}]} {
    %c0 = arith.constant 0 : index
    %c0_0 = arith.constant 0 : index
    %c0_1 = arith.constant 0 : index
    %0 = vector.load %arg1[%c0, %c0_0, %c0_1] : memref<2x10x40xf32, #tpu.memory_space<vmem>>, vector<2x10x40xf32>
    %c0_2 = arith.constant 0 : index
    %c0_3 = arith.constant 0 : index
    %1 = vector.load %arg6[%c0_2, %c0_3] : memref<8x1xf32, #tpu.memory_space<vmem>>, vector<8x1xf32>
    %c0_4 = arith.constant 0 : index
    %c0_5 = arith.constant 0 : index
    %2 = vector.load %arg7[%c0_4, %c0_5] : memref<1x8xf32, #tpu.memory_space<vmem>>, vector<1x8xf32>
    %c0_6 = arith.constant 0 : index
    %c0_7 = arith.constant 0 : index
    %3 = vector.load %arg3[%c0_6, %c0_7] : memref<1x8xf32, #tpu.memory_space<vmem>>, vector<1x8xf32>
    %4 = vector.shape_cast %3 : vector<1x8xf32> to vector<1x1x8xf32>
    %c0_8 = arith.constant 0 : index
    %c0_9 = arith.constant 0 : index
    %5 = vector.load %arg4[%c0_8, %c0_9] : memref<1x8xf32, #tpu.memory_space<vmem>>, vector<1x8xf32>
    %6 = vector.shape_cast %5 : vector<1x8xf32> to vector<1x1x8xf32>
    %c0_10 = arith.constant 0 : index
    %c0_11 = arith.constant 0 : index
    %7 = vector.load %arg5[%c0_10, %c0_11] : memref<1x8xf32, #tpu.memory_space<vmem>>, vector<1x8xf32>
    %8 = vector.shape_cast %7 : vector<1x8xf32> to vector<1x1x8xf32>
    %cst = arith.constant 0.000000e+00 : f32
    %9 = vector.broadcast %cst : f32 to vector<1x1xf32>
    %cst_12 = arith.constant 0.000000e+00 : f32
    %10 = vector.broadcast %cst_12 : f32 to vector<2x8x8xf32>
    %11 = vector.extract_strided_slice %0 {offsets = [0, 1, 0], sizes = [2, 8, 36], strides = [1, 1, 1]} : vector<2x10x40xf32> to vector<2x8x36xf32>
    %12 = arith.truncf %11 : vector<2x8x36xf32> to vector<2x8x36xbf16>
    %c0_13 = arith.constant 0 : index
    %c0_14 = arith.constant 0 : index
    %c0_15 = arith.constant 0 : index
    %13 = vector.load %arg2[%c0_13, %c0_14, %c0_15] : memref<8x36x8xbf16, #tpu.memory_space<vmem>>, vector<1x36x8xbf16>
    %14 = vector.shape_cast %13 : vector<1x36x8xbf16> to vector<36x8xbf16>
    %15 = vector.shape_cast %14 : vector<36x8xbf16> to vector<1x36x8xbf16>
    %16 = vector.shape_cast %15 : vector<1x36x8xbf16> to vector<1x36x8xbf16>
    %17 = vector.broadcast %16 : vector<1x36x8xbf16> to vector<2x36x8xbf16>
    %cst_16 = arith.constant dense<0.000000e+00> : vector<2x8x8xf32>
    %18 = tpu.matmul %12, %17, %cst_16 {dimension_numbers = #tpu.dot_dimension_numbers<[2], [1], [1], [2], [0, 0, 0, 1, 1, 2], [0], [0]>} : vector<2x8x36xbf16>, vector<2x36x8xbf16>, vector<2x8x8xf32> -> vector<2x8x8xf32>
    %19 = arith.addf %10, %18 : vector<2x8x8xf32>
    %20 = vector.extract_strided_slice %0 {offsets = [0, 0, 0], sizes = [2, 8, 36], strides = [1, 1, 1]} : vector<2x10x40xf32> to vector<2x8x36xf32>
    %21 = arith.truncf %20 : vector<2x8x36xf32> to vector<2x8x36xbf16>
    %c1 = arith.constant 1 : index
    %c0_17 = arith.constant 0 : index
    %c0_18 = arith.constant 0 : index
    %22 = vector.load %arg2[%c1, %c0_17, %c0_18] : memref<8x36x8xbf16, #tpu.memory_space<vmem>>, vector<1x36x8xbf16>
    %23 = vector.shape_cast %22 : vector<1x36x8xbf16> to vector<36x8xbf16>
    %24 = vector.shape_cast %23 : vector<36x8xbf16> to vector<1x36x8xbf16>
    %25 = vector.shape_cast %24 : vector<1x36x8xbf16> to vector<1x36x8xbf16>
    %26 = vector.broadcast %25 : vector<1x36x8xbf16> to vector<2x36x8xbf16>
    %cst_19 = arith.constant dense<0.000000e+00> : vector<2x8x8xf32>
    %27 = tpu.matmul %21, %26, %cst_19 {dimension_numbers = #tpu.dot_dimension_numbers<[2], [1], [1], [2], [0, 0, 0, 1, 1, 2], [0], [0]>} : vector<2x8x36xbf16>, vector<2x36x8xbf16>, vector<2x8x8xf32> -> vector<2x8x8xf32>
    %28 = arith.addf %19, %27 : vector<2x8x8xf32>
    %29 = vector.broadcast %4 : vector<1x1x8xf32> to vector<2x8x8xf32>
    %30 = arith.addf %28, %29 : vector<2x8x8xf32>
    %cst_20 = arith.constant dense<0.000000e+00> : vector<8x8xf32>
    %31 = vector.multi_reduction <add>, %30, %cst_20 [0] : vector<2x8x8xf32> to vector<8x8xf32>
    %cst_21 = arith.constant dense<0.000000e+00> : vector<8xf32>
    %32 = vector.multi_reduction <add>, %31, %cst_21 [0] : vector<8x8xf32> to vector<8xf32>
    %33 = vector.shape_cast %32 : vector<8xf32> to vector<1x8xf32>
    %cst_22 = arith.constant dense<0.000000e+00> : vector<1x1xf32>
    %34 = tpu.matmul %33, %1, %cst_22 {dimension_numbers = #tpu.dot_dimension_numbers<[1], [0], [0], [1], [0, 0, 1, 1], [], []>} : vector<1x8xf32>, vector<8x1xf32>, vector<1x1xf32> -> vector<1x1xf32>
    %35 = arith.addf %9, %34 : vector<1x1xf32>
    %cst_23 = arith.constant 0.000000e+00 : f32
    %36 = vector.broadcast %cst_23 : f32 to vector<2x8x8xf32>
    %37 = vector.extract_strided_slice %0 {offsets = [0, 1, 4], sizes = [2, 8, 36], strides = [1, 1, 1]} : vector<2x10x40xf32> to vector<2x8x36xf32>
    %38 = arith.truncf %37 : vector<2x8x36xf32> to vector<2x8x36xbf16>
    %c2 = arith.constant 2 : index
    %c0_24 = arith.constant 0 : index
    %c0_25 = arith.constant 0 : index
    %39 = vector.load %arg2[%c2, %c0_24, %c0_25] : memref<8x36x8xbf16, #tpu.memory_space<vmem>>, vector<1x36x8xbf16>
    %40 = vector.shape_cast %39 : vector<1x36x8xbf16> to vector<36x8xbf16>
    %41 = vector.shape_cast %40 : vector<36x8xbf16> to vector<1x36x8xbf16>
    %42 = vector.shape_cast %41 : vector<1x36x8xbf16> to vector<1x36x8xbf16>
    %43 = vector.broadcast %42 : vector<1x36x8xbf16> to vector<2x36x8xbf16>
    %cst_26 = arith.constant dense<0.000000e+00> : vector<2x8x8xf32>
    %44 = tpu.matmul %38, %43, %cst_26 {dimension_numbers = #tpu.dot_dimension_numbers<[2], [1], [1], [2], [0, 0, 0, 1, 1, 2], [0], [0]>} : vector<2x8x36xbf16>, vector<2x36x8xbf16>, vector<2x8x8xf32> -> vector<2x8x8xf32>
    %45 = arith.addf %36, %44 : vector<2x8x8xf32>
    %46 = vector.extract_strided_slice %0 {offsets = [0, 0, 4], sizes = [2, 8, 36], strides = [1, 1, 1]} : vector<2x10x40xf32> to vector<2x8x36xf32>
    %47 = arith.truncf %46 : vector<2x8x36xf32> to vector<2x8x36xbf16>
    %c3 = arith.constant 3 : index
    %c0_27 = arith.constant 0 : index
    %c0_28 = arith.constant 0 : index
    %48 = vector.load %arg2[%c3, %c0_27, %c0_28] : memref<8x36x8xbf16, #tpu.memory_space<vmem>>, vector<1x36x8xbf16>
    %49 = vector.shape_cast %48 : vector<1x36x8xbf16> to vector<36x8xbf16>
    %50 = vector.shape_cast %49 : vector<36x8xbf16> to vector<1x36x8xbf16>
    %51 = vector.shape_cast %50 : vector<1x36x8xbf16> to vector<1x36x8xbf16>
    %52 = vector.broadcast %51 : vector<1x36x8xbf16> to vector<2x36x8xbf16>
    %cst_29 = arith.constant dense<0.000000e+00> : vector<2x8x8xf32>
    %53 = tpu.matmul %47, %52, %cst_29 {dimension_numbers = #tpu.dot_dimension_numbers<[2], [1], [1], [2], [0, 0, 0, 1, 1, 2], [0], [0]>} : vector<2x8x36xbf16>, vector<2x36x8xbf16>, vector<2x8x8xf32> -> vector<2x8x8xf32>
    %54 = arith.addf %45, %53 : vector<2x8x8xf32>
    %55 = vector.broadcast %4 : vector<1x1x8xf32> to vector<2x8x8xf32>
    %56 = arith.addf %54, %55 : vector<2x8x8xf32>
    %cst_30 = arith.constant dense<0.000000e+00> : vector<8x8xf32>
    %57 = vector.multi_reduction <add>, %56, %cst_30 [0] : vector<2x8x8xf32> to vector<8x8xf32>
    %cst_31 = arith.constant dense<0.000000e+00> : vector<8xf32>
    %58 = vector.multi_reduction <add>, %57, %cst_31 [0] : vector<8x8xf32> to vector<8xf32>
    %59 = vector.shape_cast %58 : vector<8xf32> to vector<1x8xf32>
    %cst_32 = arith.constant dense<0.000000e+00> : vector<1x1xf32>
    %60 = tpu.matmul %59, %1, %cst_32 {dimension_numbers = #tpu.dot_dimension_numbers<[1], [0], [0], [1], [0, 0, 1, 1], [], []>} : vector<1x8xf32>, vector<8x1xf32>, vector<1x1xf32> -> vector<1x1xf32>
    %61 = arith.addf %35, %60 : vector<1x1xf32>
    %cst_33 = arith.constant 0.000000e+00 : f32
    %62 = vector.broadcast %cst_33 : f32 to vector<2x8x8xf32>
    %63 = vector.extract_strided_slice %0 {offsets = [0, 2, 0], sizes = [2, 8, 36], strides = [1, 1, 1]} : vector<2x10x40xf32> to vector<2x8x36xf32>
    %64 = arith.truncf %63 : vector<2x8x36xf32> to vector<2x8x36xbf16>
    %c4 = arith.constant 4 : index
    %c0_34 = arith.constant 0 : index
    %c0_35 = arith.constant 0 : index
    %65 = vector.load %arg2[%c4, %c0_34, %c0_35] : memref<8x36x8xbf16, #tpu.memory_space<vmem>>, vector<1x36x8xbf16>
    %66 = vector.shape_cast %65 : vector<1x36x8xbf16> to vector<36x8xbf16>
    %67 = vector.shape_cast %66 : vector<36x8xbf16> to vector<1x36x8xbf16>
    %68 = vector.shape_cast %67 : vector<1x36x8xbf16> to vector<1x36x8xbf16>
    %69 = vector.broadcast %68 : vector<1x36x8xbf16> to vector<2x36x8xbf16>
    %cst_36 = arith.constant dense<0.000000e+00> : vector<2x8x8xf32>
    %70 = tpu.matmul %64, %69, %cst_36 {dimension_numbers = #tpu.dot_dimension_numbers<[2], [1], [1], [2], [0, 0, 0, 1, 1, 2], [0], [0]>} : vector<2x8x36xbf16>, vector<2x36x8xbf16>, vector<2x8x8xf32> -> vector<2x8x8xf32>
    %71 = arith.addf %62, %70 : vector<2x8x8xf32>
    %72 = vector.extract_strided_slice %0 {offsets = [0, 1, 0], sizes = [2, 8, 36], strides = [1, 1, 1]} : vector<2x10x40xf32> to vector<2x8x36xf32>
    %73 = arith.truncf %72 : vector<2x8x36xf32> to vector<2x8x36xbf16>
    %c5 = arith.constant 5 : index
    %c0_37 = arith.constant 0 : index
    %c0_38 = arith.constant 0 : index
    %74 = vector.load %arg2[%c5, %c0_37, %c0_38] : memref<8x36x8xbf16, #tpu.memory_space<vmem>>, vector<1x36x8xbf16>
    %75 = vector.shape_cast %74 : vector<1x36x8xbf16> to vector<36x8xbf16>
    %76 = vector.shape_cast %75 : vector<36x8xbf16> to vector<1x36x8xbf16>
    %77 = vector.shape_cast %76 : vector<1x36x8xbf16> to vector<1x36x8xbf16>
    %78 = vector.broadcast %77 : vector<1x36x8xbf16> to vector<2x36x8xbf16>
    %cst_39 = arith.constant dense<0.000000e+00> : vector<2x8x8xf32>
    %79 = tpu.matmul %73, %78, %cst_39 {dimension_numbers = #tpu.dot_dimension_numbers<[2], [1], [1], [2], [0, 0, 0, 1, 1, 2], [0], [0]>} : vector<2x8x36xbf16>, vector<2x36x8xbf16>, vector<2x8x8xf32> -> vector<2x8x8xf32>
    %80 = arith.addf %71, %79 : vector<2x8x8xf32>
    %81 = vector.broadcast %4 : vector<1x1x8xf32> to vector<2x8x8xf32>
    %82 = arith.addf %80, %81 : vector<2x8x8xf32>
    %cst_40 = arith.constant dense<0.000000e+00> : vector<8x8xf32>
    %83 = vector.multi_reduction <add>, %82, %cst_40 [0] : vector<2x8x8xf32> to vector<8x8xf32>
    %cst_41 = arith.constant dense<0.000000e+00> : vector<8xf32>
    %84 = vector.multi_reduction <add>, %83, %cst_41 [0] : vector<8x8xf32> to vector<8xf32>
    %85 = vector.shape_cast %84 : vector<8xf32> to vector<1x8xf32>
    %cst_42 = arith.constant dense<0.000000e+00> : vector<1x1xf32>
    %86 = tpu.matmul %85, %1, %cst_42 {dimension_numbers = #tpu.dot_dimension_numbers<[1], [0], [0], [1], [0, 0, 1, 1], [], []>} : vector<1x8xf32>, vector<8x1xf32>, vector<1x1xf32> -> vector<1x1xf32>
    %87 = arith.addf %61, %86 : vector<1x1xf32>
    %cst_43 = arith.constant 0.000000e+00 : f32
    %88 = vector.broadcast %cst_43 : f32 to vector<2x8x8xf32>
    %89 = vector.extract_strided_slice %0 {offsets = [0, 2, 4], sizes = [2, 8, 36], strides = [1, 1, 1]} : vector<2x10x40xf32> to vector<2x8x36xf32>
    %90 = arith.truncf %89 : vector<2x8x36xf32> to vector<2x8x36xbf16>
    %c6 = arith.constant 6 : index
    %c0_44 = arith.constant 0 : index
    %c0_45 = arith.constant 0 : index
    %91 = vector.load %arg2[%c6, %c0_44, %c0_45] : memref<8x36x8xbf16, #tpu.memory_space<vmem>>, vector<1x36x8xbf16>
    %92 = vector.shape_cast %91 : vector<1x36x8xbf16> to vector<36x8xbf16>
    %93 = vector.shape_cast %92 : vector<36x8xbf16> to vector<1x36x8xbf16>
    %94 = vector.shape_cast %93 : vector<1x36x8xbf16> to vector<1x36x8xbf16>
    %95 = vector.broadcast %94 : vector<1x36x8xbf16> to vector<2x36x8xbf16>
    %cst_46 = arith.constant dense<0.000000e+00> : vector<2x8x8xf32>
    %96 = tpu.matmul %90, %95, %cst_46 {dimension_numbers = #tpu.dot_dimension_numbers<[2], [1], [1], [2], [0, 0, 0, 1, 1, 2], [0], [0]>} : vector<2x8x36xbf16>, vector<2x36x8xbf16>, vector<2x8x8xf32> -> vector<2x8x8xf32>
    %97 = arith.addf %88, %96 : vector<2x8x8xf32>
    %98 = vector.extract_strided_slice %0 {offsets = [0, 1, 4], sizes = [2, 8, 36], strides = [1, 1, 1]} : vector<2x10x40xf32> to vector<2x8x36xf32>
    %99 = arith.truncf %98 : vector<2x8x36xf32> to vector<2x8x36xbf16>
    %c7 = arith.constant 7 : index
    %c0_47 = arith.constant 0 : index
    %c0_48 = arith.constant 0 : index
    %100 = vector.load %arg2[%c7, %c0_47, %c0_48] : memref<8x36x8xbf16, #tpu.memory_space<vmem>>, vector<1x36x8xbf16>
    %101 = vector.shape_cast %100 : vector<1x36x8xbf16> to vector<36x8xbf16>
    %102 = vector.shape_cast %101 : vector<36x8xbf16> to vector<1x36x8xbf16>
    %103 = vector.shape_cast %102 : vector<1x36x8xbf16> to vector<1x36x8xbf16>
    %104 = vector.broadcast %103 : vector<1x36x8xbf16> to vector<2x36x8xbf16>
    %cst_49 = arith.constant dense<0.000000e+00> : vector<2x8x8xf32>
    %105 = tpu.matmul %99, %104, %cst_49 {dimension_numbers = #tpu.dot_dimension_numbers<[2], [1], [1], [2], [0, 0, 0, 1, 1, 2], [0], [0]>} : vector<2x8x36xbf16>, vector<2x36x8xbf16>, vector<2x8x8xf32> -> vector<2x8x8xf32>
    %106 = arith.addf %97, %105 : vector<2x8x8xf32>
    %107 = vector.broadcast %4 : vector<1x1x8xf32> to vector<2x8x8xf32>
    %108 = arith.addf %106, %107 : vector<2x8x8xf32>
    %cst_50 = arith.constant dense<0.000000e+00> : vector<8x8xf32>
    %109 = vector.multi_reduction <add>, %108, %cst_50 [0] : vector<2x8x8xf32> to vector<8x8xf32>
    %cst_51 = arith.constant dense<0.000000e+00> : vector<8xf32>
    %110 = vector.multi_reduction <add>, %109, %cst_51 [0] : vector<8x8xf32> to vector<8xf32>
    %111 = vector.shape_cast %110 : vector<8xf32> to vector<1x8xf32>
    %cst_52 = arith.constant dense<0.000000e+00> : vector<1x1xf32>
    %112 = tpu.matmul %111, %1, %cst_52 {dimension_numbers = #tpu.dot_dimension_numbers<[1], [0], [0], [1], [0, 0, 1, 1], [], []>} : vector<1x8xf32>, vector<8x1xf32>, vector<1x1xf32> -> vector<1x1xf32>
    %113 = arith.addf %87, %112 : vector<1x1xf32>
    %cst_53 = arith.constant 0.001953125 : f32
    %114 = vector.broadcast %cst_53 : f32 to vector<1x1xf32>
    %115 = arith.mulf %113, %114 : vector<1x1xf32>
    %cst_54 = arith.constant dense<0.000000e+00> : vector<1x8xf32>
    %116 = tpu.matmul %115, %2, %cst_54 {dimension_numbers = #tpu.dot_dimension_numbers<[1], [0], [0], [1], [0, 0, 1, 1], [], []>} : vector<1x1xf32>, vector<1x8xf32>, vector<1x8xf32> -> vector<1x8xf32>
    %117 = vector.shape_cast %116 : vector<1x8xf32> to vector<1x1x8xf32>
    %cst_55 = arith.constant 0.000000e+00 : f32
    %118 = vector.broadcast %cst_55 : f32 to vector<1x1xf32>
    %119 = vector.broadcast %117 : vector<1x1x8xf32> to vector<2x8x8xf32>
    %120 = arith.subf %30, %119 : vector<2x8x8xf32>
    %121 = arith.mulf %120, %120 : vector<2x8x8xf32>
    %cst_56 = arith.constant dense<0.000000e+00> : vector<8x8xf32>
    %122 = vector.multi_reduction <add>, %121, %cst_56 [0] : vector<2x8x8xf32> to vector<8x8xf32>
    %cst_57 = arith.constant dense<0.000000e+00> : vector<8xf32>
    %123 = vector.multi_reduction <add>, %122, %cst_57 [0] : vector<8x8xf32> to vector<8xf32>
    %124 = vector.shape_cast %123 : vector<8xf32> to vector<1x8xf32>
    %cst_58 = arith.constant dense<0.000000e+00> : vector<1x1xf32>
    %125 = tpu.matmul %124, %1, %cst_58 {dimension_numbers = #tpu.dot_dimension_numbers<[1], [0], [0], [1], [0, 0, 1, 1], [], []>} : vector<1x8xf32>, vector<8x1xf32>, vector<1x1xf32> -> vector<1x1xf32>
    %126 = arith.addf %118, %125 : vector<1x1xf32>
    %127 = vector.broadcast %117 : vector<1x1x8xf32> to vector<2x8x8xf32>
    %128 = arith.subf %56, %127 : vector<2x8x8xf32>
    %129 = arith.mulf %128, %128 : vector<2x8x8xf32>
    %cst_59 = arith.constant dense<0.000000e+00> : vector<8x8xf32>
    %130 = vector.multi_reduction <add>, %129, %cst_59 [0] : vector<2x8x8xf32> to vector<8x8xf32>
    %cst_60 = arith.constant dense<0.000000e+00> : vector<8xf32>
    %131 = vector.multi_reduction <add>, %130, %cst_60 [0] : vector<8x8xf32> to vector<8xf32>
    %132 = vector.shape_cast %131 : vector<8xf32> to vector<1x8xf32>
    %cst_61 = arith.constant dense<0.000000e+00> : vector<1x1xf32>
    %133 = tpu.matmul %132, %1, %cst_61 {dimension_numbers = #tpu.dot_dimension_numbers<[1], [0], [0], [1], [0, 0, 1, 1], [], []>} : vector<1x8xf32>, vector<8x1xf32>, vector<1x1xf32> -> vector<1x1xf32>
    %134 = arith.addf %126, %133 : vector<1x1xf32>
    %135 = vector.broadcast %117 : vector<1x1x8xf32> to vector<2x8x8xf32>
    %136 = arith.subf %82, %135 : vector<2x8x8xf32>
    %137 = arith.mulf %136, %136 : vector<2x8x8xf32>
    %cst_62 = arith.constant dense<0.000000e+00> : vector<8x8xf32>
    %138 = vector.multi_reduction <add>, %137, %cst_62 [0] : vector<2x8x8xf32> to vector<8x8xf32>
    %cst_63 = arith.constant dense<0.000000e+00> : vector<8xf32>
    %139 = vector.multi_reduction <add>, %138, %cst_63 [0] : vector<8x8xf32> to vector<8xf32>
    %140 = vector.shape_cast %139 : vector<8xf32> to vector<1x8xf32>
    %cst_64 = arith.constant dense<0.000000e+00> : vector<1x1xf32>
    %141 = tpu.matmul %140, %1, %cst_64 {dimension_numbers = #tpu.dot_dimension_numbers<[1], [0], [0], [1], [0, 0, 1, 1], [], []>} : vector<1x8xf32>, vector<8x1xf32>, vector<1x1xf32> -> vector<1x1xf32>
    %142 = arith.addf %134, %141 : vector<1x1xf32>
    %143 = vector.broadcast %117 : vector<1x1x8xf32> to vector<2x8x8xf32>
    %144 = arith.subf %108, %143 : vector<2x8x8xf32>
    %145 = arith.mulf %144, %144 : vector<2x8x8xf32>
    %cst_65 = arith.constant dense<0.000000e+00> : vector<8x8xf32>
    %146 = vector.multi_reduction <add>, %145, %cst_65 [0] : vector<2x8x8xf32> to vector<8x8xf32>
    %cst_66 = arith.constant dense<0.000000e+00> : vector<8xf32>
    %147 = vector.multi_reduction <add>, %146, %cst_66 [0] : vector<8x8xf32> to vector<8xf32>
    %148 = vector.shape_cast %147 : vector<8xf32> to vector<1x8xf32>
    %cst_67 = arith.constant dense<0.000000e+00> : vector<1x1xf32>
    %149 = tpu.matmul %148, %1, %cst_67 {dimension_numbers = #tpu.dot_dimension_numbers<[1], [0], [0], [1], [0, 0, 1, 1], [], []>} : vector<1x8xf32>, vector<8x1xf32>, vector<1x1xf32> -> vector<1x1xf32>
    %150 = arith.addf %142, %149 : vector<1x1xf32>
    %cst_68 = arith.constant 0.001953125 : f32
    %151 = vector.broadcast %cst_68 : f32 to vector<1x1xf32>
    %152 = arith.mulf %150, %151 : vector<1x1xf32>
    %cst_69 = arith.constant 9.99999974E-6 : f32
    %153 = vector.broadcast %cst_69 : f32 to vector<1x1xf32>
    %154 = arith.addf %152, %153 : vector<1x1xf32>
    %155 = math.rsqrt %154 : vector<1x1xf32>
    %cst_70 = arith.constant dense<0.000000e+00> : vector<1x8xf32>
    %156 = tpu.matmul %155, %2, %cst_70 {dimension_numbers = #tpu.dot_dimension_numbers<[1], [0], [0], [1], [0, 0, 1, 1], [], []>} : vector<1x1xf32>, vector<1x8xf32>, vector<1x8xf32> -> vector<1x8xf32>
    %157 = vector.shape_cast %156 : vector<1x8xf32> to vector<1x1x8xf32>
    %158 = arith.mulf %157, %6 : vector<1x1x8xf32>
    %159 = vector.broadcast %158 : vector<1x1x8xf32> to vector<2x8x8xf32>
    %160 = arith.mulf %120, %159 : vector<2x8x8xf32>
    %161 = vector.broadcast %8 : vector<1x1x8xf32> to vector<2x8x8xf32>
    %162 = arith.addf %160, %161 : vector<2x8x8xf32>
    %163 = math.tanh %162 : vector<2x8x8xf32>
    %c0_71 = arith.constant 0 : index
    %c0_72 = arith.constant 0 : index
    %c0_73 = arith.constant 0 : index
    %c0_74 = arith.constant 0 : index
    %164 = vector.load %arg8[%c0_71, %c0_72, %c0_73, %c0_74] : memref<4x2x8x8xf32, #tpu.memory_space<vmem>>, vector<1x2x8x8xf32>
    %165 = vector.shape_cast %164 : vector<1x2x8x8xf32> to vector<2x8x8xf32>
    %166 = vector.shape_cast %163 : vector<2x8x8xf32> to vector<1x2x8x8xf32>
    tpu.vector_store %arg8[%c0_71, %c0_72, %c0_73, %c0_74], %166 {strides = array<i32>} : memref<4x2x8x8xf32, #tpu.memory_space<vmem>>, vector<1x2x8x8xf32>,
    %167 = vector.broadcast %158 : vector<1x1x8xf32> to vector<2x8x8xf32>
    %168 = arith.mulf %128, %167 : vector<2x8x8xf32>
    %169 = vector.broadcast %8 : vector<1x1x8xf32> to vector<2x8x8xf32>
    %170 = arith.addf %168, %169 : vector<2x8x8xf32>
    %171 = math.tanh %170 : vector<2x8x8xf32>
    %c1_75 = arith.constant 1 : index
    %c0_76 = arith.constant 0 : index
    %c0_77 = arith.constant 0 : index
    %c0_78 = arith.constant 0 : index
    %172 = vector.load %arg8[%c1_75, %c0_76, %c0_77, %c0_78] : memref<4x2x8x8xf32, #tpu.memory_space<vmem>>, vector<1x2x8x8xf32>
    %173 = vector.shape_cast %172 : vector<1x2x8x8xf32> to vector<2x8x8xf32>
    %174 = vector.shape_cast %171 : vector<2x8x8xf32> to vector<1x2x8x8xf32>
    tpu.vector_store %arg8[%c1_75, %c0_76, %c0_77, %c0_78], %174 {strides = array<i32>} : memref<4x2x8x8xf32, #tpu.memory_space<vmem>>, vector<1x2x8x8xf32>,
    %175 = vector.broadcast %158 : vector<1x1x8xf32> to vector<2x8x8xf32>
    %176 = arith.mulf %136, %175 : vector<2x8x8xf32>
    %177 = vector.broadcast %8 : vector<1x1x8xf32> to vector<2x8x8xf32>
    %178 = arith.addf %176, %177 : vector<2x8x8xf32>
    %179 = math.tanh %178 : vector<2x8x8xf32>
    %c2_79 = arith.constant 2 : index
    %c0_80 = arith.constant 0 : index
    %c0_81 = arith.constant 0 : index
    %c0_82 = arith.constant 0 : index
    %180 = vector.load %arg8[%c2_79, %c0_80, %c0_81, %c0_82] : memref<4x2x8x8xf32, #tpu.memory_space<vmem>>, vector<1x2x8x8xf32>
    %181 = vector.shape_cast %180 : vector<1x2x8x8xf32> to vector<2x8x8xf32>
    %182 = vector.shape_cast %179 : vector<2x8x8xf32> to vector<1x2x8x8xf32>
    tpu.vector_store %arg8[%c2_79, %c0_80, %c0_81, %c0_82], %182 {strides = array<i32>} : memref<4x2x8x8xf32, #tpu.memory_space<vmem>>, vector<1x2x8x8xf32>,
    %183 = vector.broadcast %158 : vector<1x1x8xf32> to vector<2x8x8xf32>
    %184 = arith.mulf %144, %183 : vector<2x8x8xf32>
    %185 = vector.broadcast %8 : vector<1x1x8xf32> to vector<2x8x8xf32>
    %186 = arith.addf %184, %185 : vector<2x8x8xf32>
    %187 = math.tanh %186 : vector<2x8x8xf32>
    %c3_83 = arith.constant 3 : index
    %c0_84 = arith.constant 0 : index
    %c0_85 = arith.constant 0 : index
    %c0_86 = arith.constant 0 : index
    %188 = vector.load %arg8[%c3_83, %c0_84, %c0_85, %c0_86] : memref<4x2x8x8xf32, #tpu.memory_space<vmem>>, vector<1x2x8x8xf32>
    %189 = vector.shape_cast %188 : vector<1x2x8x8xf32> to vector<2x8x8xf32>
    %190 = vector.shape_cast %187 : vector<2x8x8xf32> to vector<1x2x8x8xf32>
    tpu.vector_store %arg8[%c3_83, %c0_84, %c0_85, %c0_86], %190 {strides = array<i32>} : memref<4x2x8x8xf32, #tpu.memory_space<vmem>>, vector<1x2x8x8xf32>,
    return
  }
  func.func @transform_0(%arg0: i32) -> (i32, i32, i32) {
    %c0_i32 = arith.constant 0 : i32
    %c0_i32_0 = arith.constant 0 : i32
    %c0_i32_1 = arith.constant 0 : i32
    %c0_i32_2 = arith.constant 0 : i32
    return %c0_i32, %c0_i32_0, %c0_i32_1 : i32, i32, i32
  }
  func.func @transform_1(%arg0: i32) -> (i32, i32, i32) {
    %c0_i32 = arith.constant 0 : i32
    %c0_i32_0 = arith.constant 0 : i32
    %c0_i32_1 = arith.constant 0 : i32
    %c0_i32_2 = arith.constant 0 : i32
    return %c0_i32, %c0_i32_0, %c0_i32_1 : i32, i32, i32
  }
  func.func @transform_2(%arg0: i32) -> (i32, i32) {
    %c0_i32 = arith.constant 0 : i32
    %c0_i32_0 = arith.constant 0 : i32
    %c0_i32_1 = arith.constant 0 : i32
    return %c0_i32, %c0_i32_0 : i32, i32
  }
  func.func @transform_3(%arg0: i32) -> (i32, i32) {
    %c0_i32 = arith.constant 0 : i32
    %c0_i32_0 = arith.constant 0 : i32
    %c0_i32_1 = arith.constant 0 : i32
    return %c0_i32, %c0_i32_0 : i32, i32
  }
  func.func @transform_4(%arg0: i32) -> (i32, i32) {
    %c0_i32 = arith.constant 0 : i32
    %c0_i32_0 = arith.constant 0 : i32
    %c0_i32_1 = arith.constant 0 : i32
    return %c0_i32, %c0_i32_0 : i32, i32
  }
  func.func @transform_5(%arg0: i32) -> (i32, i32) {
    %c0_i32 = arith.constant 0 : i32
    %c0_i32_0 = arith.constant 0 : i32
    %c0_i32_1 = arith.constant 0 : i32
    return %c0_i32, %c0_i32_0 : i32, i32
  }
  func.func @transform_6(%arg0: i32) -> (i32, i32) {
    %c0_i32 = arith.constant 0 : i32
    %c0_i32_0 = arith.constant 0 : i32
    %c0_i32_1 = arith.constant 0 : i32
    return %c0_i32, %c0_i32_0 : i32, i32
  }
  func.func @transform_7(%arg0: i32) -> (i32, i32, i32, i32) {
    %c0_i32 = arith.constant 0 : i32
    %c0_i32_0 = arith.constant 0 : i32
    %c0_i32_1 = arith.constant 0 : i32
    %c0_i32_2 = arith.constant 0 : i32
    %c0_i32_3 = arith.constant 0 : i32
    return %c0_i32, %c0_i32_0, %c0_i32_1, %c0_i32_2 : i32, i32, i32, i32
  }
}

module attributes {stable_mosaic.version = 11 : i64} {
  func.func @kernel(%arg0: i32, %arg1: memref<2x16x16xf32, #tpu.memory_space<vmem>>, %arg2: memref<3x3xf32, #tpu.memory_space<smem>>, %arg3: memref<1xf32, #tpu.memory_space<smem>>, %arg4: memref<2x14x14xf32, #tpu.memory_space<vmem>>) attributes {dimension_semantics = [#tpu.dimension_semantics<arbitrary>], iteration_bounds = array<i64: 1>, scalar_prefetch = 0 : i64, scratch_operands = 0 : i64, tpu.core_type = #tpu.core_type<tc>, window_params = [{pipeline_mode = #tpu.pipeline_mode<synchronous>, transform_indices = @transform_0, window_bounds = array<i64: 2, 16, 16>}, {transform_indices = @transform_1, window_bounds = array<i64: 3, 3>}, {transform_indices = @transform_2, window_bounds = array<i64: 1>}, {pipeline_mode = #tpu.pipeline_mode<synchronous>, transform_indices = @transform_3, window_bounds = array<i64: 2, 14, 14>}]} {
    %c0 = arith.constant 0 : index
    %c0_0 = arith.constant 0 : index
    %c0_1 = arith.constant 0 : index
    %0 = vector.load %arg1[%c0, %c0_0, %c0_1] : memref<2x16x16xf32, #tpu.memory_space<vmem>>, vector<2x16x16xf32>
    %cst = arith.constant 0.000000e+00 : f32
    %1 = vector.broadcast %cst : f32 to vector<2x14x14xf32>
    %c0_2 = arith.constant 0 : index
    %c0_3 = arith.constant 0 : index
    %2 = memref.load %arg2[%c0_2, %c0_3] : memref<3x3xf32, #tpu.memory_space<smem>>
    %3 = vector.extract_strided_slice %0 {offsets = [0, 0, 0], sizes = [2, 14, 14], strides = [1, 1, 1]} : vector<2x16x16xf32> to vector<2x14x14xf32>
    %4 = vector.broadcast %2 : f32 to vector<2x14x14xf32>
    %5 = arith.mulf %4, %3 : vector<2x14x14xf32>
    %6 = arith.addf %1, %5 : vector<2x14x14xf32>
    %c0_4 = arith.constant 0 : index
    %c1 = arith.constant 1 : index
    %7 = memref.load %arg2[%c0_4, %c1] : memref<3x3xf32, #tpu.memory_space<smem>>
    %8 = vector.extract_strided_slice %0 {offsets = [0, 0, 1], sizes = [2, 14, 14], strides = [1, 1, 1]} : vector<2x16x16xf32> to vector<2x14x14xf32>
    %9 = vector.broadcast %7 : f32 to vector<2x14x14xf32>
    %10 = arith.mulf %9, %8 : vector<2x14x14xf32>
    %11 = arith.addf %6, %10 : vector<2x14x14xf32>
    %c0_5 = arith.constant 0 : index
    %c2 = arith.constant 2 : index
    %12 = memref.load %arg2[%c0_5, %c2] : memref<3x3xf32, #tpu.memory_space<smem>>
    %13 = vector.extract_strided_slice %0 {offsets = [0, 0, 2], sizes = [2, 14, 14], strides = [1, 1, 1]} : vector<2x16x16xf32> to vector<2x14x14xf32>
    %14 = vector.broadcast %12 : f32 to vector<2x14x14xf32>
    %15 = arith.mulf %14, %13 : vector<2x14x14xf32>
    %16 = arith.addf %11, %15 : vector<2x14x14xf32>
    %c1_6 = arith.constant 1 : index
    %c0_7 = arith.constant 0 : index
    %17 = memref.load %arg2[%c1_6, %c0_7] : memref<3x3xf32, #tpu.memory_space<smem>>
    %18 = vector.extract_strided_slice %0 {offsets = [0, 1, 0], sizes = [2, 14, 14], strides = [1, 1, 1]} : vector<2x16x16xf32> to vector<2x14x14xf32>
    %19 = vector.broadcast %17 : f32 to vector<2x14x14xf32>
    %20 = arith.mulf %19, %18 : vector<2x14x14xf32>
    %21 = arith.addf %16, %20 : vector<2x14x14xf32>
    %c1_8 = arith.constant 1 : index
    %c1_9 = arith.constant 1 : index
    %22 = memref.load %arg2[%c1_8, %c1_9] : memref<3x3xf32, #tpu.memory_space<smem>>
    %23 = vector.extract_strided_slice %0 {offsets = [0, 1, 1], sizes = [2, 14, 14], strides = [1, 1, 1]} : vector<2x16x16xf32> to vector<2x14x14xf32>
    %24 = vector.broadcast %22 : f32 to vector<2x14x14xf32>
    %25 = arith.mulf %24, %23 : vector<2x14x14xf32>
    %26 = arith.addf %21, %25 : vector<2x14x14xf32>
    %c1_10 = arith.constant 1 : index
    %c2_11 = arith.constant 2 : index
    %27 = memref.load %arg2[%c1_10, %c2_11] : memref<3x3xf32, #tpu.memory_space<smem>>
    %28 = vector.extract_strided_slice %0 {offsets = [0, 1, 2], sizes = [2, 14, 14], strides = [1, 1, 1]} : vector<2x16x16xf32> to vector<2x14x14xf32>
    %29 = vector.broadcast %27 : f32 to vector<2x14x14xf32>
    %30 = arith.mulf %29, %28 : vector<2x14x14xf32>
    %31 = arith.addf %26, %30 : vector<2x14x14xf32>
    %c2_12 = arith.constant 2 : index
    %c0_13 = arith.constant 0 : index
    %32 = memref.load %arg2[%c2_12, %c0_13] : memref<3x3xf32, #tpu.memory_space<smem>>
    %33 = vector.extract_strided_slice %0 {offsets = [0, 2, 0], sizes = [2, 14, 14], strides = [1, 1, 1]} : vector<2x16x16xf32> to vector<2x14x14xf32>
    %34 = vector.broadcast %32 : f32 to vector<2x14x14xf32>
    %35 = arith.mulf %34, %33 : vector<2x14x14xf32>
    %36 = arith.addf %31, %35 : vector<2x14x14xf32>
    %c2_14 = arith.constant 2 : index
    %c1_15 = arith.constant 1 : index
    %37 = memref.load %arg2[%c2_14, %c1_15] : memref<3x3xf32, #tpu.memory_space<smem>>
    %38 = vector.extract_strided_slice %0 {offsets = [0, 2, 1], sizes = [2, 14, 14], strides = [1, 1, 1]} : vector<2x16x16xf32> to vector<2x14x14xf32>
    %39 = vector.broadcast %37 : f32 to vector<2x14x14xf32>
    %40 = arith.mulf %39, %38 : vector<2x14x14xf32>
    %41 = arith.addf %36, %40 : vector<2x14x14xf32>
    %c2_16 = arith.constant 2 : index
    %c2_17 = arith.constant 2 : index
    %42 = memref.load %arg2[%c2_16, %c2_17] : memref<3x3xf32, #tpu.memory_space<smem>>
    %43 = vector.extract_strided_slice %0 {offsets = [0, 2, 2], sizes = [2, 14, 14], strides = [1, 1, 1]} : vector<2x16x16xf32> to vector<2x14x14xf32>
    %44 = vector.broadcast %42 : f32 to vector<2x14x14xf32>
    %45 = arith.mulf %44, %43 : vector<2x14x14xf32>
    %46 = arith.addf %41, %45 : vector<2x14x14xf32>
    %c0_18 = arith.constant 0 : index
    %47 = memref.load %arg3[%c0_18] : memref<1xf32, #tpu.memory_space<smem>>
    %48 = vector.broadcast %47 : f32 to vector<2x14x14xf32>
    %49 = arith.addf %46, %48 : vector<2x14x14xf32>
    %50 = arith.negf %49 : vector<2x14x14xf32>
    %51 = math.exp %50 : vector<2x14x14xf32>
    %cst_19 = arith.constant 1.000000e+00 : f32
    %52 = vector.broadcast %cst_19 : f32 to vector<2x14x14xf32>
    %53 = arith.addf %52, %51 : vector<2x14x14xf32>
    %54 = arith.divf %52, %53 : vector<2x14x14xf32>
    %c0_20 = arith.constant 0 : index
    %c0_21 = arith.constant 0 : index
    %c0_22 = arith.constant 0 : index
    %55 = vector.load %arg4[%c0_20, %c0_21, %c0_22] : memref<2x14x14xf32, #tpu.memory_space<vmem>>, vector<2x14x14xf32>
    tpu.vector_store %arg4[%c0_20, %c0_21, %c0_22], %54 {strides = array<i32>} : memref<2x14x14xf32, #tpu.memory_space<vmem>>, vector<2x14x14xf32>,
    return
  }
  func.func @transform_0(%arg0: i32) -> (i32, i32, i32) {
    %c0_i32 = arith.constant 0 : i32
    %c0_i32_0 = arith.constant 0 : i32
    %c0_i32_1 = arith.constant 0 : i32
    %c0_i32_2 = arith.constant 0 : i32
    return %c0_i32, %c0_i32_0, %c0_i32_1 : i32, i32, i32
  }
  func.func @transform_1(%arg0: i32) -> (i32, i32) {
    %c0_i32 = arith.constant 0 : i32
    %c0_i32_0 = arith.constant 0 : i32
    %c0_i32_1 = arith.constant 0 : i32
    return %c0_i32, %c0_i32_0 : i32, i32
  }
  func.func @transform_2(%arg0: i32) -> i32 {
    %c0_i32 = arith.constant 0 : i32
    %c0_i32_0 = arith.constant 0 : i32
    return %c0_i32 : i32
  }
  func.func @transform_3(%arg0: i32) -> (i32, i32, i32) {
    %c0_i32 = arith.constant 0 : i32
    %c0_i32_0 = arith.constant 0 : i32
    %c0_i32_1 = arith.constant 0 : i32
    %c0_i32_2 = arith.constant 0 : i32
    return %c0_i32, %c0_i32_0, %c0_i32_1 : i32, i32, i32
  }
}

</mosaic_0001>

<llo_original>
// kernel: tile.11
$region0: #{tile.11}
  #allocation0 [shape = 's32[1]{0}', space=sflag, size = 0x4, scoped, tag = 'scoped memory for tile.11']
  %s0 = inlined_call_operand.vmem [shape: f32[4], index: 0, kind: input, shape index: {}]
  %s1 = inlined_call_operand.vmem [shape: f32[4,4], index: 1, kind: output, shape index: {}]
  // Predicated region
  $region2: #{tile.11} parent=0 // pred_check
    _
  $region3: #{tile.11} parent=0 // pred_check_branch
    %3 = sbr.rel (0) target = $region5
  $region4: #{tile.11} parent=0 // pred_region
    _
  $region5: #{tile.11} parent=0 // pred_fallthru
    _
  %v4 = vld [vmem:[%s0] ss:$0 sm:$0xff]
  %5 = vst [vmem:[%s1] sm:$0xf] %v4

// kernel: tile.12
$region0: #{tile.12}
  %s0 = inlined_call_operand.vmem [shape: f32[4,4], index: 0, kind: input, shape index: {}]
  %s1 = inlined_call_operand.vmem [shape: f32[1,16], index: 1, kind: output, shape index: {}]
  $region1: #{tile.12} parent=0
    #allocation0 [shape = 'u8[4096]{0}', space=vmem, size = 0x1000, scoped, tag = 'scoped mem for output reshape']
    #allocation1 [shape = 'u8[4096]{0}', space=vmem, size = 0x1000, scoped, tag = 'scoped mem for input reshape']
    %s3 = sshll.u32 1, 4
    %s4 = ssub.s32 %s3, 1
    %v5 = vld [vmem:[%s0] sm:%s4]
    %6 = vst [vmem:[#allocation1] sm:%s4] %v5
    %v7 = vld [vmem:[#allocation1] sm:$0x1]
    %vm8 = vcmask 31744
    %9 = vst.msk [vmem:[#allocation0] sm:$0x1] %vm8, %v7
    %s10 = scalar_lea.vmem [#allocation1], 3
    %v11 = vld [vmem:[%s10] sm:$0x1]
    %12 = vrot.lane.b32.xlu0 %v11, 12
    %v13 = vpop.permute.xlu0 %12
    %vm14 = vcmask 130144
    %15 = vst.msk [vmem:[#allocation0] sm:$0x1] %vm14, %v13
    %s16 = scalar_lea.vmem [#allocation1], 2
    %v17 = vld [vmem:[%s16] sm:$0x1]
    %18 = vrot.lane.b32.xlu0 %v17, 8
    %v19 = vpop.permute.xlu0 %18
    %vm20 = vcmask 97344
    %21 = vst.msk [vmem:[#allocation0] sm:$0x1] %vm20, %v19
    %s22 = scalar_lea.vmem [#allocation1], 1
    %v23 = vld [vmem:[%s22] sm:$0x1]
    %24 = vrot.lane.b32.xlu0 %v23, 4
    %v25 = vpop.permute.xlu0 %24
    %vm26 = vcmask 64544
    %27 = vst.msk [vmem:[#allocation0] sm:$0x1] %vm26, %v25
    %s29 = sshll.u32 1, 1
    %s30 = ssub.s32 %s29, 1
    %v32 = vld [vmem:[#allocation0] sm:%s30]
    %s33 = sshll.u32 1, 1
    %s34 = ssub.s32 %s33, 1
    %35 = vst [vmem:[%s1] sm:%s34] %v32

// kernel: tile.17
$region0: #{tile.17}
  %s0 = inlined_call_operand.vmem [shape: f32[4,4,4], index: 0, kind: input, shape index: {}]
  %s1 = inlined_call_operand.vmem [shape: f32[16,4], index: 1, kind: output, shape index: {}]
  $region1: #{tile.17} parent=0
    #allocation0 [shape = 'u8[4096]{0}', space=vmem, size = 0x1000, scoped, tag = 'scoped mem for output reshape']
    #allocation1 [shape = 'u8[16384]{0}', space=vmem, size = 0x4000, scoped, tag = 'scoped mem for input reshape']
    %s3 = sshll.u32 1, 4
    %s4 = ssub.s32 %s3, 1
    %s5 = smul.addr 4, 3
    %s6 = scalar_lea.vmem %s0, %s5
    %v7 = vld [vmem:[%s6] sm:%s4]
    %s8 = scalar_lea.vmem [#allocation1], 24
    %9 = vst [vmem:[%s8] sm:%s4] %v7
    %s10 = smul.addr 4, 2
    %s11 = scalar_lea.vmem %s0, %s10
    %v12 = vld [vmem:[%s11] sm:%s4]
    %s13 = scalar_lea.vmem [#allocation1], 16
    %14 = vst [vmem:[%s13] sm:%s4] %v12
    %s15 = scalar_lea.vmem %s0, 4
    %v16 = vld [vmem:[%s15] sm:%s4]
    %s17 = scalar_lea.vmem [#allocation1], 8
    %18 = vst [vmem:[%s17] sm:%s4] %v16
    %v19 = vld [vmem:[%s0] sm:%s4]
    %20 = vst [vmem:[#allocation1] sm:%s4] %v19
    %v21 = vld [vmem:[#allocation1] ss:$8 sm:$0xf]
    %vm22 = vcmask 31744
    %23 = vst.msk [vmem:[#allocation0] sm:$0xf] %vm22, %v21
    %s24 = scalar_lea.vmem [#allocation1], 3
    %v25 = vld [vmem:[%s24] ss:$8 sm:$0xf]
    %26 = vrot.lane.b32.xlu0 %v25, 12
    %v27 = vpop.permute.xlu0 %26
    %vm28 = vcmask 130144
    %29 = vst.msk [vmem:[#allocation0] sm:$0xf] %vm28, %v27
    %s30 = scalar_lea.vmem [#allocation1], 2
    %v31 = vld [vmem:[%s30] ss:$8 sm:$0xf]
    %32 = vrot.lane.b32.xlu0 %v31, 8
    %v33 = vpop.permute.xlu0 %32
    %vm34 = vcmask 97344
    %35 = vst.msk [vmem:[#allocation0] sm:$0xf] %vm34, %v33
    %s36 = scalar_lea.vmem [#allocation1], 1
    %v37 = vld [vmem:[%s36] ss:$8 sm:$0xf]
    %38 = vrot.lane.b32.xlu0 %v37, 4
    %v39 = vpop.permute.xlu0 %38
    %vm40 = vcmask 64544
    %41 = vst.msk [vmem:[#allocation0] sm:$0xf] %vm40, %v39
    %s43 = sshll.u32 1, 4
    %s44 = ssub.s32 %s43, 1
    %v46 = vld [vmem:[#allocation0] sm:%s44]
    %s47 = sshll.u32 1, 4
    %s48 = ssub.s32 %s47, 1
    %49 = vst [vmem:[%s1] sm:%s48] %v46

// kernel: _lambda_.5
$region0: #{_lambda_.5}
  #allocation0 [shape = 'u32[]', space=smem, size = 0x4, offset = 0x4, fixed_abs, tag = 'smem constant byte address 0x4 - core index']
  #allocation1 [shape = 'u32[144,128]{1,0:T(1,128)}', space=vmem, size = 0x12000, scoped, tag = 'internal scratch']
  #allocation2 [shape = 'f32[1]{0:T(128)S(6)}', space=smem, size = 0x200, scoped, tag = 'scoped memory for _lambda_.5']
  %s0 = inlined_call_operand.vmem [shape: f32[2,16,16], index: 0, kind: input, shape index: {}]
  %s1 = inlined_call_operand.vmem [shape: f32[3,3], index: 1, kind: input, shape index: {}]
  %s2 = inlined_call_operand.<no memory space> [shape: f32[1], index: 2, kind: input, shape index: {}]
  %s3 = inlined_call_operand.vmem [shape: f32[2,14,14], index: 3, kind: output, shape index: {}]
  %s4 = sld [smem:[#allocation0]]
  $region26: #{_lambda_.5} parent=0
    _
  %s6 = ssub.s32 1, %s4
  %s7 = scalar_select 0, %s6, %s4
  %8 = sst [smem:[#allocation2]] %s2
  $region1: #{_lambda_.5} parent=0
    #allocation3 [shape = 'u8[2048]{0}', space=smem, size = 0x800, scoped, tag = 'input window, operand 1, single buffered']
    #allocation4 [shape = 's32[1]{0}', space=sflag, size = 0x4, scoped, tag = 'scoped memory for _lambda_.5']
    %9 = vsyncpa [#allocation4], 0
    // Predicated region
    $region2: #{_lambda_.5} parent=1 // pred_check
      _
    $region3: #{_lambda_.5} parent=1 // pred_check_branch
      %11 = sbr.rel (0) target = $region5
    $region4: #{_lambda_.5} parent=1 // pred_region
      _
    $region5: #{_lambda_.5} parent=1 // pred_fallthru
      _
    // Predicated region
    $region6: #{_lambda_.5} parent=1 // pred_check
      _
    $region7: #{_lambda_.5} parent=1 // pred_check_branch
      %13 = sbr.rel (0) target = $region9
    $region8: #{_lambda_.5} parent=1 // pred_region
      %s15 = ssub.s32 64, 64
      %16 = vsyncadd [#allocation4], %s15
      %s18 = sshll.u32 %s1, 4
      %s19 = int_to_ptr.vmem [resolvable:$true] %s18
      %21 = dma.vmem_to_smem %s19, 64, [#allocation3], [#allocation4]
    $region9: #{_lambda_.5} parent=1 // pred_fallthru
      _
    // Predicated region
    $region10: #{_lambda_.5} parent=1 // pred_check
      _
    $region11: #{_lambda_.5} parent=1 // pred_check_branch
      %23 = sbr.rel (0) target = $region13
    $region12: #{_lambda_.5} parent=1 // pred_region
      _
    $region13: #{_lambda_.5} parent=1 // pred_fallthru
      _
    // Predicated region
    $region14: #{_lambda_.5} parent=1 // pred_check
      _
    $region15: #{_lambda_.5} parent=1 // pred_check_branch
      %25 = sbr.rel (0) target = $region17
    $region16: #{_lambda_.5} parent=1 // pred_region
      %26 = dma.done [#allocation4], 64
    $region17: #{_lambda_.5} parent=1 // pred_fallthru
      _
    %27 = sfence
    %v28 = vld [vmem:[%s0] sm:$0xff]
    %v29 = vld [vmem:[%s0 + $0x8] sm:$0xff]
    %v30 = vld [vmem:[%s0 + $0x10] sm:$0xff]
    %v31 = vld [vmem:[%s0 + $0x18] sm:$0xff]
    %s32 = sld [smem:[#allocation3]]
    %v33 = vstv %s32
    %v34 = vmul.f32 %v33, %v28
    %v35 = vmul.f32 %v33, %v29
    %v36 = vmul.f32 %v33, %v30
    %v37 = vmul.f32 %v33, %v31
    %v38 = vadd.f32 %v34, 0.0
    %v39 = vadd.f32 %v35, 0.0
    %v40 = vadd.f32 %v36, 0.0
    %v41 = vadd.f32 %v37, 0.0
    %s42 = sld [smem:[#allocation3 + $0x1]]
    %v43 = vstv %s42
    %v44 = vmul.f32 %v43, %v28
    %v45 = vmul.f32 %v43, %v29
    %v46 = vmul.f32 %v43, %v30
    %v47 = vmul.f32 %v43, %v31
    %52 = vrot.lane.b32.xlu0 %v44, 127
    %v53 = vpop.permute.xlu0 %52
    %54 = vrot.lane.b32.xlu0 %v45, 127
    %v55 = vpop.permute.xlu0 %54
    %56 = vrot.lane.b32.xlu0 %v46, 127
    %v57 = vpop.permute.xlu0 %56
    %58 = vrot.lane.b32.xlu0 %v47, 127
    %v59 = vpop.permute.xlu0 %58
    %v64 = vadd.f32 %v38, %v53
    %v65 = vadd.f32 %v39, %v55
    %v66 = vadd.f32 %v40, %v57
    %v67 = vadd.f32 %v41, %v59
    %s68 = sld [smem:[#allocation3 + $0x2]]
    %v69 = vstv %s68
    %v70 = vmul.f32 %v69, %v28
    %v71 = vmul.f32 %v69, %v29
    %v72 = vmul.f32 %v69, %v30
    %v73 = vmul.f32 %v69, %v31
    %78 = vrot.lane.b32.xlu0 %v70, 126
    %v79 = vpop.permute.xlu0 %78
    %80 = vrot.lane.b32.xlu0 %v71, 126
    %v81 = vpop.permute.xlu0 %80
    %82 = vrot.lane.b32.xlu0 %v72, 126
    %v83 = vpop.permute.xlu0 %82
    %84 = vrot.lane.b32.xlu0 %v73, 126
    %v85 = vpop.permute.xlu0 %84
    %v90 = vadd.f32 %v64, %v79
    %v91 = vadd.f32 %v65, %v81
    %v92 = vadd.f32 %v66, %v83
    %v93 = vadd.f32 %v67, %v85
    %s94 = sld [smem:[#allocation3 + $0x80]]
    %v95 = vstv %s94
    %v96 = vmul.f32 %v95, %v28
    %v97 = vmul.f32 %v95, %v29
    %v98 = vmul.f32 %v95, %v30
    %v99 = vmul.f32 %v95, %v31
    %vm104 = vcmask 1046528
    %v105 = vrot.slane %v96, 1
    %v106 = vrot.slane %v97, 1
    %v107 = vsel %vm104, %v105, %v106
    %v108 = vrot.slane %v98, 1
    %v109 = vrot.slane %v99, 1
    %v110 = vsel %vm104, %v108, %v109
    %v115 = vadd.f32 %v90, %v107
    %v116 = vadd.f32 %v91, %v106
    %v117 = vadd.f32 %v92, %v110
    %v118 = vadd.f32 %v93, %v109
    %s119 = sld [smem:[#allocation3 + $0x81]]
    %v120 = vstv %s119
    %v121 = vmul.f32 %v120, %v28
    %v122 = vmul.f32 %v120, %v29
    %v123 = vmul.f32 %v120, %v30
    %v124 = vmul.f32 %v120, %v31
    %v129 = vrot.slane %v121, 1
    %v130 = vrot.slane %v122, 1
    %v131 = vsel %vm104, %v129, %v130
    %v132 = vrot.slane %v123, 1
    %v133 = vrot.slane %v124, 1
    %v134 = vsel %vm104, %v132, %v133
    %135 = vrot.lane.b32.xlu0 %v131, 127
    %v136 = vpop.permute.xlu0 %135
    %137 = vrot.lane.b32.xlu0 %v130, 127
    %v138 = vpop.permute.xlu0 %137
    %139 = vrot.lane.b32.xlu0 %v134, 127
    %v140 = vpop.permute.xlu0 %139
    %141 = vrot.lane.b32.xlu0 %v133, 127
    %v142 = vpop.permute.xlu0 %141
    %v147 = vadd.f32 %v115, %v136
    %v148 = vadd.f32 %v116, %v138
    %v149 = vadd.f32 %v117, %v140
    %v150 = vadd.f32 %v118, %v142
    %s151 = sld [smem:[#allocation3 + $0x82]]
    %v152 = vstv %s151
    %v153 = vmul.f32 %v152, %v28
    %v154 = vmul.f32 %v152, %v29
    %v155 = vmul.f32 %v152, %v30
    %v156 = vmul.f32 %v152, %v31
    %v161 = vrot.slane %v153, 1
    %v162 = vrot.slane %v154, 1
    %v163 = vsel %vm104, %v161, %v162
    %v164 = vrot.slane %v155, 1
    %v165 = vrot.slane %v156, 1
    %v166 = vsel %vm104, %v164, %v165
    %167 = vrot.lane.b32.xlu0 %v163, 126
    %v168 = vpop.permute.xlu0 %167
    %169 = vrot.lane.b32.xlu0 %v162, 126
    %v170 = vpop.permute.xlu0 %169
    %171 = vrot.lane.b32.xlu0 %v166, 126
    %v172 = vpop.permute.xlu0 %171
    %173 = vrot.lane.b32.xlu0 %v165, 126
    %v174 = vpop.permute.xlu0 %173
    %v179 = vadd.f32 %v147, %v168
    %v180 = vadd.f32 %v148, %v170
    %v181 = vadd.f32 %v149, %v172
    %v182 = vadd.f32 %v150, %v174
    %s183 = sld [smem:[#allocation3 + $0x100]]
    %v184 = vstv %s183
    %v185 = vmul.f32 %v184, %v28
    %v186 = vmul.f32 %v184, %v29
    %v187 = vmul.f32 %v184, %v30
    %v188 = vmul.f32 %v184, %v31
    %vm193 = vcmask 1045504
    %v194 = vrot.slane %v185, 2
    %v195 = vrot.slane %v186, 2
    %v196 = vsel %vm193, %v194, %v195
    %v197 = vrot.slane %v187, 2
    %v198 = vrot.slane %v188, 2
    %v199 = vsel %vm193, %v197, %v198
    %v204 = vadd.f32 %v179, %v196
    %v205 = vadd.f32 %v180, %v195
    %v206 = vadd.f32 %v181, %v199
    %v207 = vadd.f32 %v182, %v198
    %s208 = sld [smem:[#allocation3 + $0x101]]
    %v209 = vstv %s208
    %v210 = vmul.f32 %v209, %v28
    %v211 = vmul.f32 %v209, %v29
    %v212 = vmul.f32 %v209, %v30
    %v213 = vmul.f32 %v209, %v31
    %v218 = vrot.slane %v210, 2
    %v219 = vrot.slane %v211, 2
    %v220 = vsel %vm193, %v218, %v219
    %v221 = vrot.slane %v212, 2
    %v222 = vrot.slane %v213, 2
    %v223 = vsel %vm193, %v221, %v222
    %224 = vrot.lane.b32.xlu0 %v220, 127
    %v225 = vpop.permute.xlu0 %224
    %226 = vrot.lane.b32.xlu0 %v219, 127
    %v227 = vpop.permute.xlu0 %226
    %228 = vrot.lane.b32.xlu0 %v223, 127
    %v229 = vpop.permute.xlu0 %228
    %230 = vrot.lane.b32.xlu0 %v222, 127
    %v231 = vpop.permute.xlu0 %230
    %v236 = vadd.f32 %v204, %v225
    %v237 = vadd.f32 %v205, %v227
    %v238 = vadd.f32 %v206, %v229
    %v239 = vadd.f32 %v207, %v231
    %s240 = sld [smem:[#allocation3 + $0x102]]
    %v241 = vstv %s240
    %v242 = vmul.f32 %v241, %v28
    %v243 = vmul.f32 %v241, %v29
    %v244 = vmul.f32 %v241, %v30
    %v245 = vmul.f32 %v241, %v31
    %v250 = vrot.slane %v242, 2
    %v251 = vrot.slane %v243, 2
    %v252 = vsel %vm193, %v250, %v251
    %v253 = vrot.slane %v244, 2
    %v254 = vrot.slane %v245, 2
    %v255 = vsel %vm193, %v253, %v254
    %256 = vrot.lane.b32.xlu0 %v252, 126
    %v257 = vpop.permute.xlu0 %256
    %258 = vrot.lane.b32.xlu0 %v251, 126
    %v259 = vpop.permute.xlu0 %258
    %260 = vrot.lane.b32.xlu0 %v255, 126
    %v261 = vpop.permute.xlu0 %260
    %262 = vrot.lane.b32.xlu0 %v254, 126
    %v263 = vpop.permute.xlu0 %262
    %v268 = vadd.f32 %v236, %v257
    %v269 = vadd.f32 %v237, %v259
    %v270 = vadd.f32 %v238, %v261
    %v271 = vadd.f32 %v239, %v263
    %s272 = sld [smem:[#allocation2]]
    %v273 = vstv %s272
    %v274 = vadd.f32 %v268, %v273
    %v275 = vadd.f32 %v269, %v273
    %v276 = vadd.f32 %v270, %v273
    %v277 = vadd.f32 %v271, %v273
    %v278 = vxor.u32 %v274, 2147483648
    %v279 = vxor.u32 %v275, 2147483648
    %v280 = vxor.u32 %v276, 2147483648
    %v281 = vxor.u32 %v277, 2147483648
    %v282 = vmul.f32 %v278, 1.442695
    %v283 = vpow.pop %v282
    %v284 = vmul.f32 %v279, 1.442695
    %v285 = vpow.pop %v284
    %v286 = vmul.f32 %v280, 1.442695
    %v287 = vpow.pop %v286
    %v288 = vmul.f32 %v281, 1.442695
    %v289 = vpow.pop %v288
    %v290 = vadd.f32 %v283, 1.0
    %v291 = vadd.f32 %v285, 1.0
    %v292 = vadd.f32 %v287, 1.0
    %v293 = vadd.f32 %v289, 1.0
    %v294 = vrcp.pop %v290
    %v295 = vmul.f32 1.0, %v294
    %v296 = vrcp.pop %v291
    %v297 = vmul.f32 1.0, %v296
    %v298 = vrcp.pop %v292
    %v299 = vmul.f32 1.0, %v298
    %v300 = vrcp.pop %v293
    %v301 = vmul.f32 1.0, %v300
    %vm302 = vcmask 113664
    %303 = vst.msk [vmem:[%s3] sm:$0xff] %vm302, %v295
    %vm304 = vcmask 111616
    %305 = vst.msk [vmem:[%s3 + $0x8] sm:$0x3f] %vm304, %v297
    %306 = vst.msk [vmem:[%s3 + $0x10] sm:$0xff] %vm302, %v299
    %307 = vst.msk [vmem:[%s3 + $0x18] sm:$0x3f] %vm304, %v301
    // Predicated region
    $region18: #{_lambda_.5} parent=1 // pred_check
      _
    $region19: #{_lambda_.5} parent=1 // pred_check_branch
      %309 = sbr.rel (0) target = $region21
    $region20: #{_lambda_.5} parent=1 // pred_region
      _
    $region21: #{_lambda_.5} parent=1 // pred_fallthru
      _
    // Predicated region
    $region22: #{_lambda_.5} parent=1 // pred_check
      _
    $region23: #{_lambda_.5} parent=1 // pred_check_branch
      %311 = sbr.rel (0) target = $region25
    $region24: #{_lambda_.5} parent=1 // pred_region
      _
    $region25: #{_lambda_.5} parent=1 // pred_fallthru
      _
    %312 = vsyncpa [#allocation4], 1

// kernel: _lambda_.4
$region0: #{_lambda_.4}
  #allocation0 [shape = 'u32[]', space=smem, size = 0x4, offset = 0x4, fixed_abs, tag = 'smem constant byte address 0x4 - core index']
  #allocation1 [shape = 'u32[144,128]{1,0:T(1,128)}', space=vmem, size = 0x12000, scoped, tag = 'internal scratch']
  %s0 = inlined_call_operand.vmem [shape: f32[2,10,40], index: 0, kind: input, shape index: {}]
  %s1 = inlined_call_operand.vmem [shape: bf16[8,36,8], index: 1, kind: input, shape index: {}]
  %s2 = inlined_call_operand.vmem [shape: f32[1,8], index: 2, kind: input, shape index: {}]
  %s3 = inlined_call_operand.vmem [shape: f32[1,8], index: 3, kind: input, shape index: {}, may-alias: {3,6}]
  %s4 = inlined_call_operand.vmem [shape: f32[1,8], index: 4, kind: input, shape index: {}]
  %s5 = inlined_call_operand.vmem [shape: f32[8,1], index: 5, kind: input, shape index: {}]
  %s6 = inlined_call_operand.vmem [shape: f32[1,8], index: 6, kind: input, shape index: {}, may-alias: {3,6}]
  %s7 = inlined_call_operand.vmem [shape: f32[4,2,8,8], index: 7, kind: output, shape index: {}]
  %s8 = sld [smem:[#allocation0]]
  $region38: #{_lambda_.4} parent=0
    _
  %s10 = ssub.s32 1, %s8
  %s11 = scalar_select 0, %s10, %s8
  // Predicated region
  $region2: #{_lambda_.4} parent=0 // pred_check
    _
  $region3: #{_lambda_.4} parent=0 // pred_check_branch
    %13 = sbr.rel (0) target = $region5
  $region4: #{_lambda_.4} parent=0 // pred_region
    _
  $region5: #{_lambda_.4} parent=0 // pred_fallthru
    _
  // Predicated region
  $region6: #{_lambda_.4} parent=0 // pred_check
    _
  $region7: #{_lambda_.4} parent=0 // pred_check_branch
    %15 = sbr.rel (0) target = $region9
  $region8: #{_lambda_.4} parent=0 // pred_region
    _
  $region9: #{_lambda_.4} parent=0 // pred_fallthru
    _
  // Predicated region
  $region10: #{_lambda_.4} parent=0 // pred_check
    _
  $region11: #{_lambda_.4} parent=0 // pred_check_branch
    %17 = sbr.rel (0) target = $region13
  $region12: #{_lambda_.4} parent=0 // pred_region
    _
  $region13: #{_lambda_.4} parent=0 // pred_fallthru
    _
  // Predicated region
  $region14: #{_lambda_.4} parent=0 // pred_check
    _
  $region15: #{_lambda_.4} parent=0 // pred_check_branch
    %19 = sbr.rel (0) target = $region17
  $region16: #{_lambda_.4} parent=0 // pred_region
    _
  $region17: #{_lambda_.4} parent=0 // pred_fallthru
    _
  // Predicated region
  $region18: #{_lambda_.4} parent=0 // pred_check
    _
  $region19: #{_lambda_.4} parent=0 // pred_check_branch
    %21 = sbr.rel (0) target = $region21
  $region20: #{_lambda_.4} parent=0 // pred_region
    _
  $region21: #{_lambda_.4} parent=0 // pred_fallthru
    _
  // Predicated region
  $region22: #{_lambda_.4} parent=0 // pred_check
    _
  $region23: #{_lambda_.4} parent=0 // pred_check_branch
    %23 = sbr.rel (0) target = $region25
  $region24: #{_lambda_.4} parent=0 // pred_region
    _
  $region25: #{_lambda_.4} parent=0 // pred_fallthru
    _
  // Predicated region
  $region26: #{_lambda_.4} parent=0 // pred_check
    _
  $region27: #{_lambda_.4} parent=0 // pred_check_branch
    %25 = sbr.rel (0) target = $region29
  $region28: #{_lambda_.4} parent=0 // pred_region
    _
  $region29: #{_lambda_.4} parent=0 // pred_fallthru
    _
  %v27 = vld [vmem:[%s0] sm:$0xff]
  %v28 = vld [vmem:[%s0 + $0x8] sm:$0x3]
  %v29 = vld [vmem:[%s0 + $0x10] sm:$0xff]
  %v30 = vld [vmem:[%s0 + $0x18] sm:$0x3]
  %v31 = vld [vmem:[%s5] sm:$0xff]
  %v32 = vld [vmem:[%s6] sm:$0x1]
  %v33 = vld [vmem:[%s2] sm:$0x1]
  %v34 = vld [vmem:[%s3] sm:$0x1]
  %v35 = vld [vmem:[%s4] sm:$0x1]
  %v36 = vpack.c.bf16 %v28, %v27
  %v37 = vpack.c.bf16 %v30, %v29
  %v38 = vld [vmem:[%s1] sm:$0xf]
  %v39 = vld [vmem:[%s1 + $0x4] sm:$0xf]
  %v40 = vld [vmem:[%s1 + $0x8] sm:$0xf]
  %v41 = vld [vmem:[%s1 + $0xc] sm:$0xf]
  %v42 = vld [vmem:[%s1 + $0x10] sm:$0x3]
  %v43 = vpack.c.bf16 %v27, %v27
  %v44 = vpack.c.bf16 %v29, %v29
  %s45 = scalar_lea.vmem %s1, 20
  %v46 = vld [vmem:[%s45] sm:$0xf]
  %v47 = vld [vmem:[%s45 + $0x4] sm:$0xf]
  %v48 = vld [vmem:[%s45 + $0x8] sm:$0xf]
  %v49 = vld [vmem:[%s45 + $0xc] sm:$0xf]
  %v50 = vld [vmem:[%s45 + $0x10] sm:$0x3]
  %v56 = vunpack.c.l.b16 %v46
  %v57 = vunpack.c.l.b16 %v47
  %v58 = vunpack.c.l.b16 %v48
  %v59 = vunpack.c.l.b16 %v49
  %v60 = vunpack.c.l.b16 %v50
  %v61 = vpack.c.b16 %v57, %v56
  %v62 = vpack.c.b16 %v59, %v58
  %v63 = vpack.c.b16 %v60, %v60
  %vm66 = vcmask 293888
  %v68 = vsel %vm66, %v43, 0
  %vm70 = vcmask 1041408
  %v72 = vsel %vm70, %v63, 0
  %74 = vmatprep.subr.bf16.mxu0 0
  %75 = vmatpush1.bf16.msra.mxu0 0
  %76 = vmatprep.subr.bf16.mxu0 0
  %77 = vmatpush1.bf16.msra.mxu0 0
  %78 = vmatprep.subr.bf16.mxu0 0
  %79 = vmatpush1.bf16.msra.mxu0 0
  %80 = vmatprep.subr.bf16.mxu0 0
  %81 = vmatpush1.bf16.msra.mxu0 0
  %82 = vmatprep.subr.bf16.mxu0 0
  %83 = vmatpush1.bf16.msra.mxu0 0
  %84 = vmatprep.subr.bf16.mxu0 0
  %85 = vmatpush1.bf16.msra.mxu0 %v72
  %86 = vmatprep.subr.bf16.mxu0 0
  %87 = vmatpush1.bf16.msra.mxu0 %v62
  %88 = vmatprep.subr.bf16.mxu0 0
  %89 = vmatpush1.bf16.msra.mxu0 %v61
  %90 = vmatprep.subr.bf16.mxu0 0
  %91 = vmatpush2.bf16.msra.mxu0 0
  %92 = vmatprep.subr.bf16.mxu0 0
  %93 = vmatpush2.bf16.msra.mxu0 0
  %94 = vmatprep.subr.bf16.mxu0 0
  %95 = vmatpush2.bf16.msra.mxu0 0
  %96 = vmatprep.subr.bf16.mxu0 0
  %97 = vmatpush2.bf16.msra.mxu0 0
  %98 = vmatprep.subr.bf16.mxu0 0
  %99 = vmatpush2.bf16.msra.mxu0 0
  %100 = vmatprep.subr.bf16.mxu0 0
  %101 = vmatpush2.bf16.msra.mxu0 0
  %102 = vmatprep.subr.bf16.mxu0 0
  %103 = vmatpush2.bf16.msra.mxu0 0
  %104 = vmatprep.subr.bf16.mxu0 0
  %105 = vmatpush2.bf16.msra.mxu0 0
  %106 = vmatprep.mubr.bf16.mxu0 0
  %107 = vmatmul.mubr.bf16.gmra.mxu0 %v68
  %v108 = vpop.f32.mrf.mxu0
  %v109 = vadd.f32 0.0, %v108
  %v110 = vpop.f32.mrf.mxu0
  %v111 = vpop.f32.mrf.mxu0
  %v112 = vpop.f32.mrf.mxu0
  %113 = vdwg.mxu0
  %v115 = vsel %vm66, %v44, 0
  %117 = vmatprep.subr.bf16.mxu0 0
  %118 = vmatpush1.bf16.msra.mxu0 0
  %119 = vmatprep.subr.bf16.mxu0 0
  %120 = vmatpush1.bf16.msra.mxu0 0
  %121 = vmatprep.subr.bf16.mxu0 0
  %122 = vmatpush1.bf16.msra.mxu0 0
  %123 = vmatprep.subr.bf16.mxu0 0
  %124 = vmatpush1.bf16.msra.mxu0 0
  %125 = vmatprep.subr.bf16.mxu0 0
  %126 = vmatpush1.bf16.msra.mxu0 0
  %127 = vmatprep.subr.bf16.mxu0 0
  %128 = vmatpush1.bf16.msra.mxu0 %v72
  %129 = vmatprep.subr.bf16.mxu0 0
  %130 = vmatpush1.bf16.msra.mxu0 %v62
  %131 = vmatprep.subr.bf16.mxu0 0
  %132 = vmatpush1.bf16.msra.mxu0 %v61
  %133 = vmatprep.subr.bf16.mxu0 0
  %134 = vmatpush2.bf16.msra.mxu0 0
  %135 = vmatprep.subr.bf16.mxu0 0
  %136 = vmatpush2.bf16.msra.mxu0 0
  %137 = vmatprep.subr.bf16.mxu0 0
  %138 = vmatpush2.bf16.msra.mxu0 0
  %139 = vmatprep.subr.bf16.mxu0 0
  %140 = vmatpush2.bf16.msra.mxu0 0
  %141 = vmatprep.subr.bf16.mxu0 0
  %142 = vmatpush2.bf16.msra.mxu0 0
  %143 = vmatprep.subr.bf16.mxu0 0
  %144 = vmatpush2.bf16.msra.mxu0 0
  %145 = vmatprep.subr.bf16.mxu0 0
  %146 = vmatpush2.bf16.msra.mxu0 0
  %147 = vmatprep.subr.bf16.mxu0 0
  %148 = vmatpush2.bf16.msra.mxu0 0
  %149 = vmatprep.mubr.bf16.mxu0 0
  %150 = vmatmul.mubr.bf16.gmra.mxu0 %v115
  %v151 = vpop.f32.mrf.mxu0
  %v152 = vadd.f32 0.0, %v151
  %v153 = vpop.f32.mrf.mxu0
  %v154 = vpop.f32.mrf.mxu0
  %v155 = vpop.f32.mrf.mxu0
  %156 = vdwg.mxu0
  %v158 = vshrl.u32 %v36, 16
  %v160 = vshll.u32 %v36, 16
  %v162 = vrot.slane %v160, 1
  %v163 = vor.u32 %v158, %v162
  %v169 = vunpack.c.l.b16 %v38
  %v170 = vunpack.c.l.b16 %v39
  %v171 = vunpack.c.l.b16 %v40
  %v172 = vunpack.c.l.b16 %v41
  %v173 = vunpack.c.l.b16 %v42
  %v174 = vpack.c.b16 %v170, %v169
  %v175 = vpack.c.b16 %v172, %v171
  %v176 = vpack.c.b16 %v173, %v173
  %v180 = vsel %vm66, %v163, 0
  %v183 = vsel %vm70, %v176, 0
  %185 = vmatprep.subr.bf16.mxu0 0
  %186 = vmatpush1.bf16.msra.mxu0 0
  %187 = vmatprep.subr.bf16.mxu0 0
  %188 = vmatpush1.bf16.msra.mxu0 0
  %189 = vmatprep.subr.bf16.mxu0 0
  %190 = vmatpush1.bf16.msra.mxu0 0
  %191 = vmatprep.subr.bf16.mxu0 0
  %192 = vmatpush1.bf16.msra.mxu0 0
  %193 = vmatprep.subr.bf16.mxu0 0
  %194 = vmatpush1.bf16.msra.mxu0 0
  %195 = vmatprep.subr.bf16.mxu0 0
  %196 = vmatpush1.bf16.msra.mxu0 %v183
  %197 = vmatprep.subr.bf16.mxu0 0
  %198 = vmatpush1.bf16.msra.mxu0 %v175
  %199 = vmatprep.subr.bf16.mxu0 0
  %200 = vmatpush1.bf16.msra.mxu0 %v174
  %201 = vmatprep.subr.bf16.mxu0 0
  %202 = vmatpush2.bf16.msra.mxu0 0
  %203 = vmatprep.subr.bf16.mxu0 0
  %204 = vmatpush2.bf16.msra.mxu0 0
  %205 = vmatprep.subr.bf16.mxu0 0
  %206 = vmatpush2.bf16.msra.mxu0 0
  %207 = vmatprep.subr.bf16.mxu0 0
  %208 = vmatpush2.bf16.msra.mxu0 0
  %209 = vmatprep.subr.bf16.mxu0 0
  %210 = vmatpush2.bf16.msra.mxu0 0
  %211 = vmatprep.subr.bf16.mxu0 0
  %212 = vmatpush2.bf16.msra.mxu0 0
  %213 = vmatprep.subr.bf16.mxu0 0
  %214 = vmatpush2.bf16.msra.mxu0 0
  %215 = vmatprep.subr.bf16.mxu0 0
  %216 = vmatpush2.bf16.msra.mxu0 0
  %217 = vmatprep.mubr.bf16.mxu0 0
  %218 = vmatmul.mubr.bf16.gmra.mxu0 %v180
  %v219 = vpop.f32.mrf.mxu0
  %v220 = vadd.f32 %v109, %v219
  %v221 = vpop.f32.mrf.mxu0
  %v222 = vpop.f32.mrf.mxu0
  %v223 = vpop.f32.mrf.mxu0
  %224 = vdwg.mxu0
  %v226 = vshrl.u32 %v37, 16
  %v228 = vshll.u32 %v37, 16
  %v230 = vrot.slane %v228, 1
  %v231 = vor.u32 %v226, %v230
  %v233 = vsel %vm66, %v231, 0
  %235 = vmatprep.subr.bf16.mxu0 0
  %236 = vmatpush1.bf16.msra.mxu0 0
  %237 = vmatprep.subr.bf16.mxu0 0
  %238 = vmatpush1.bf16.msra.mxu0 0
  %239 = vmatprep.subr.bf16.mxu0 0
  %240 = vmatpush1.bf16.msra.mxu0 0
  %241 = vmatprep.subr.bf16.mxu0 0
  %242 = vmatpush1.bf16.msra.mxu0 0
  %243 = vmatprep.subr.bf16.mxu0 0
  %244 = vmatpush1.bf16.msra.mxu0 0
  %245 = vmatprep.subr.bf16.mxu0 0
  %246 = vmatpush1.bf16.msra.mxu0 %v183
  %247 = vmatprep.subr.bf16.mxu0 0
  %248 = vmatpush1.bf16.msra.mxu0 %v175
  %249 = vmatprep.subr.bf16.mxu0 0
  %250 = vmatpush1.bf16.msra.mxu0 %v174
  %251 = vmatprep.subr.bf16.mxu0 0
  %252 = vmatpush2.bf16.msra.mxu0 0
  %253 = vmatprep.subr.bf16.mxu0 0
  %254 = vmatpush2.bf16.msra.mxu0 0
  %255 = vmatprep.subr.bf16.mxu0 0
  %256 = vmatpush2.bf16.msra.mxu0 0
  %257 = vmatprep.subr.bf16.mxu0 0
  %258 = vmatpush2.bf16.msra.mxu0 0
  %259 = vmatprep.subr.bf16.mxu0 0
  %260 = vmatpush2.bf16.msra.mxu0 0
  %261 = vmatprep.subr.bf16.mxu0 0
  %262 = vmatpush2.bf16.msra.mxu0 0
  %263 = vmatprep.subr.bf16.mxu0 0
  %264 = vmatpush2.bf16.msra.mxu0 0
  %265 = vmatprep.subr.bf16.mxu0 0
  %266 = vmatpush2.bf16.msra.mxu0 0
  %267 = vmatprep.mubr.bf16.mxu0 0
  %268 = vmatmul.mubr.bf16.gmra.mxu0 %v233
  %v269 = vpop.f32.mrf.mxu0
  %v270 = vadd.f32 %v152, %v269
  %v271 = vpop.f32.mrf.mxu0
  %v272 = vpop.f32.mrf.mxu0
  %v273 = vpop.f32.mrf.mxu0
  %274 = vdwg.mxu0
  %v276 = vlaneseq
  %v277 = vshrl.u32 %v276, 7
  %v278 = vsub.s32 0, %v277
  %v279 = vrot.slane %v33, %v278
  %v281 = vadd.f32 %v220, %v279
  %v282 = vadd.f32 %v270, %v279
  %vm283 = vcmask 64512
  %v284 = vsel %vm283, %v281, 0.0
  %v285 = vsel %vm283, %v282, 0.0
  %v286 = vadd.f32 %v284, %v285
  %v287 = vsel %vm283, %v286, 0.0
  %v288 = vrot.slane %v287, 4
  %v289 = vadd.f32 %v287, %v288
  %v290 = vrot.slane %v289, 2
  %v291 = vadd.f32 %v289, %v290
  %v292 = vrot.slane %v291, 1
  %v293 = vadd.f32 %v291, %v292
  %s294 = scalar_lea.vmem %s1, 40
  %v295 = vld [vmem:[%s294] sm:$0xf]
  %v296 = vld [vmem:[%s294 + $0x4] sm:$0xf]
  %v297 = vld [vmem:[%s294 + $0x8] sm:$0xf]
  %v298 = vld [vmem:[%s294 + $0xc] sm:$0xf]
  %v299 = vld [vmem:[%s294 + $0x10] sm:$0x3]
  %s300 = scalar_lea.vmem %s1, 60
  %v301 = vld [vmem:[%s300] sm:$0xf]
  %v302 = vld [vmem:[%s300 + $0x4] sm:$0xf]
  %v303 = vld [vmem:[%s300 + $0x8] sm:$0xf]
  %v304 = vld [vmem:[%s300 + $0xc] sm:$0xf]
  %v305 = vld [vmem:[%s300 + $0x10] sm:$0x3]
  %307 = vrot.lane.b32.xlu0 %v43, 124
  %v308 = vpop.permute.xlu0 %307
  %v314 = vunpack.c.l.b16 %v301
  %v315 = vunpack.c.l.b16 %v302
  %v316 = vunpack.c.l.b16 %v303
  %v317 = vunpack.c.l.b16 %v304
  %v318 = vunpack.c.l.b16 %v305
  %v319 = vpack.c.b16 %v315, %v314
  %v320 = vpack.c.b16 %v317, %v316
  %v321 = vpack.c.b16 %v318, %v318
  %v325 = vsel %vm66, %v308, 0
  %v328 = vsel %vm70, %v321, 0
  %330 = vmatprep.subr.bf16.mxu0 0
  %331 = vmatpush1.bf16.msra.mxu0 0
  %332 = vmatprep.subr.bf16.mxu0 0
  %333 = vmatpush1.bf16.msra.mxu0 0
  %334 = vmatprep.subr.bf16.mxu0 0
  %335 = vmatpush1.bf16.msra.mxu0 0
  %336 = vmatprep.subr.bf16.mxu0 0
  %337 = vmatpush1.bf16.msra.mxu0 0
  %338 = vmatprep.subr.bf16.mxu0 0
  %339 = vmatpush1.bf16.msra.mxu0 0
  %340 = vmatprep.subr.bf16.mxu0 0
  %341 = vmatpush1.bf16.msra.mxu0 %v328
  %342 = vmatprep.subr.bf16.mxu0 0
  %343 = vmatpush1.bf16.msra.mxu0 %v320
  %344 = vmatprep.subr.bf16.mxu0 0
  %345 = vmatpush1.bf16.msra.mxu0 %v319
  %346 = vmatprep.subr.bf16.mxu0 0
  %347 = vmatpush2.bf16.msra.mxu0 0
  %348 = vmatprep.subr.bf16.mxu0 0
  %349 = vmatpush2.bf16.msra.mxu0 0
  %350 = vmatprep.subr.bf16.mxu0 0
  %351 = vmatpush2.bf16.msra.mxu0 0
  %352 = vmatprep.subr.bf16.mxu0 0
  %353 = vmatpush2.bf16.msra.mxu0 0
  %354 = vmatprep.subr.bf16.mxu0 0
  %355 = vmatpush2.bf16.msra.mxu0 0
  %356 = vmatprep.subr.bf16.mxu0 0
  %357 = vmatpush2.bf16.msra.mxu0 0
  %358 = vmatprep.subr.bf16.mxu0 0
  %359 = vmatpush2.bf16.msra.mxu0 0
  %360 = vmatprep.subr.bf16.mxu0 0
  %361 = vmatpush2.bf16.msra.mxu0 0
  %362 = vmatprep.mubr.bf16.mxu0 0
  %363 = vmatmul.mubr.bf16.gmra.mxu0 %v325
  %v364 = vpop.f32.mrf.mxu0
  %v365 = vadd.f32 0.0, %v364
  %v366 = vpop.f32.mrf.mxu0
  %v367 = vpop.f32.mrf.mxu0
  %v368 = vpop.f32.mrf.mxu0
  %369 = vdwg.mxu0
  %371 = vrot.lane.b32.xlu0 %v44, 124
  %v372 = vpop.permute.xlu0 %371
  %v374 = vsel %vm66, %v372, 0
  %376 = vmatprep.subr.bf16.mxu0 0
  %377 = vmatpush1.bf16.msra.mxu0 0
  %378 = vmatprep.subr.bf16.mxu0 0
  %379 = vmatpush1.bf16.msra.mxu0 0
  %380 = vmatprep.subr.bf16.mxu0 0
  %381 = vmatpush1.bf16.msra.mxu0 0
  %382 = vmatprep.subr.bf16.mxu0 0
  %383 = vmatpush1.bf16.msra.mxu0 0
  %384 = vmatprep.subr.bf16.mxu0 0
  %385 = vmatpush1.bf16.msra.mxu0 0
  %386 = vmatprep.subr.bf16.mxu0 0
  %387 = vmatpush1.bf16.msra.mxu0 %v328
  %388 = vmatprep.subr.bf16.mxu0 0
  %389 = vmatpush1.bf16.msra.mxu0 %v320
  %390 = vmatprep.subr.bf16.mxu0 0
  %391 = vmatpush1.bf16.msra.mxu0 %v319
  %392 = vmatprep.subr.bf16.mxu0 0
  %393 = vmatpush2.bf16.msra.mxu0 0
  %394 = vmatprep.subr.bf16.mxu0 0
  %395 = vmatpush2.bf16.msra.mxu0 0
  %396 = vmatprep.subr.bf16.mxu0 0
  %397 = vmatpush2.bf16.msra.mxu0 0
  %398 = vmatprep.subr.bf16.mxu0 0
  %399 = vmatpush2.bf16.msra.mxu0 0
  %400 = vmatprep.subr.bf16.mxu0 0
  %401 = vmatpush2.bf16.msra.mxu0 0
  %402 = vmatprep.subr.bf16.mxu0 0
  %403 = vmatpush2.bf16.msra.mxu0 0
  %404 = vmatprep.subr.bf16.mxu0 0
  %405 = vmatpush2.bf16.msra.mxu0 0
  %406 = vmatprep.subr.bf16.mxu0 0
  %407 = vmatpush2.bf16.msra.mxu0 0
  %408 = vmatprep.mubr.bf16.mxu0 0
  %409 = vmatmul.mubr.bf16.gmra.mxu0 %v374
  %v410 = vpop.f32.mrf.mxu0
  %v411 = vadd.f32 0.0, %v410
  %v412 = vpop.f32.mrf.mxu0
  %v413 = vpop.f32.mrf.mxu0
  %v414 = vpop.f32.mrf.mxu0
  %415 = vdwg.mxu0
  %416 = vrot.lane.b32.xlu0 %v163, 124
  %v417 = vpop.permute.xlu0 %416
  %v423 = vunpack.c.l.b16 %v295
  %v424 = vunpack.c.l.b16 %v296
  %v425 = vunpack.c.l.b16 %v297
  %v426 = vunpack.c.l.b16 %v298
  %v427 = vunpack.c.l.b16 %v299
  %v428 = vpack.c.b16 %v424, %v423
  %v429 = vpack.c.b16 %v426, %v425
  %v430 = vpack.c.b16 %v427, %v427
  %v434 = vsel %vm66, %v417, 0
  %v437 = vsel %vm70, %v430, 0
  %439 = vmatprep.subr.bf16.mxu0 0
  %440 = vmatpush1.bf16.msra.mxu0 0
  %441 = vmatprep.subr.bf16.mxu0 0
  %442 = vmatpush1.bf16.msra.mxu0 0
  %443 = vmatprep.subr.bf16.mxu0 0
  %444 = vmatpush1.bf16.msra.mxu0 0
  %445 = vmatprep.subr.bf16.mxu0 0
  %446 = vmatpush1.bf16.msra.mxu0 0
  %447 = vmatprep.subr.bf16.mxu0 0
  %448 = vmatpush1.bf16.msra.mxu0 0
  %449 = vmatprep.subr.bf16.mxu0 0
  %450 = vmatpush1.bf16.msra.mxu0 %v437
  %451 = vmatprep.subr.bf16.mxu0 0
  %452 = vmatpush1.bf16.msra.mxu0 %v429
  %453 = vmatprep.subr.bf16.mxu0 0
  %454 = vmatpush1.bf16.msra.mxu0 %v428
  %455 = vmatprep.subr.bf16.mxu0 0
  %456 = vmatpush2.bf16.msra.mxu0 0
  %457 = vmatprep.subr.bf16.mxu0 0
  %458 = vmatpush2.bf16.msra.mxu0 0
  %459 = vmatprep.subr.bf16.mxu0 0
  %460 = vmatpush2.bf16.msra.mxu0 0
  %461 = vmatprep.subr.bf16.mxu0 0
  %462 = vmatpush2.bf16.msra.mxu0 0
  %463 = vmatprep.subr.bf16.mxu0 0
  %464 = vmatpush2.bf16.msra.mxu0 0
  %465 = vmatprep.subr.bf16.mxu0 0
  %466 = vmatpush2.bf16.msra.mxu0 0
  %467 = vmatprep.subr.bf16.mxu0 0
  %468 = vmatpush2.bf16.msra.mxu0 0
  %469 = vmatprep.subr.bf16.mxu0 0
  %470 = vmatpush2.bf16.msra.mxu0 0
  %471 = vmatprep.mubr.bf16.mxu0 0
  %472 = vmatmul.mubr.bf16.gmra.mxu0 %v434
  %v473 = vpop.f32.mrf.mxu0
  %v474 = vadd.f32 %v365, %v473
  %v475 = vpop.f32.mrf.mxu0
  %v476 = vpop.f32.mrf.mxu0
  %v477 = vpop.f32.mrf.mxu0
  %478 = vdwg.mxu0
  %479 = vrot.lane.b32.xlu0 %v231, 124
  %v480 = vpop.permute.xlu0 %479
  %v482 = vsel %vm66, %v480, 0
  %484 = vmatprep.subr.bf16.mxu0 0
  %485 = vmatpush1.bf16.msra.mxu0 0
  %486 = vmatprep.subr.bf16.mxu0 0
  %487 = vmatpush1.bf16.msra.mxu0 0
  %488 = vmatprep.subr.bf16.mxu0 0
  %489 = vmatpush1.bf16.msra.mxu0 0
  %490 = vmatprep.subr.bf16.mxu0 0
  %491 = vmatpush1.bf16.msra.mxu0 0
  %492 = vmatprep.subr.bf16.mxu0 0
  %493 = vmatpush1.bf16.msra.mxu0 0
  %494 = vmatprep.subr.bf16.mxu0 0
  %495 = vmatpush1.bf16.msra.mxu0 %v437
  %496 = vmatprep.subr.bf16.mxu0 0
  %497 = vmatpush1.bf16.msra.mxu0 %v429
  %498 = vmatprep.subr.bf16.mxu0 0
  %499 = vmatpush1.bf16.msra.mxu0 %v428
  %500 = vmatprep.subr.bf16.mxu0 0
  %501 = vmatpush2.bf16.msra.mxu0 0
  %502 = vmatprep.subr.bf16.mxu0 0
  %503 = vmatpush2.bf16.msra.mxu0 0
  %504 = vmatprep.subr.bf16.mxu0 0
  %505 = vmatpush2.bf16.msra.mxu0 0
  %506 = vmatprep.subr.bf16.mxu0 0
  %507 = vmatpush2.bf16.msra.mxu0 0
  %508 = vmatprep.subr.bf16.mxu0 0
  %509 = vmatpush2.bf16.msra.mxu0 0
  %510 = vmatprep.subr.bf16.mxu0 0
  %511 = vmatpush2.bf16.msra.mxu0 0
  %512 = vmatprep.subr.bf16.mxu0 0
  %513 = vmatpush2.bf16.msra.mxu0 0
  %514 = vmatprep.subr.bf16.mxu0 0
  %515 = vmatpush2.bf16.msra.mxu0 0
  %516 = vmatprep.mubr.bf16.mxu0 0
  %517 = vmatmul.mubr.bf16.gmra.mxu0 %v482
  %v518 = vpop.f32.mrf.mxu0
  %v519 = vadd.f32 %v411, %v518
  %v520 = vpop.f32.mrf.mxu0
  %v521 = vpop.f32.mrf.mxu0
  %v522 = vpop.f32.mrf.mxu0
  %523 = vdwg.mxu0
  %v524 = vadd.f32 %v474, %v279
  %v525 = vadd.f32 %v519, %v279
  %v526 = vsel %vm283, %v524, 0.0
  %v527 = vsel %vm283, %v525, 0.0
  %v528 = vadd.f32 %v526, %v527
  %v529 = vsel %vm283, %v528, 0.0
  %v530 = vrot.slane %v529, 4
  %v531 = vadd.f32 %v529, %v530
  %v532 = vrot.slane %v531, 2
  %v533 = vadd.f32 %v531, %v532
  %v534 = vrot.slane %v533, 1
  %v535 = vadd.f32 %v533, %v534
  %v537 = vsel %vm283, %v535, 0
  %539 = vmatprep.subr.mxu0 0.0
  %540 = vmatpush1.msra.mxu0 0.0
  %541 = vmatprep.subr.mxu0 0.0
  %542 = vmatpush1.msra.mxu0 0.0
  %543 = vmatprep.subr.mxu0 0.0
  %544 = vmatpush1.msra.mxu0 0.0
  %545 = vmatprep.subr.mxu0 0.0
  %546 = vmatpush1.msra.mxu0 0.0
  %547 = vmatprep.subr.mxu0 0.0
  %548 = vmatpush1.msra.mxu0 0.0
  %549 = vmatprep.subr.mxu0 0.0
  %550 = vmatpush1.msra.mxu0 0.0
  %551 = vmatprep.subr.mxu0 0.0
  %552 = vmatpush1.msra.mxu0 0.0
  %553 = vmatprep.subr.mxu0 0.0
  %554 = vmatpush1.msra.mxu0 0.0
  %555 = vmatprep.subr.mxu0 0.0
  %556 = vmatpush1.msra.mxu0 0.0
  %557 = vmatprep.subr.mxu0 0.0
  %558 = vmatpush1.msra.mxu0 0.0
  %559 = vmatprep.subr.mxu0 0.0
  %560 = vmatpush1.msra.mxu0 0.0
  %561 = vmatprep.subr.mxu0 0.0
  %562 = vmatpush1.msra.mxu0 0.0
  %563 = vmatprep.subr.mxu0 0.0
  %564 = vmatpush1.msra.mxu0 0.0
  %565 = vmatprep.subr.mxu0 0.0
  %566 = vmatpush1.msra.mxu0 0.0
  %567 = vmatprep.subr.mxu0 0.0
  %568 = vmatpush1.msra.mxu0 0.0
  %569 = vmatprep.subr.mxu0 0.0
  %570 = vmatpush1.msra.mxu0 %v31
  %571 = vmatprep.subr.mxu0 0.0
  %572 = vmatpush2.msra.mxu0 0.0
  %573 = vmatprep.subr.mxu0 0.0
  %574 = vmatpush2.msra.mxu0 0.0
  %575 = vmatprep.subr.mxu0 0.0
  %576 = vmatpush2.msra.mxu0 0.0
  %577 = vmatprep.subr.mxu0 0.0
  %578 = vmatpush2.msra.mxu0 0.0
  %579 = vmatprep.subr.mxu0 0.0
  %580 = vmatpush2.msra.mxu0 0.0
  %581 = vmatprep.subr.mxu0 0.0
  %582 = vmatpush2.msra.mxu0 0.0
  %583 = vmatprep.subr.mxu0 0.0
  %584 = vmatpush2.msra.mxu0 0.0
  %585 = vmatprep.subr.mxu0 0.0
  %586 = vmatpush2.msra.mxu0 0.0
  %587 = vmatprep.subr.mxu0 0.0
  %588 = vmatpush2.msra.mxu0 0.0
  %589 = vmatprep.subr.mxu0 0.0
  %590 = vmatpush2.msra.mxu0 0.0
  %591 = vmatprep.subr.mxu0 0.0
  %592 = vmatpush2.msra.mxu0 0.0
  %593 = vmatprep.subr.mxu0 0.0
  %594 = vmatpush2.msra.mxu0 0.0
  %595 = vmatprep.subr.mxu0 0.0
  %596 = vmatpush2.msra.mxu0 0.0
  %597 = vmatprep.subr.mxu0 0.0
  %598 = vmatpush2.msra.mxu0 0.0
  %599 = vmatprep.subr.mxu0 0.0
  %600 = vmatpush2.msra.mxu0 0.0
  %601 = vmatprep.subr.mxu0 0.0
  %602 = vmatpush2.msra.mxu0 0.0
  %603 = vmatprep.mubr.f32.mxu0 0.0
  %604 = vmatmul.mubr.f32.gmra.mxu0 %v537
  %v605 = vpop.f32.mrf.mxu0
  %v606 = vadd.f32 0.0, %v605
  %v607 = vpop.f32.mrf.mxu0
  %608 = vdwg.mxu0
  %v610 = vsel %vm283, %v293, 0
  %612 = vmatprep.subr.mxu0 0.0
  %613 = vmatpush1.msra.mxu0 0.0
  %614 = vmatprep.subr.mxu0 0.0
  %615 = vmatpush1.msra.mxu0 0.0
  %616 = vmatprep.subr.mxu0 0.0
  %617 = vmatpush1.msra.mxu0 0.0
  %618 = vmatprep.subr.mxu0 0.0
  %619 = vmatpush1.msra.mxu0 0.0
  %620 = vmatprep.subr.mxu0 0.0
  %621 = vmatpush1.msra.mxu0 0.0
  %622 = vmatprep.subr.mxu0 0.0
  %623 = vmatpush1.msra.mxu0 0.0
  %624 = vmatprep.subr.mxu0 0.0
  %625 = vmatpush1.msra.mxu0 0.0
  %626 = vmatprep.subr.mxu0 0.0
  %627 = vmatpush1.msra.mxu0 0.0
  %628 = vmatprep.subr.mxu0 0.0
  %629 = vmatpush1.msra.mxu0 0.0
  %630 = vmatprep.subr.mxu0 0.0
  %631 = vmatpush1.msra.mxu0 0.0
  %632 = vmatprep.subr.mxu0 0.0
  %633 = vmatpush1.msra.mxu0 0.0
  %634 = vmatprep.subr.mxu0 0.0
  %635 = vmatpush1.msra.mxu0 0.0
  %636 = vmatprep.subr.mxu0 0.0
  %637 = vmatpush1.msra.mxu0 0.0
  %638 = vmatprep.subr.mxu0 0.0
  %639 = vmatpush1.msra.mxu0 0.0
  %640 = vmatprep.subr.mxu0 0.0
  %641 = vmatpush1.msra.mxu0 0.0
  %642 = vmatprep.subr.mxu0 0.0
  %643 = vmatpush1.msra.mxu0 %v31
  %644 = vmatprep.subr.mxu0 0.0
  %645 = vmatpush2.msra.mxu0 0.0
  %646 = vmatprep.subr.mxu0 0.0
  %647 = vmatpush2.msra.mxu0 0.0
  %648 = vmatprep.subr.mxu0 0.0
  %649 = vmatpush2.msra.mxu0 0.0
  %650 = vmatprep.subr.mxu0 0.0
  %651 = vmatpush2.msra.mxu0 0.0
  %652 = vmatprep.subr.mxu0 0.0
  %653 = vmatpush2.msra.mxu0 0.0
  %654 = vmatprep.subr.mxu0 0.0
  %655 = vmatpush2.msra.mxu0 0.0
  %656 = vmatprep.subr.mxu0 0.0
  %657 = vmatpush2.msra.mxu0 0.0
  %658 = vmatprep.subr.mxu0 0.0
  %659 = vmatpush2.msra.mxu0 0.0
  %660 = vmatprep.subr.mxu0 0.0
  %661 = vmatpush2.msra.mxu0 0.0
  %662 = vmatprep.subr.mxu0 0.0
  %663 = vmatpush2.msra.mxu0 0.0
  %664 = vmatprep.subr.mxu0 0.0
  %665 = vmatpush2.msra.mxu0 0.0
  %666 = vmatprep.subr.mxu0 0.0
  %667 = vmatpush2.msra.mxu0 0.0
  %668 = vmatprep.subr.mxu0 0.0
  %669 = vmatpush2.msra.mxu0 0.0
  %670 = vmatprep.subr.mxu0 0.0
  %671 = vmatpush2.msra.mxu0 0.0
  %672 = vmatprep.subr.mxu0 0.0
  %673 = vmatpush2.msra.mxu0 0.0
  %674 = vmatprep.subr.mxu0 0.0
  %675 = vmatpush2.msra.mxu0 0.0
  %676 = vmatprep.mubr.f32.mxu0 0.0
  %677 = vmatmul.mubr.f32.gmra.mxu0 %v610
  %v678 = vpop.f32.mrf.mxu0
  %v679 = vadd.f32 %v606, %v678
  %v680 = vpop.f32.mrf.mxu0
  %681 = vdwg.mxu0
  %s682 = scalar_lea.vmem %s1, 80
  %v683 = vld [vmem:[%s682] sm:$0xf]
  %v684 = vld [vmem:[%s682 + $0x4] sm:$0xf]
  %v685 = vld [vmem:[%s682 + $0x8] sm:$0xf]
  %v686 = vld [vmem:[%s682 + $0xc] sm:$0xf]
  %v687 = vld [vmem:[%s682 + $0x10] sm:$0x3]
  %s688 = scalar_lea.vmem %s1, 100
  %v689 = vld [vmem:[%s688] sm:$0xf]
  %v690 = vld [vmem:[%s688 + $0x4] sm:$0xf]
  %v691 = vld [vmem:[%s688 + $0x8] sm:$0xf]
  %v692 = vld [vmem:[%s688 + $0xc] sm:$0xf]
  %v693 = vld [vmem:[%s688 + $0x10] sm:$0x3]
  %v699 = vunpack.c.l.b16 %v689
  %v700 = vunpack.c.l.b16 %v690
  %v701 = vunpack.c.l.b16 %v691
  %v702 = vunpack.c.l.b16 %v692
  %v703 = vunpack.c.l.b16 %v693
  %v704 = vpack.c.b16 %v700, %v699
  %v705 = vpack.c.b16 %v702, %v701
  %v706 = vpack.c.b16 %v703, %v703
  %v710 = vsel %vm70, %v706, 0
  %712 = vmatprep.subr.bf16.mxu0 0
  %713 = vmatpush1.bf16.msra.mxu0 0
  %714 = vmatprep.subr.bf16.mxu0 0
  %715 = vmatpush1.bf16.msra.mxu0 0
  %716 = vmatprep.subr.bf16.mxu0 0
  %717 = vmatpush1.bf16.msra.mxu0 0
  %718 = vmatprep.subr.bf16.mxu0 0
  %719 = vmatpush1.bf16.msra.mxu0 0
  %720 = vmatprep.subr.bf16.mxu0 0
  %721 = vmatpush1.bf16.msra.mxu0 0
  %722 = vmatprep.subr.bf16.mxu0 0
  %723 = vmatpush1.bf16.msra.mxu0 %v710
  %724 = vmatprep.subr.bf16.mxu0 0
  %725 = vmatpush1.bf16.msra.mxu0 %v705
  %726 = vmatprep.subr.bf16.mxu0 0
  %727 = vmatpush1.bf16.msra.mxu0 %v704
  %728 = vmatprep.subr.bf16.mxu0 0
  %729 = vmatpush2.bf16.msra.mxu0 0
  %730 = vmatprep.subr.bf16.mxu0 0
  %731 = vmatpush2.bf16.msra.mxu0 0
  %732 = vmatprep.subr.bf16.mxu0 0
  %733 = vmatpush2.bf16.msra.mxu0 0
  %734 = vmatprep.subr.bf16.mxu0 0
  %735 = vmatpush2.bf16.msra.mxu0 0
  %736 = vmatprep.subr.bf16.mxu0 0
  %737 = vmatpush2.bf16.msra.mxu0 0
  %738 = vmatprep.subr.bf16.mxu0 0
  %739 = vmatpush2.bf16.msra.mxu0 0
  %740 = vmatprep.subr.bf16.mxu0 0
  %741 = vmatpush2.bf16.msra.mxu0 0
  %742 = vmatprep.subr.bf16.mxu0 0
  %743 = vmatpush2.bf16.msra.mxu0 0
  %744 = vmatprep.mubr.bf16.mxu0 0
  %745 = vmatmul.mubr.bf16.gmra.mxu0 %v180
  %v746 = vpop.f32.mrf.mxu0
  %v747 = vadd.f32 0.0, %v746
  %v748 = vpop.f32.mrf.mxu0
  %v749 = vpop.f32.mrf.mxu0
  %v750 = vpop.f32.mrf.mxu0
  %751 = vdwg.mxu0
  %752 = vmatprep.subr.bf16.mxu0 0
  %753 = vmatpush1.bf16.msra.mxu0 0
  %754 = vmatprep.subr.bf16.mxu0 0
  %755 = vmatpush1.bf16.msra.mxu0 0
  %756 = vmatprep.subr.bf16.mxu0 0
  %757 = vmatpush1.bf16.msra.mxu0 0
  %758 = vmatprep.subr.bf16.mxu0 0
  %759 = vmatpush1.bf16.msra.mxu0 0
  %760 = vmatprep.subr.bf16.mxu0 0
  %761 = vmatpush1.bf16.msra.mxu0 0
  %762 = vmatprep.subr.bf16.mxu0 0
  %763 = vmatpush1.bf16.msra.mxu0 %v710
  %764 = vmatprep.subr.bf16.mxu0 0
  %765 = vmatpush1.bf16.msra.mxu0 %v705
  %766 = vmatprep.subr.bf16.mxu0 0
  %767 = vmatpush1.bf16.msra.mxu0 %v704
  %768 = vmatprep.subr.bf16.mxu0 0
  %769 = vmatpush2.bf16.msra.mxu0 0
  %770 = vmatprep.subr.bf16.mxu0 0
  %771 = vmatpush2.bf16.msra.mxu0 0
  %772 = vmatprep.subr.bf16.mxu0 0
  %773 = vmatpush2.bf16.msra.mxu0 0
  %774 = vmatprep.subr.bf16.mxu0 0
  %775 = vmatpush2.bf16.msra.mxu0 0
  %776 = vmatprep.subr.bf16.mxu0 0
  %777 = vmatpush2.bf16.msra.mxu0 0
  %778 = vmatprep.subr.bf16.mxu0 0
  %779 = vmatpush2.bf16.msra.mxu0 0
  %780 = vmatprep.subr.bf16.mxu0 0
  %781 = vmatpush2.bf16.msra.mxu0 0
  %782 = vmatprep.subr.bf16.mxu0 0
  %783 = vmatpush2.bf16.msra.mxu0 0
  %784 = vmatprep.mubr.bf16.mxu0 0
  %785 = vmatmul.mubr.bf16.gmra.mxu0 %v233
  %v786 = vpop.f32.mrf.mxu0
  %v787 = vadd.f32 0.0, %v786
  %v788 = vpop.f32.mrf.mxu0
  %v789 = vpop.f32.mrf.mxu0
  %v790 = vpop.f32.mrf.mxu0
  %791 = vdwg.mxu0
  %v793 = vrot.slane %v36, 1
  %v799 = vunpack.c.l.b16 %v683
  %v800 = vunpack.c.l.b16 %v684
  %v801 = vunpack.c.l.b16 %v685
  %v802 = vunpack.c.l.b16 %v686
  %v803 = vunpack.c.l.b16 %v687
  %v804 = vpack.c.b16 %v800, %v799
  %v805 = vpack.c.b16 %v802, %v801
  %v806 = vpack.c.b16 %v803, %v803
  %v810 = vsel %vm66, %v793, 0
  %v813 = vsel %vm70, %v806, 0
  %815 = vmatprep.subr.bf16.mxu0 0
  %816 = vmatpush1.bf16.msra.mxu0 0
  %817 = vmatprep.subr.bf16.mxu0 0
  %818 = vmatpush1.bf16.msra.mxu0 0
  %819 = vmatprep.subr.bf16.mxu0 0
  %820 = vmatpush1.bf16.msra.mxu0 0
  %821 = vmatprep.subr.bf16.mxu0 0
  %822 = vmatpush1.bf16.msra.mxu0 0
  %823 = vmatprep.subr.bf16.mxu0 0
  %824 = vmatpush1.bf16.msra.mxu0 0
  %825 = vmatprep.subr.bf16.mxu0 0
  %826 = vmatpush1.bf16.msra.mxu0 %v813
  %827 = vmatprep.subr.bf16.mxu0 0
  %828 = vmatpush1.bf16.msra.mxu0 %v805
  %829 = vmatprep.subr.bf16.mxu0 0
  %830 = vmatpush1.bf16.msra.mxu0 %v804
  %831 = vmatprep.subr.bf16.mxu0 0
  %832 = vmatpush2.bf16.msra.mxu0 0
  %833 = vmatprep.subr.bf16.mxu0 0
  %834 = vmatpush2.bf16.msra.mxu0 0
  %835 = vmatprep.subr.bf16.mxu0 0
  %836 = vmatpush2.bf16.msra.mxu0 0
  %837 = vmatprep.subr.bf16.mxu0 0
  %838 = vmatpush2.bf16.msra.mxu0 0
  %839 = vmatprep.subr.bf16.mxu0 0
  %840 = vmatpush2.bf16.msra.mxu0 0
  %841 = vmatprep.subr.bf16.mxu0 0
  %842 = vmatpush2.bf16.msra.mxu0 0
  %843 = vmatprep.subr.bf16.mxu0 0
  %844 = vmatpush2.bf16.msra.mxu0 0
  %845 = vmatprep.subr.bf16.mxu0 0
  %846 = vmatpush2.bf16.msra.mxu0 0
  %847 = vmatprep.mubr.bf16.mxu0 0
  %848 = vmatmul.mubr.bf16.gmra.mxu0 %v810
  %v849 = vpop.f32.mrf.mxu0
  %v850 = vadd.f32 %v747, %v849
  %v851 = vpop.f32.mrf.mxu0
  %v852 = vpop.f32.mrf.mxu0
  %v853 = vpop.f32.mrf.mxu0
  %854 = vdwg.mxu0
  %v856 = vrot.slane %v37, 1
  %v858 = vsel %vm66, %v856, 0
  %860 = vmatprep.subr.bf16.mxu0 0
  %861 = vmatpush1.bf16.msra.mxu0 0
  %862 = vmatprep.subr.bf16.mxu0 0
  %863 = vmatpush1.bf16.msra.mxu0 0
  %864 = vmatprep.subr.bf16.mxu0 0
  %865 = vmatpush1.bf16.msra.mxu0 0
  %866 = vmatprep.subr.bf16.mxu0 0
  %867 = vmatpush1.bf16.msra.mxu0 0
  %868 = vmatprep.subr.bf16.mxu0 0
  %869 = vmatpush1.bf16.msra.mxu0 0
  %870 = vmatprep.subr.bf16.mxu0 0
  %871 = vmatpush1.bf16.msra.mxu0 %v813
  %872 = vmatprep.subr.bf16.mxu0 0
  %873 = vmatpush1.bf16.msra.mxu0 %v805
  %874 = vmatprep.subr.bf16.mxu0 0
  %875 = vmatpush1.bf16.msra.mxu0 %v804
  %876 = vmatprep.subr.bf16.mxu0 0
  %877 = vmatpush2.bf16.msra.mxu0 0
  %878 = vmatprep.subr.bf16.mxu0 0
  %879 = vmatpush2.bf16.msra.mxu0 0
  %880 = vmatprep.subr.bf16.mxu0 0
  %881 = vmatpush2.bf16.msra.mxu0 0
  %882 = vmatprep.subr.bf16.mxu0 0
  %883 = vmatpush2.bf16.msra.mxu0 0
  %884 = vmatprep.subr.bf16.mxu0 0
  %885 = vmatpush2.bf16.msra.mxu0 0
  %886 = vmatprep.subr.bf16.mxu0 0
  %887 = vmatpush2.bf16.msra.mxu0 0
  %888 = vmatprep.subr.bf16.mxu0 0
  %889 = vmatpush2.bf16.msra.mxu0 0
  %890 = vmatprep.subr.bf16.mxu0 0
  %891 = vmatpush2.bf16.msra.mxu0 0
  %892 = vmatprep.mubr.bf16.mxu0 0
  %893 = vmatmul.mubr.bf16.gmra.mxu0 %v858
  %v894 = vpop.f32.mrf.mxu0
  %v895 = vadd.f32 %v787, %v894
  %v896 = vpop.f32.mrf.mxu0
  %v897 = vpop.f32.mrf.mxu0
  %v898 = vpop.f32.mrf.mxu0
  %899 = vdwg.mxu0
  %v900 = vadd.f32 %v850, %v279
  %v901 = vadd.f32 %v895, %v279
  %v902 = vsel %vm283, %v900, 0.0
  %v903 = vsel %vm283, %v901, 0.0
  %v904 = vadd.f32 %v902, %v903
  %v905 = vsel %vm283, %v904, 0.0
  %v906 = vrot.slane %v905, 4
  %v907 = vadd.f32 %v905, %v906
  %v908 = vrot.slane %v907, 2
  %v909 = vadd.f32 %v907, %v908
  %v910 = vrot.slane %v909, 1
  %v911 = vadd.f32 %v909, %v910
  %v913 = vsel %vm283, %v911, 0
  %915 = vmatprep.subr.mxu0 0.0
  %916 = vmatpush1.msra.mxu0 0.0
  %917 = vmatprep.subr.mxu0 0.0
  %918 = vmatpush1.msra.mxu0 0.0
  %919 = vmatprep.subr.mxu0 0.0
  %920 = vmatpush1.msra.mxu0 0.0
  %921 = vmatprep.subr.mxu0 0.0
  %922 = vmatpush1.msra.mxu0 0.0
  %923 = vmatprep.subr.mxu0 0.0
  %924 = vmatpush1.msra.mxu0 0.0
  %925 = vmatprep.subr.mxu0 0.0
  %926 = vmatpush1.msra.mxu0 0.0
  %927 = vmatprep.subr.mxu0 0.0
  %928 = vmatpush1.msra.mxu0 0.0
  %929 = vmatprep.subr.mxu0 0.0
  %930 = vmatpush1.msra.mxu0 0.0
  %931 = vmatprep.subr.mxu0 0.0
  %932 = vmatpush1.msra.mxu0 0.0
  %933 = vmatprep.subr.mxu0 0.0
  %934 = vmatpush1.msra.mxu0 0.0
  %935 = vmatprep.subr.mxu0 0.0
  %936 = vmatpush1.msra.mxu0 0.0
  %937 = vmatprep.subr.mxu0 0.0
  %938 = vmatpush1.msra.mxu0 0.0
  %939 = vmatprep.subr.mxu0 0.0
  %940 = vmatpush1.msra.mxu0 0.0
  %941 = vmatprep.subr.mxu0 0.0
  %942 = vmatpush1.msra.mxu0 0.0
  %943 = vmatprep.subr.mxu0 0.0
  %944 = vmatpush1.msra.mxu0 0.0
  %945 = vmatprep.subr.mxu0 0.0
  %946 = vmatpush1.msra.mxu0 %v31
  %947 = vmatprep.subr.mxu0 0.0
  %948 = vmatpush2.msra.mxu0 0.0
  %949 = vmatprep.subr.mxu0 0.0
  %950 = vmatpush2.msra.mxu0 0.0
  %951 = vmatprep.subr.mxu0 0.0
  %952 = vmatpush2.msra.mxu0 0.0
  %953 = vmatprep.subr.mxu0 0.0
  %954 = vmatpush2.msra.mxu0 0.0
  %955 = vmatprep.subr.mxu0 0.0
  %956 = vmatpush2.msra.mxu0 0.0
  %957 = vmatprep.subr.mxu0 0.0
  %958 = vmatpush2.msra.mxu0 0.0
  %959 = vmatprep.subr.mxu0 0.0
  %960 = vmatpush2.msra.mxu0 0.0
  %961 = vmatprep.subr.mxu0 0.0
  %962 = vmatpush2.msra.mxu0 0.0
  %963 = vmatprep.subr.mxu0 0.0
  %964 = vmatpush2.msra.mxu0 0.0
  %965 = vmatprep.subr.mxu0 0.0
  %966 = vmatpush2.msra.mxu0 0.0
  %967 = vmatprep.subr.mxu0 0.0
  %968 = vmatpush2.msra.mxu0 0.0
  %969 = vmatprep.subr.mxu0 0.0
  %970 = vmatpush2.msra.mxu0 0.0
  %971 = vmatprep.subr.mxu0 0.0
  %972 = vmatpush2.msra.mxu0 0.0
  %973 = vmatprep.subr.mxu0 0.0
  %974 = vmatpush2.msra.mxu0 0.0
  %975 = vmatprep.subr.mxu0 0.0
  %976 = vmatpush2.msra.mxu0 0.0
  %977 = vmatprep.subr.mxu0 0.0
  %978 = vmatpush2.msra.mxu0 0.0
  %979 = vmatprep.mubr.f32.mxu0 0.0
  %980 = vmatmul.mubr.f32.gmra.mxu0 %v913
  %v981 = vpop.f32.mrf.mxu0
  %v982 = vadd.f32 0.0, %v981
  %v983 = vpop.f32.mrf.mxu0
  %984 = vdwg.mxu0
  %v985 = vadd.f32 %v679, %v982
  %s986 = scalar_lea.vmem %s1, 120
  %v987 = vld [vmem:[%s986] sm:$0xf]
  %v988 = vld [vmem:[%s986 + $0x4] sm:$0xf]
  %v989 = vld [vmem:[%s986 + $0x8] sm:$0xf]
  %v990 = vld [vmem:[%s986 + $0xc] sm:$0xf]
  %v991 = vld [vmem:[%s986 + $0x10] sm:$0x3]
  %s992 = scalar_lea.vmem %s1, 140
  %v993 = vld [vmem:[%s992] sm:$0xf]
  %v994 = vld [vmem:[%s992 + $0x4] sm:$0xf]
  %v995 = vld [vmem:[%s992 + $0x8] sm:$0xf]
  %v996 = vld [vmem:[%s992 + $0xc] sm:$0xf]
  %v997 = vld [vmem:[%s992 + $0x10] sm:$0x3]
  %v1003 = vunpack.c.l.b16 %v993
  %v1004 = vunpack.c.l.b16 %v994
  %v1005 = vunpack.c.l.b16 %v995
  %v1006 = vunpack.c.l.b16 %v996
  %v1007 = vunpack.c.l.b16 %v997
  %v1008 = vpack.c.b16 %v1004, %v1003
  %v1009 = vpack.c.b16 %v1006, %v1005
  %v1010 = vpack.c.b16 %v1007, %v1007
  %v1014 = vsel %vm70, %v1010, 0
  %1016 = vmatprep.subr.bf16.mxu0 0
  %1017 = vmatpush1.bf16.msra.mxu0 0
  %1018 = vmatprep.subr.bf16.mxu0 0
  %1019 = vmatpush1.bf16.msra.mxu0 0
  %1020 = vmatprep.subr.bf16.mxu0 0
  %1021 = vmatpush1.bf16.msra.mxu0 0
  %1022 = vmatprep.subr.bf16.mxu0 0
  %1023 = vmatpush1.bf16.msra.mxu0 0
  %1024 = vmatprep.subr.bf16.mxu0 0
  %1025 = vmatpush1.bf16.msra.mxu0 0
  %1026 = vmatprep.subr.bf16.mxu0 0
  %1027 = vmatpush1.bf16.msra.mxu0 %v1014
  %1028 = vmatprep.subr.bf16.mxu0 0
  %1029 = vmatpush1.bf16.msra.mxu0 %v1009
  %1030 = vmatprep.subr.bf16.mxu0 0
  %1031 = vmatpush1.bf16.msra.mxu0 %v1008
  %1032 = vmatprep.subr.bf16.mxu0 0
  %1033 = vmatpush2.bf16.msra.mxu0 0
  %1034 = vmatprep.subr.bf16.mxu0 0
  %1035 = vmatpush2.bf16.msra.mxu0 0
  %1036 = vmatprep.subr.bf16.mxu0 0
  %1037 = vmatpush2.bf16.msra.mxu0 0
  %1038 = vmatprep.subr.bf16.mxu0 0
  %1039 = vmatpush2.bf16.msra.mxu0 0
  %1040 = vmatprep.subr.bf16.mxu0 0
  %1041 = vmatpush2.bf16.msra.mxu0 0
  %1042 = vmatprep.subr.bf16.mxu0 0
  %1043 = vmatpush2.bf16.msra.mxu0 0
  %1044 = vmatprep.subr.bf16.mxu0 0
  %1045 = vmatpush2.bf16.msra.mxu0 0
  %1046 = vmatprep.subr.bf16.mxu0 0
  %1047 = vmatpush2.bf16.msra.mxu0 0
  %1048 = vmatprep.mubr.bf16.mxu0 0
  %1049 = vmatmul.mubr.bf16.gmra.mxu0 %v434
  %v1050 = vpop.f32.mrf.mxu0
  %v1051 = vadd.f32 0.0, %v1050
  %v1052 = vpop.f32.mrf.mxu0
  %v1053 = vpop.f32.mrf.mxu0
  %v1054 = vpop.f32.mrf.mxu0
  %1055 = vdwg.mxu0
  %1056 = vmatprep.subr.bf16.mxu0 0
  %1057 = vmatpush1.bf16.msra.mxu0 0
  %1058 = vmatprep.subr.bf16.mxu0 0
  %1059 = vmatpush1.bf16.msra.mxu0 0
  %1060 = vmatprep.subr.bf16.mxu0 0
  %1061 = vmatpush1.bf16.msra.mxu0 0
  %1062 = vmatprep.subr.bf16.mxu0 0
  %1063 = vmatpush1.bf16.msra.mxu0 0
  %1064 = vmatprep.subr.bf16.mxu0 0
  %1065 = vmatpush1.bf16.msra.mxu0 0
  %1066 = vmatprep.subr.bf16.mxu0 0
  %1067 = vmatpush1.bf16.msra.mxu0 %v1014
  %1068 = vmatprep.subr.bf16.mxu0 0
  %1069 = vmatpush1.bf16.msra.mxu0 %v1009
  %1070 = vmatprep.subr.bf16.mxu0 0
  %1071 = vmatpush1.bf16.msra.mxu0 %v1008
  %1072 = vmatprep.subr.bf16.mxu0 0
  %1073 = vmatpush2.bf16.msra.mxu0 0
  %1074 = vmatprep.subr.bf16.mxu0 0
  %1075 = vmatpush2.bf16.msra.mxu0 0
  %1076 = vmatprep.subr.bf16.mxu0 0
  %1077 = vmatpush2.bf16.msra.mxu0 0
  %1078 = vmatprep.subr.bf16.mxu0 0
  %1079 = vmatpush2.bf16.msra.mxu0 0
  %1080 = vmatprep.subr.bf16.mxu0 0
  %1081 = vmatpush2.bf16.msra.mxu0 0
  %1082 = vmatprep.subr.bf16.mxu0 0
  %1083 = vmatpush2.bf16.msra.mxu0 0
  %1084 = vmatprep.subr.bf16.mxu0 0
  %1085 = vmatpush2.bf16.msra.mxu0 0
  %1086 = vmatprep.subr.bf16.mxu0 0
  %1087 = vmatpush2.bf16.msra.mxu0 0
  %1088 = vmatprep.mubr.bf16.mxu0 0
  %1089 = vmatmul.mubr.bf16.gmra.mxu0 %v482
  %v1090 = vpop.f32.mrf.mxu0
  %v1091 = vadd.f32 0.0, %v1090
  %v1092 = vpop.f32.mrf.mxu0
  %v1093 = vpop.f32.mrf.mxu0
  %v1094 = vpop.f32.mrf.mxu0
  %1095 = vdwg.mxu0
  %1096 = vrot.lane.b32.xlu0 %v793, 124
  %v1097 = vpop.permute.xlu0 %1096
  %v1103 = vunpack.c.l.b16 %v987
  %v1104 = vunpack.c.l.b16 %v988
  %v1105 = vunpack.c.l.b16 %v989
  %v1106 = vunpack.c.l.b16 %v990
  %v1107 = vunpack.c.l.b16 %v991
  %v1108 = vpack.c.b16 %v1104, %v1103
  %v1109 = vpack.c.b16 %v1106, %v1105
  %v1110 = vpack.c.b16 %v1107, %v1107
  %v1114 = vsel %vm66, %v1097, 0
  %v1117 = vsel %vm70, %v1110, 0
  %1119 = vmatprep.subr.bf16.mxu0 0
  %1120 = vmatpush1.bf16.msra.mxu0 0
  %1121 = vmatprep.subr.bf16.mxu0 0
  %1122 = vmatpush1.bf16.msra.mxu0 0
  %1123 = vmatprep.subr.bf16.mxu0 0
  %1124 = vmatpush1.bf16.msra.mxu0 0
  %1125 = vmatprep.subr.bf16.mxu0 0
  %1126 = vmatpush1.bf16.msra.mxu0 0
  %1127 = vmatprep.subr.bf16.mxu0 0
  %1128 = vmatpush1.bf16.msra.mxu0 0
  %1129 = vmatprep.subr.bf16.mxu0 0
  %1130 = vmatpush1.bf16.msra.mxu0 %v1117
  %1131 = vmatprep.subr.bf16.mxu0 0
  %1132 = vmatpush1.bf16.msra.mxu0 %v1109
  %1133 = vmatprep.subr.bf16.mxu0 0
  %1134 = vmatpush1.bf16.msra.mxu0 %v1108
  %1135 = vmatprep.subr.bf16.mxu0 0
  %1136 = vmatpush2.bf16.msra.mxu0 0
  %1137 = vmatprep.subr.bf16.mxu0 0
  %1138 = vmatpush2.bf16.msra.mxu0 0
  %1139 = vmatprep.subr.bf16.mxu0 0
  %1140 = vmatpush2.bf16.msra.mxu0 0
  %1141 = vmatprep.subr.bf16.mxu0 0
  %1142 = vmatpush2.bf16.msra.mxu0 0
  %1143 = vmatprep.subr.bf16.mxu0 0
  %1144 = vmatpush2.bf16.msra.mxu0 0
  %1145 = vmatprep.subr.bf16.mxu0 0
  %1146 = vmatpush2.bf16.msra.mxu0 0
  %1147 = vmatprep.subr.bf16.mxu0 0
  %1148 = vmatpush2.bf16.msra.mxu0 0
  %1149 = vmatprep.subr.bf16.mxu0 0
  %1150 = vmatpush2.bf16.msra.mxu0 0
  %1151 = vmatprep.mubr.bf16.mxu0 0
  %1152 = vmatmul.mubr.bf16.gmra.mxu0 %v1114
  %v1153 = vpop.f32.mrf.mxu0
  %v1154 = vadd.f32 %v1051, %v1153
  %v1155 = vpop.f32.mrf.mxu0
  %v1156 = vpop.f32.mrf.mxu0
  %v1157 = vpop.f32.mrf.mxu0
  %1158 = vdwg.mxu0
  %1159 = vrot.lane.b32.xlu0 %v856, 124
  %v1160 = vpop.permute.xlu0 %1159
  %v1162 = vsel %vm66, %v1160, 0
  %1164 = vmatprep.subr.bf16.mxu0 0
  %1165 = vmatpush1.bf16.msra.mxu0 0
  %1166 = vmatprep.subr.bf16.mxu0 0
  %1167 = vmatpush1.bf16.msra.mxu0 0
  %1168 = vmatprep.subr.bf16.mxu0 0
  %1169 = vmatpush1.bf16.msra.mxu0 0
  %1170 = vmatprep.subr.bf16.mxu0 0
  %1171 = vmatpush1.bf16.msra.mxu0 0
  %1172 = vmatprep.subr.bf16.mxu0 0
  %1173 = vmatpush1.bf16.msra.mxu0 0
  %1174 = vmatprep.subr.bf16.mxu0 0
  %1175 = vmatpush1.bf16.msra.mxu0 %v1117
  %1176 = vmatprep.subr.bf16.mxu0 0
  %1177 = vmatpush1.bf16.msra.mxu0 %v1109
  %1178 = vmatprep.subr.bf16.mxu0 0
  %1179 = vmatpush1.bf16.msra.mxu0 %v1108
  %1180 = vmatprep.subr.bf16.mxu0 0
  %1181 = vmatpush2.bf16.msra.mxu0 0
  %1182 = vmatprep.subr.bf16.mxu0 0
  %1183 = vmatpush2.bf16.msra.mxu0 0
  %1184 = vmatprep.subr.bf16.mxu0 0
  %1185 = vmatpush2.bf16.msra.mxu0 0
  %1186 = vmatprep.subr.bf16.mxu0 0
  %1187 = vmatpush2.bf16.msra.mxu0 0
  %1188 = vmatprep.subr.bf16.mxu0 0
  %1189 = vmatpush2.bf16.msra.mxu0 0
  %1190 = vmatprep.subr.bf16.mxu0 0
  %1191 = vmatpush2.bf16.msra.mxu0 0
  %1192 = vmatprep.subr.bf16.mxu0 0
  %1193 = vmatpush2.bf16.msra.mxu0 0
  %1194 = vmatprep.subr.bf16.mxu0 0
  %1195 = vmatpush2.bf16.msra.mxu0 0
  %1196 = vmatprep.mubr.bf16.mxu0 0
  %1197 = vmatmul.mubr.bf16.gmra.mxu0 %v1162
  %v1198 = vpop.f32.mrf.mxu0
  %v1199 = vadd.f32 %v1091, %v1198
  %v1200 = vpop.f32.mrf.mxu0
  %v1201 = vpop.f32.mrf.mxu0
  %v1202 = vpop.f32.mrf.mxu0
  %1203 = vdwg.mxu0
  %v1204 = vadd.f32 %v1154, %v279
  %v1205 = vadd.f32 %v1199, %v279
  %v1206 = vsel %vm283, %v1204, 0.0
  %v1207 = vsel %vm283, %v1205, 0.0
  %v1208 = vadd.f32 %v1206, %v1207
  %v1209 = vsel %vm283, %v1208, 0.0
  %v1210 = vrot.slane %v1209, 4
  %v1211 = vadd.f32 %v1209, %v1210
  %v1212 = vrot.slane %v1211, 2
  %v1213 = vadd.f32 %v1211, %v1212
  %v1214 = vrot.slane %v1213, 1
  %v1215 = vadd.f32 %v1213, %v1214
  %v1217 = vsel %vm283, %v1215, 0
  %1219 = vmatprep.subr.mxu0 0.0
  %1220 = vmatpush1.msra.mxu0 0.0
  %1221 = vmatprep.subr.mxu0 0.0
  %1222 = vmatpush1.msra.mxu0 0.0
  %1223 = vmatprep.subr.mxu0 0.0
  %1224 = vmatpush1.msra.mxu0 0.0
  %1225 = vmatprep.subr.mxu0 0.0
  %1226 = vmatpush1.msra.mxu0 0.0
  %1227 = vmatprep.subr.mxu0 0.0
  %1228 = vmatpush1.msra.mxu0 0.0
  %1229 = vmatprep.subr.mxu0 0.0
  %1230 = vmatpush1.msra.mxu0 0.0
  %1231 = vmatprep.subr.mxu0 0.0
  %1232 = vmatpush1.msra.mxu0 0.0
  %1233 = vmatprep.subr.mxu0 0.0
  %1234 = vmatpush1.msra.mxu0 0.0
  %1235 = vmatprep.subr.mxu0 0.0
  %1236 = vmatpush1.msra.mxu0 0.0
  %1237 = vmatprep.subr.mxu0 0.0
  %1238 = vmatpush1.msra.mxu0 0.0
  %1239 = vmatprep.subr.mxu0 0.0
  %1240 = vmatpush1.msra.mxu0 0.0
  %1241 = vmatprep.subr.mxu0 0.0
  %1242 = vmatpush1.msra.mxu0 0.0
  %1243 = vmatprep.subr.mxu0 0.0
  %1244 = vmatpush1.msra.mxu0 0.0
  %1245 = vmatprep.subr.mxu0 0.0
  %1246 = vmatpush1.msra.mxu0 0.0
  %1247 = vmatprep.subr.mxu0 0.0
  %1248 = vmatpush1.msra.mxu0 0.0
  %1249 = vmatprep.subr.mxu0 0.0
  %1250 = vmatpush1.msra.mxu0 %v31
  %1251 = vmatprep.subr.mxu0 0.0
  %1252 = vmatpush2.msra.mxu0 0.0
  %1253 = vmatprep.subr.mxu0 0.0
  %1254 = vmatpush2.msra.mxu0 0.0
  %1255 = vmatprep.subr.mxu0 0.0
  %1256 = vmatpush2.msra.mxu0 0.0
  %1257 = vmatprep.subr.mxu0 0.0
  %1258 = vmatpush2.msra.mxu0 0.0
  %1259 = vmatprep.subr.mxu0 0.0
  %1260 = vmatpush2.msra.mxu0 0.0
  %1261 = vmatprep.subr.mxu0 0.0
  %1262 = vmatpush2.msra.mxu0 0.0
  %1263 = vmatprep.subr.mxu0 0.0
  %1264 = vmatpush2.msra.mxu0 0.0
  %1265 = vmatprep.subr.mxu0 0.0
  %1266 = vmatpush2.msra.mxu0 0.0
  %1267 = vmatprep.subr.mxu0 0.0
  %1268 = vmatpush2.msra.mxu0 0.0
  %1269 = vmatprep.subr.mxu0 0.0
  %1270 = vmatpush2.msra.mxu0 0.0
  %1271 = vmatprep.subr.mxu0 0.0
  %1272 = vmatpush2.msra.mxu0 0.0
  %1273 = vmatprep.subr.mxu0 0.0
  %1274 = vmatpush2.msra.mxu0 0.0
  %1275 = vmatprep.subr.mxu0 0.0
  %1276 = vmatpush2.msra.mxu0 0.0
  %1277 = vmatprep.subr.mxu0 0.0
  %1278 = vmatpush2.msra.mxu0 0.0
  %1279 = vmatprep.subr.mxu0 0.0
  %1280 = vmatpush2.msra.mxu0 0.0
  %1281 = vmatprep.subr.mxu0 0.0
  %1282 = vmatpush2.msra.mxu0 0.0
  %1283 = vmatprep.mubr.f32.mxu0 0.0
  %1284 = vmatmul.mubr.f32.gmra.mxu0 %v1217
  %v1285 = vpop.f32.mrf.mxu0
  %v1286 = vadd.f32 0.0, %v1285
  %v1287 = vpop.f32.mrf.mxu0
  %1288 = vdwg.mxu0
  %v1289 = vadd.f32 %v985, %v1286
  %v1290 = vmul.f32 %v1289, 0.001953125
  %vm1291 = vcmask 7168
  %v1293 = vsel %vm1291, %v1290, 0
  %vm1295 = vcmask 1040384
  %v1297 = vsel %vm1295, %v32, 0
  %1299 = vmatprep.subr.mxu0 0.0
  %1300 = vmatpush1.msra.mxu0 0.0
  %1301 = vmatprep.subr.mxu0 0.0
  %1302 = vmatpush1.msra.mxu0 0.0
  %1303 = vmatprep.subr.mxu0 0.0
  %1304 = vmatpush1.msra.mxu0 0.0
  %1305 = vmatprep.subr.mxu0 0.0
  %1306 = vmatpush1.msra.mxu0 0.0
  %1307 = vmatprep.subr.mxu0 0.0
  %1308 = vmatpush1.msra.mxu0 0.0
  %1309 = vmatprep.subr.mxu0 0.0
  %1310 = vmatpush1.msra.mxu0 0.0
  %1311 = vmatprep.subr.mxu0 0.0
  %1312 = vmatpush1.msra.mxu0 0.0
  %1313 = vmatprep.subr.mxu0 0.0
  %1314 = vmatpush1.msra.mxu0 0.0
  %1315 = vmatprep.subr.mxu0 0.0
  %1316 = vmatpush1.msra.mxu0 0.0
  %1317 = vmatprep.subr.mxu0 0.0
  %1318 = vmatpush1.msra.mxu0 0.0
  %1319 = vmatprep.subr.mxu0 0.0
  %1320 = vmatpush1.msra.mxu0 0.0
  %1321 = vmatprep.subr.mxu0 0.0
  %1322 = vmatpush1.msra.mxu0 0.0
  %1323 = vmatprep.subr.mxu0 0.0
  %1324 = vmatpush1.msra.mxu0 0.0
  %1325 = vmatprep.subr.mxu0 0.0
  %1326 = vmatpush1.msra.mxu0 0.0
  %1327 = vmatprep.subr.mxu0 0.0
  %1328 = vmatpush1.msra.mxu0 0.0
  %1329 = vmatprep.subr.mxu0 0.0
  %1330 = vmatpush1.msra.mxu0 %v1297
  %1331 = vmatprep.subr.mxu0 0.0
  %1332 = vmatpush2.msra.mxu0 0.0
  %1333 = vmatprep.subr.mxu0 0.0
  %1334 = vmatpush2.msra.mxu0 0.0
  %1335 = vmatprep.subr.mxu0 0.0
  %1336 = vmatpush2.msra.mxu0 0.0
  %1337 = vmatprep.subr.mxu0 0.0
  %1338 = vmatpush2.msra.mxu0 0.0
  %1339 = vmatprep.subr.mxu0 0.0
  %1340 = vmatpush2.msra.mxu0 0.0
  %1341 = vmatprep.subr.mxu0 0.0
  %1342 = vmatpush2.msra.mxu0 0.0
  %1343 = vmatprep.subr.mxu0 0.0
  %1344 = vmatpush2.msra.mxu0 0.0
  %1345 = vmatprep.subr.mxu0 0.0
  %1346 = vmatpush2.msra.mxu0 0.0
  %1347 = vmatprep.subr.mxu0 0.0
  %1348 = vmatpush2.msra.mxu0 0.0
  %1349 = vmatprep.subr.mxu0 0.0
  %1350 = vmatpush2.msra.mxu0 0.0
  %1351 = vmatprep.subr.mxu0 0.0
  %1352 = vmatpush2.msra.mxu0 0.0
  %1353 = vmatprep.subr.mxu0 0.0
  %1354 = vmatpush2.msra.mxu0 0.0
  %1355 = vmatprep.subr.mxu0 0.0
  %1356 = vmatpush2.msra.mxu0 0.0
  %1357 = vmatprep.subr.mxu0 0.0
  %1358 = vmatpush2.msra.mxu0 0.0
  %1359 = vmatprep.subr.mxu0 0.0
  %1360 = vmatpush2.msra.mxu0 0.0
  %1361 = vmatprep.subr.mxu0 0.0
  %1362 = vmatpush2.msra.mxu0 0.0
  %1363 = vmatprep.mubr.f32.mxu0 0.0
  %1364 = vmatmul.mubr.f32.gmra.mxu0 %v1293
  %v1365 = vpop.f32.mrf.mxu0
  %v1366 = vadd.f32 0.0, %v1365
  %v1367 = vpop.f32.mrf.mxu0
  %1368 = vdwg.mxu0
  %v1369 = vlaneseq
  %v1370 = vshrl.u32 %v1369, 7
  %v1371 = vsub.s32 0, %v1370
  %v1372 = vrot.slane %v1366, %v1371
  %v1373 = vsub.f32 %v281, %v1372
  %v1374 = vsub.f32 %v282, %v1372
  %v1375 = vmul.f32 %v1373, %v1373
  %v1376 = vmul.f32 %v1374, %v1374
  %v1377 = vsel %vm283, %v1375, 0.0
  %v1378 = vsel %vm283, %v1376, 0.0
  %v1379 = vadd.f32 %v1377, %v1378
  %v1380 = vsel %vm283, %v1379, 0.0
  %v1381 = vrot.slane %v1380, 4
  %v1382 = vadd.f32 %v1380, %v1381
  %v1383 = vrot.slane %v1382, 2
  %v1384 = vadd.f32 %v1382, %v1383
  %v1385 = vrot.slane %v1384, 1
  %v1386 = vadd.f32 %v1384, %v1385
  %v1387 = vsub.f32 %v524, %v1372
  %v1388 = vsub.f32 %v525, %v1372
  %v1389 = vmul.f32 %v1387, %v1387
  %v1390 = vmul.f32 %v1388, %v1388
  %v1391 = vsel %vm283, %v1389, 0.0
  %v1392 = vsel %vm283, %v1390, 0.0
  %v1393 = vadd.f32 %v1391, %v1392
  %v1394 = vsel %vm283, %v1393, 0.0
  %v1395 = vrot.slane %v1394, 4
  %v1396 = vadd.f32 %v1394, %v1395
  %v1397 = vrot.slane %v1396, 2
  %v1398 = vadd.f32 %v1396, %v1397
  %v1399 = vrot.slane %v1398, 1
  %v1400 = vadd.f32 %v1398, %v1399
  %v1402 = vsel %vm283, %v1400, 0
  %1404 = vmatprep.subr.mxu0 0.0
  %1405 = vmatpush1.msra.mxu0 0.0
  %1406 = vmatprep.subr.mxu0 0.0
  %1407 = vmatpush1.msra.mxu0 0.0
  %1408 = vmatprep.subr.mxu0 0.0
  %1409 = vmatpush1.msra.mxu0 0.0
  %1410 = vmatprep.subr.mxu0 0.0
  %1411 = vmatpush1.msra.mxu0 0.0
  %1412 = vmatprep.subr.mxu0 0.0
  %1413 = vmatpush1.msra.mxu0 0.0
  %1414 = vmatprep.subr.mxu0 0.0
  %1415 = vmatpush1.msra.mxu0 0.0
  %1416 = vmatprep.subr.mxu0 0.0
  %1417 = vmatpush1.msra.mxu0 0.0
  %1418 = vmatprep.subr.mxu0 0.0
  %1419 = vmatpush1.msra.mxu0 0.0
  %1420 = vmatprep.subr.mxu0 0.0
  %1421 = vmatpush1.msra.mxu0 0.0
  %1422 = vmatprep.subr.mxu0 0.0
  %1423 = vmatpush1.msra.mxu0 0.0
  %1424 = vmatprep.subr.mxu0 0.0
  %1425 = vmatpush1.msra.mxu0 0.0
  %1426 = vmatprep.subr.mxu0 0.0
  %1427 = vmatpush1.msra.mxu0 0.0
  %1428 = vmatprep.subr.mxu0 0.0
  %1429 = vmatpush1.msra.mxu0 0.0
  %1430 = vmatprep.subr.mxu0 0.0
  %1431 = vmatpush1.msra.mxu0 0.0
  %1432 = vmatprep.subr.mxu0 0.0
  %1433 = vmatpush1.msra.mxu0 0.0
  %1434 = vmatprep.subr.mxu0 0.0
  %1435 = vmatpush1.msra.mxu0 %v31
  %1436 = vmatprep.subr.mxu0 0.0
  %1437 = vmatpush2.msra.mxu0 0.0
  %1438 = vmatprep.subr.mxu0 0.0
  %1439 = vmatpush2.msra.mxu0 0.0
  %1440 = vmatprep.subr.mxu0 0.0
  %1441 = vmatpush2.msra.mxu0 0.0
  %1442 = vmatprep.subr.mxu0 0.0
  %1443 = vmatpush2.msra.mxu0 0.0
  %1444 = vmatprep.subr.mxu0 0.0
  %1445 = vmatpush2.msra.mxu0 0.0
  %1446 = vmatprep.subr.mxu0 0.0
  %1447 = vmatpush2.msra.mxu0 0.0
  %1448 = vmatprep.subr.mxu0 0.0
  %1449 = vmatpush2.msra.mxu0 0.0
  %1450 = vmatprep.subr.mxu0 0.0
  %1451 = vmatpush2.msra.mxu0 0.0
  %1452 = vmatprep.subr.mxu0 0.0
  %1453 = vmatpush2.msra.mxu0 0.0
  %1454 = vmatprep.subr.mxu0 0.0
  %1455 = vmatpush2.msra.mxu0 0.0
  %1456 = vmatprep.subr.mxu0 0.0
  %1457 = vmatpush2.msra.mxu0 0.0
  %1458 = vmatprep.subr.mxu0 0.0
  %1459 = vmatpush2.msra.mxu0 0.0
  %1460 = vmatprep.subr.mxu0 0.0
  %1461 = vmatpush2.msra.mxu0 0.0
  %1462 = vmatprep.subr.mxu0 0.0
  %1463 = vmatpush2.msra.mxu0 0.0
  %1464 = vmatprep.subr.mxu0 0.0
  %1465 = vmatpush2.msra.mxu0 0.0
  %1466 = vmatprep.subr.mxu0 0.0
  %1467 = vmatpush2.msra.mxu0 0.0
  %1468 = vmatprep.mubr.f32.mxu0 0.0
  %1469 = vmatmul.mubr.f32.gmra.mxu0 %v1402
  %v1470 = vpop.f32.mrf.mxu0
  %v1471 = vadd.f32 0.0, %v1470
  %v1472 = vpop.f32.mrf.mxu0
  %1473 = vdwg.mxu0
  %v1475 = vsel %vm283, %v1386, 0
  %1477 = vmatprep.subr.mxu0 0.0
  %1478 = vmatpush1.msra.mxu0 0.0
  %1479 = vmatprep.subr.mxu0 0.0
  %1480 = vmatpush1.msra.mxu0 0.0
  %1481 = vmatprep.subr.mxu0 0.0
  %1482 = vmatpush1.msra.mxu0 0.0
  %1483 = vmatprep.subr.mxu0 0.0
  %1484 = vmatpush1.msra.mxu0 0.0
  %1485 = vmatprep.subr.mxu0 0.0
  %1486 = vmatpush1.msra.mxu0 0.0
  %1487 = vmatprep.subr.mxu0 0.0
  %1488 = vmatpush1.msra.mxu0 0.0
  %1489 = vmatprep.subr.mxu0 0.0
  %1490 = vmatpush1.msra.mxu0 0.0
  %1491 = vmatprep.subr.mxu0 0.0
  %1492 = vmatpush1.msra.mxu0 0.0
  %1493 = vmatprep.subr.mxu0 0.0
  %1494 = vmatpush1.msra.mxu0 0.0
  %1495 = vmatprep.subr.mxu0 0.0
  %1496 = vmatpush1.msra.mxu0 0.0
  %1497 = vmatprep.subr.mxu0 0.0
  %1498 = vmatpush1.msra.mxu0 0.0
  %1499 = vmatprep.subr.mxu0 0.0
  %1500 = vmatpush1.msra.mxu0 0.0
  %1501 = vmatprep.subr.mxu0 0.0
  %1502 = vmatpush1.msra.mxu0 0.0
  %1503 = vmatprep.subr.mxu0 0.0
  %1504 = vmatpush1.msra.mxu0 0.0
  %1505 = vmatprep.subr.mxu0 0.0
  %1506 = vmatpush1.msra.mxu0 0.0
  %1507 = vmatprep.subr.mxu0 0.0
  %1508 = vmatpush1.msra.mxu0 %v31
  %1509 = vmatprep.subr.mxu0 0.0
  %1510 = vmatpush2.msra.mxu0 0.0
  %1511 = vmatprep.subr.mxu0 0.0
  %1512 = vmatpush2.msra.mxu0 0.0
  %1513 = vmatprep.subr.mxu0 0.0
  %1514 = vmatpush2.msra.mxu0 0.0
  %1515 = vmatprep.subr.mxu0 0.0
  %1516 = vmatpush2.msra.mxu0 0.0
  %1517 = vmatprep.subr.mxu0 0.0
  %1518 = vmatpush2.msra.mxu0 0.0
  %1519 = vmatprep.subr.mxu0 0.0
  %1520 = vmatpush2.msra.mxu0 0.0
  %1521 = vmatprep.subr.mxu0 0.0
  %1522 = vmatpush2.msra.mxu0 0.0
  %1523 = vmatprep.subr.mxu0 0.0
  %1524 = vmatpush2.msra.mxu0 0.0
  %1525 = vmatprep.subr.mxu0 0.0
  %1526 = vmatpush2.msra.mxu0 0.0
  %1527 = vmatprep.subr.mxu0 0.0
  %1528 = vmatpush2.msra.mxu0 0.0
  %1529 = vmatprep.subr.mxu0 0.0
  %1530 = vmatpush2.msra.mxu0 0.0
  %1531 = vmatprep.subr.mxu0 0.0
  %1532 = vmatpush2.msra.mxu0 0.0
  %1533 = vmatprep.subr.mxu0 0.0
  %1534 = vmatpush2.msra.mxu0 0.0
  %1535 = vmatprep.subr.mxu0 0.0
  %1536 = vmatpush2.msra.mxu0 0.0
  %1537 = vmatprep.subr.mxu0 0.0
  %1538 = vmatpush2.msra.mxu0 0.0
  %1539 = vmatprep.subr.mxu0 0.0
  %1540 = vmatpush2.msra.mxu0 0.0
  %1541 = vmatprep.mubr.f32.mxu0 0.0
  %1542 = vmatmul.mubr.f32.gmra.mxu0 %v1475
  %v1543 = vpop.f32.mrf.mxu0
  %v1544 = vadd.f32 %v1471, %v1543
  %v1545 = vpop.f32.mrf.mxu0
  %1546 = vdwg.mxu0
  %v1547 = vsub.f32 %v900, %v1372
  %v1548 = vsub.f32 %v901, %v1372
  %v1549 = vmul.f32 %v1547, %v1547
  %v1550 = vmul.f32 %v1548, %v1548
  %v1551 = vsel %vm283, %v1549, 0.0
  %v1552 = vsel %vm283, %v1550, 0.0
  %v1553 = vadd.f32 %v1551, %v1552
  %v1554 = vsel %vm283, %v1553, 0.0
  %v1555 = vrot.slane %v1554, 4
  %v1556 = vadd.f32 %v1554, %v1555
  %v1557 = vrot.slane %v1556, 2
  %v1558 = vadd.f32 %v1556, %v1557
  %v1559 = vrot.slane %v1558, 1
  %v1560 = vadd.f32 %v1558, %v1559
  %v1562 = vsel %vm283, %v1560, 0
  %1564 = vmatprep.subr.mxu0 0.0
  %1565 = vmatpush1.msra.mxu0 0.0
  %1566 = vmatprep.subr.mxu0 0.0
  %1567 = vmatpush1.msra.mxu0 0.0
  %1568 = vmatprep.subr.mxu0 0.0
  %1569 = vmatpush1.msra.mxu0 0.0
  %1570 = vmatprep.subr.mxu0 0.0
  %1571 = vmatpush1.msra.mxu0 0.0
  %1572 = vmatprep.subr.mxu0 0.0
  %1573 = vmatpush1.msra.mxu0 0.0
  %1574 = vmatprep.subr.mxu0 0.0
  %1575 = vmatpush1.msra.mxu0 0.0
  %1576 = vmatprep.subr.mxu0 0.0
  %1577 = vmatpush1.msra.mxu0 0.0
  %1578 = vmatprep.subr.mxu0 0.0
  %1579 = vmatpush1.msra.mxu0 0.0
  %1580 = vmatprep.subr.mxu0 0.0
  %1581 = vmatpush1.msra.mxu0 0.0
  %1582 = vmatprep.subr.mxu0 0.0
  %1583 = vmatpush1.msra.mxu0 0.0
  %1584 = vmatprep.subr.mxu0 0.0
  %1585 = vmatpush1.msra.mxu0 0.0
  %1586 = vmatprep.subr.mxu0 0.0
  %1587 = vmatpush1.msra.mxu0 0.0
  %1588 = vmatprep.subr.mxu0 0.0
  %1589 = vmatpush1.msra.mxu0 0.0
  %1590 = vmatprep.subr.mxu0 0.0
  %1591 = vmatpush1.msra.mxu0 0.0
  %1592 = vmatprep.subr.mxu0 0.0
  %1593 = vmatpush1.msra.mxu0 0.0
  %1594 = vmatprep.subr.mxu0 0.0
  %1595 = vmatpush1.msra.mxu0 %v31
  %1596 = vmatprep.subr.mxu0 0.0
  %1597 = vmatpush2.msra.mxu0 0.0
  %1598 = vmatprep.subr.mxu0 0.0
  %1599 = vmatpush2.msra.mxu0 0.0
  %1600 = vmatprep.subr.mxu0 0.0
  %1601 = vmatpush2.msra.mxu0 0.0
  %1602 = vmatprep.subr.mxu0 0.0
  %1603 = vmatpush2.msra.mxu0 0.0
  %1604 = vmatprep.subr.mxu0 0.0
  %1605 = vmatpush2.msra.mxu0 0.0
  %1606 = vmatprep.subr.mxu0 0.0
  %1607 = vmatpush2.msra.mxu0 0.0
  %1608 = vmatprep.subr.mxu0 0.0
  %1609 = vmatpush2.msra.mxu0 0.0
  %1610 = vmatprep.subr.mxu0 0.0
  %1611 = vmatpush2.msra.mxu0 0.0
  %1612 = vmatprep.subr.mxu0 0.0
  %1613 = vmatpush2.msra.mxu0 0.0
  %1614 = vmatprep.subr.mxu0 0.0
  %1615 = vmatpush2.msra.mxu0 0.0
  %1616 = vmatprep.subr.mxu0 0.0
  %1617 = vmatpush2.msra.mxu0 0.0
  %1618 = vmatprep.subr.mxu0 0.0
  %1619 = vmatpush2.msra.mxu0 0.0
  %1620 = vmatprep.subr.mxu0 0.0
  %1621 = vmatpush2.msra.mxu0 0.0
  %1622 = vmatprep.subr.mxu0 0.0
  %1623 = vmatpush2.msra.mxu0 0.0
  %1624 = vmatprep.subr.mxu0 0.0
  %1625 = vmatpush2.msra.mxu0 0.0
  %1626 = vmatprep.subr.mxu0 0.0
  %1627 = vmatpush2.msra.mxu0 0.0
  %1628 = vmatprep.mubr.f32.mxu0 0.0
  %1629 = vmatmul.mubr.f32.gmra.mxu0 %v1562
  %v1630 = vpop.f32.mrf.mxu0
  %v1631 = vadd.f32 0.0, %v1630
  %v1632 = vpop.f32.mrf.mxu0
  %1633 = vdwg.mxu0
  %v1634 = vadd.f32 %v1544, %v1631
  %v1635 = vsub.f32 %v1204, %v1372
  %v1636 = vsub.f32 %v1205, %v1372
  %v1637 = vmul.f32 %v1635, %v1635
  %v1638 = vmul.f32 %v1636, %v1636
  %v1639 = vsel %vm283, %v1637, 0.0
  %v1640 = vsel %vm283, %v1638, 0.0
  %v1641 = vadd.f32 %v1639, %v1640
  %v1642 = vsel %vm283, %v1641, 0.0
  %v1643 = vrot.slane %v1642, 4
  %v1644 = vadd.f32 %v1642, %v1643
  %v1645 = vrot.slane %v1644, 2
  %v1646 = vadd.f32 %v1644, %v1645
  %v1647 = vrot.slane %v1646, 1
  %v1648 = vadd.f32 %v1646, %v1647
  %v1650 = vsel %vm283, %v1648, 0
  %1652 = vmatprep.subr.mxu0 0.0
  %1653 = vmatpush1.msra.mxu0 0.0
  %1654 = vmatprep.subr.mxu0 0.0
  %1655 = vmatpush1.msra.mxu0 0.0
  %1656 = vmatprep.subr.mxu0 0.0
  %1657 = vmatpush1.msra.mxu0 0.0
  %1658 = vmatprep.subr.mxu0 0.0
  %1659 = vmatpush1.msra.mxu0 0.0
  %1660 = vmatprep.subr.mxu0 0.0
  %1661 = vmatpush1.msra.mxu0 0.0
  %1662 = vmatprep.subr.mxu0 0.0
  %1663 = vmatpush1.msra.mxu0 0.0
  %1664 = vmatprep.subr.mxu0 0.0
  %1665 = vmatpush1.msra.mxu0 0.0
  %1666 = vmatprep.subr.mxu0 0.0
  %1667 = vmatpush1.msra.mxu0 0.0
  %1668 = vmatprep.subr.mxu0 0.0
  %1669 = vmatpush1.msra.mxu0 0.0
  %1670 = vmatprep.subr.mxu0 0.0
  %1671 = vmatpush1.msra.mxu0 0.0
  %1672 = vmatprep.subr.mxu0 0.0
  %1673 = vmatpush1.msra.mxu0 0.0
  %1674 = vmatprep.subr.mxu0 0.0
  %1675 = vmatpush1.msra.mxu0 0.0
  %1676 = vmatprep.subr.mxu0 0.0
  %1677 = vmatpush1.msra.mxu0 0.0
  %1678 = vmatprep.subr.mxu0 0.0
  %1679 = vmatpush1.msra.mxu0 0.0
  %1680 = vmatprep.subr.mxu0 0.0
  %1681 = vmatpush1.msra.mxu0 0.0
  %1682 = vmatprep.subr.mxu0 0.0
  %1683 = vmatpush1.msra.mxu0 %v31
  %1684 = vmatprep.subr.mxu0 0.0
  %1685 = vmatpush2.msra.mxu0 0.0
  %1686 = vmatprep.subr.mxu0 0.0
  %1687 = vmatpush2.msra.mxu0 0.0
  %1688 = vmatprep.subr.mxu0 0.0
  %1689 = vmatpush2.msra.mxu0 0.0
  %1690 = vmatprep.subr.mxu0 0.0
  %1691 = vmatpush2.msra.mxu0 0.0
  %1692 = vmatprep.subr.mxu0 0.0
  %1693 = vmatpush2.msra.mxu0 0.0
  %1694 = vmatprep.subr.mxu0 0.0
  %1695 = vmatpush2.msra.mxu0 0.0
  %1696 = vmatprep.subr.mxu0 0.0
  %1697 = vmatpush2.msra.mxu0 0.0
  %1698 = vmatprep.subr.mxu0 0.0
  %1699 = vmatpush2.msra.mxu0 0.0
  %1700 = vmatprep.subr.mxu0 0.0
  %1701 = vmatpush2.msra.mxu0 0.0
  %1702 = vmatprep.subr.mxu0 0.0
  %1703 = vmatpush2.msra.mxu0 0.0
  %1704 = vmatprep.subr.mxu0 0.0
  %1705 = vmatpush2.msra.mxu0 0.0
  %1706 = vmatprep.subr.mxu0 0.0
  %1707 = vmatpush2.msra.mxu0 0.0
  %1708 = vmatprep.subr.mxu0 0.0
  %1709 = vmatpush2.msra.mxu0 0.0
  %1710 = vmatprep.subr.mxu0 0.0
  %1711 = vmatpush2.msra.mxu0 0.0
  %1712 = vmatprep.subr.mxu0 0.0
  %1713 = vmatpush2.msra.mxu0 0.0
  %1714 = vmatprep.subr.mxu0 0.0
  %1715 = vmatpush2.msra.mxu0 0.0
  %1716 = vmatprep.mubr.f32.mxu0 0.0
  %1717 = vmatmul.mubr.f32.gmra.mxu0 %v1650
  %v1718 = vpop.f32.mrf.mxu0
  %v1719 = vadd.f32 0.0, %v1718
  %v1720 = vpop.f32.mrf.mxu0
  %1721 = vdwg.mxu0
  %v1722 = vadd.f32 %v1634, %v1719
  %v1723 = vmul.f32 %v1722, 0.001953125
  %v1724 = vadd.f32 %v1723, 1e-05
  %v1725 = vrsqrt.pop %v1724
  %v1727 = vsel %vm1291, %v1725, 0
  %1729 = vmatprep.subr.mxu0 0.0
  %1730 = vmatpush1.msra.mxu0 0.0
  %1731 = vmatprep.subr.mxu0 0.0
  %1732 = vmatpush1.msra.mxu0 0.0
  %1733 = vmatprep.subr.mxu0 0.0
  %1734 = vmatpush1.msra.mxu0 0.0
  %1735 = vmatprep.subr.mxu0 0.0
  %1736 = vmatpush1.msra.mxu0 0.0
  %1737 = vmatprep.subr.mxu0 0.0
  %1738 = vmatpush1.msra.mxu0 0.0
  %1739 = vmatprep.subr.mxu0 0.0
  %1740 = vmatpush1.msra.mxu0 0.0
  %1741 = vmatprep.subr.mxu0 0.0
  %1742 = vmatpush1.msra.mxu0 0.0
  %1743 = vmatprep.subr.mxu0 0.0
  %1744 = vmatpush1.msra.mxu0 0.0
  %1745 = vmatprep.subr.mxu0 0.0
  %1746 = vmatpush1.msra.mxu0 0.0
  %1747 = vmatprep.subr.mxu0 0.0
  %1748 = vmatpush1.msra.mxu0 0.0
  %1749 = vmatprep.subr.mxu0 0.0
  %1750 = vmatpush1.msra.mxu0 0.0
  %1751 = vmatprep.subr.mxu0 0.0
  %1752 = vmatpush1.msra.mxu0 0.0
  %1753 = vmatprep.subr.mxu0 0.0
  %1754 = vmatpush1.msra.mxu0 0.0
  %1755 = vmatprep.subr.mxu0 0.0
  %1756 = vmatpush1.msra.mxu0 0.0
  %1757 = vmatprep.subr.mxu0 0.0
  %1758 = vmatpush1.msra.mxu0 0.0
  %1759 = vmatprep.subr.mxu0 0.0
  %1760 = vmatpush1.msra.mxu0 %v1297
  %1761 = vmatprep.subr.mxu0 0.0
  %1762 = vmatpush2.msra.mxu0 0.0
  %1763 = vmatprep.subr.mxu0 0.0
  %1764 = vmatpush2.msra.mxu0 0.0
  %1765 = vmatprep.subr.mxu0 0.0
  %1766 = vmatpush2.msra.mxu0 0.0
  %1767 = vmatprep.subr.mxu0 0.0
  %1768 = vmatpush2.msra.mxu0 0.0
  %1769 = vmatprep.subr.mxu0 0.0
  %1770 = vmatpush2.msra.mxu0 0.0
  %1771 = vmatprep.subr.mxu0 0.0
  %1772 = vmatpush2.msra.mxu0 0.0
  %1773 = vmatprep.subr.mxu0 0.0
  %1774 = vmatpush2.msra.mxu0 0.0
  %1775 = vmatprep.subr.mxu0 0.0
  %1776 = vmatpush2.msra.mxu0 0.0
  %1777 = vmatprep.subr.mxu0 0.0
  %1778 = vmatpush2.msra.mxu0 0.0
  %1779 = vmatprep.subr.mxu0 0.0
  %1780 = vmatpush2.msra.mxu0 0.0
  %1781 = vmatprep.subr.mxu0 0.0
  %1782 = vmatpush2.msra.mxu0 0.0
  %1783 = vmatprep.subr.mxu0 0.0
  %1784 = vmatpush2.msra.mxu0 0.0
  %1785 = vmatprep.subr.mxu0 0.0
  %1786 = vmatpush2.msra.mxu0 0.0
  %1787 = vmatprep.subr.mxu0 0.0
  %1788 = vmatpush2.msra.mxu0 0.0
  %1789 = vmatprep.subr.mxu0 0.0
  %1790 = vmatpush2.msra.mxu0 0.0
  %1791 = vmatprep.subr.mxu0 0.0
  %1792 = vmatpush2.msra.mxu0 0.0
  %1793 = vmatprep.mubr.f32.mxu0 0.0
  %1794 = vmatmul.mubr.f32.gmra.mxu0 %v1727
  %v1795 = vpop.f32.mrf.mxu0
  %v1796 = vadd.f32 0.0, %v1795
  %v1797 = vpop.f32.mrf.mxu0
  %1798 = vdwg.mxu0
  %v1799 = vmul.f32 %v1796, %v34
  %v1800 = vlaneseq
  %v1801 = vshrl.u32 %v1800, 7
  %v1802 = vsub.s32 0, %v1801
  %v1803 = vrot.slane %v1799, %v1802
  %v1804 = vmul.f32 %v1373, %v1803
  %v1805 = vmul.f32 %v1374, %v1803
  %v1807 = vlaneseq
  %v1808 = vshrl.u32 %v1807, 7
  %v1809 = vsub.s32 0, %v1808
  %v1810 = vrot.slane %v35, %v1809
  %v1812 = vadd.f32 %v1804, %v1810
  %v1813 = vadd.f32 %v1805, %v1810
  %v1814 = vtanh.pop %v1812
  %v1815 = vtanh.pop %v1813
  %1816 = vst.msk [vmem:[%s7] sm:$0xff] %vm283, %v1814
  %1817 = vst.msk [vmem:[%s7 + $0x8] sm:$0xff] %vm283, %v1815
  %v1818 = vmul.f32 %v1387, %v1803
  %v1819 = vmul.f32 %v1388, %v1803
  %v1820 = vadd.f32 %v1818, %v1810
  %v1821 = vadd.f32 %v1819, %v1810
  %v1822 = vtanh.pop %v1820
  %v1823 = vtanh.pop %v1821
  %s1824 = scalar_lea.vmem %s7, 16
  %1825 = vst.msk [vmem:[%s1824] sm:$0xff] %vm283, %v1822
  %1826 = vst.msk [vmem:[%s1824 + $0x8] sm:$0xff] %vm283, %v1823
  %v1827 = vmul.f32 %v1547, %v1803
  %v1828 = vmul.f32 %v1548, %v1803
  %v1829 = vadd.f32 %v1827, %v1810
  %v1830 = vadd.f32 %v1828, %v1810
  %v1831 = vtanh.pop %v1829
  %v1832 = vtanh.pop %v1830
  %s1833 = scalar_lea.vmem %s7, 32
  %1834 = vst.msk [vmem:[%s1833] sm:$0xff] %vm283, %v1831
  %1835 = vst.msk [vmem:[%s1833 + $0x8] sm:$0xff] %vm283, %v1832
  %v1836 = vmul.f32 %v1635, %v1803
  %v1837 = vmul.f32 %v1636, %v1803
  %v1838 = vadd.f32 %v1836, %v1810
  %v1839 = vadd.f32 %v1837, %v1810
  %v1840 = vtanh.pop %v1838
  %v1841 = vtanh.pop %v1839
  %s1842 = scalar_lea.vmem %s7, 48
  %1843 = vst.msk [vmem:[%s1842] sm:$0xff] %vm283, %v1840
  %1844 = vst.msk [vmem:[%s1842 + $0x8] sm:$0xff] %vm283, %v1841
  // Predicated region
  $region30: #{_lambda_.4} parent=0 // pred_check
    _
  $region31: #{_lambda_.4} parent=0 // pred_check_branch
    %1846 = sbr.rel (0) target = $region33
  $region32: #{_lambda_.4} parent=0 // pred_region
    _
  $region33: #{_lambda_.4} parent=0 // pred_fallthru
    _
  // Predicated region
  $region34: #{_lambda_.4} parent=0 // pred_check
    _
  $region35: #{_lambda_.4} parent=0 // pred_check_branch
    %1848 = sbr.rel (0) target = $region37
  $region36: #{_lambda_.4} parent=0 // pred_region
    _
  $region37: #{_lambda_.4} parent=0 // pred_fallthru
    _

// kernel: _lambda_.3
$region0: #{_lambda_.3}
  #allocation0 [shape = 'u32[]', space=smem, size = 0x4, offset = 0x4, fixed_abs, tag = 'smem constant byte address 0x4 - core index']
  #allocation1 [shape = 'u32[144,128]{1,0:T(1,128)}', space=vmem, size = 0x12000, scoped, tag = 'internal scratch']
  #allocation2 [shape = 'f32[2,6,48]{2,1,0:T(8,128)}', space=vmem, size = 0x2000, scoped, tag = 'scratch operand']
  %s0 = inlined_call_operand.vmem [shape: f32[2,16], index: 0, kind: input, shape index: {}]
  %s1 = inlined_call_operand.vmem [shape: f32[16,128], index: 1, kind: input, shape index: {}]
  %s2 = inlined_call_operand.vmem [shape: f32[1,128], index: 2, kind: input, shape index: {}]
  %s3 = inlined_call_operand.vmem [shape: bf16[8,40,16], index: 3, kind: input, shape index: {}]
  %s4 = inlined_call_operand.vmem [shape: f32[1,16], index: 4, kind: input, shape index: {}]
  %s5 = inlined_call_operand.vmem [shape: f32[1,16], index: 5, kind: input, shape index: {}]
  %s6 = inlined_call_operand.vmem [shape: f32[1,16], index: 6, kind: input, shape index: {}]
  %s7 = inlined_call_operand.vmem [shape: f32[16,4], index: 7, kind: input, shape index: {}]
  %s8 = inlined_call_operand.vmem [shape: f32[4,16], index: 8, kind: input, shape index: {}]
  %s9 = inlined_call_operand.vmem [shape: f32[4,2,4,16], index: 9, kind: output, shape index: {}]
  %s10 = sld [smem:[#allocation0]]
  $region46: #{_lambda_.3} parent=0
    _
  %s12 = ssub.s32 1, %s10
  %s13 = scalar_select 0, %s12, %s10
  // Predicated region
  $region2: #{_lambda_.3} parent=0 // pred_check
    _
  $region3: #{_lambda_.3} parent=0 // pred_check_branch
    %15 = sbr.rel (0) target = $region5
  $region4: #{_lambda_.3} parent=0 // pred_region
    _
  $region5: #{_lambda_.3} parent=0 // pred_fallthru
    _
  // Predicated region
  $region6: #{_lambda_.3} parent=0 // pred_check
    _
  $region7: #{_lambda_.3} parent=0 // pred_check_branch
    %17 = sbr.rel (0) target = $region9
  $region8: #{_lambda_.3} parent=0 // pred_region
    _
  $region9: #{_lambda_.3} parent=0 // pred_fallthru
    _
  // Predicated region
  $region10: #{_lambda_.3} parent=0 // pred_check
    _
  $region11: #{_lambda_.3} parent=0 // pred_check_branch
    %19 = sbr.rel (0) target = $region13
  $region12: #{_lambda_.3} parent=0 // pred_region
    _
  $region13: #{_lambda_.3} parent=0 // pred_fallthru
    _
  // Predicated region
  $region14: #{_lambda_.3} parent=0 // pred_check
    _
  $region15: #{_lambda_.3} parent=0 // pred_check_branch
    %21 = sbr.rel (0) target = $region17
  $region16: #{_lambda_.3} parent=0 // pred_region
    _
  $region17: #{_lambda_.3} parent=0 // pred_fallthru
    _
  // Predicated region
  $region18: #{_lambda_.3} parent=0 // pred_check
    _
  $region19: #{_lambda_.3} parent=0 // pred_check_branch
    %23 = sbr.rel (0) target = $region21
  $region20: #{_lambda_.3} parent=0 // pred_region
    _
  $region21: #{_lambda_.3} parent=0 // pred_fallthru
    _
  // Predicated region
  $region22: #{_lambda_.3} parent=0 // pred_check
    _
  $region23: #{_lambda_.3} parent=0 // pred_check_branch
    %25 = sbr.rel (0) target = $region25
  $region24: #{_lambda_.3} parent=0 // pred_region
    _
  $region25: #{_lambda_.3} parent=0 // pred_fallthru
    _
  // Predicated region
  $region26: #{_lambda_.3} parent=0 // pred_check
    _
  $region27: #{_lambda_.3} parent=0 // pred_check_branch
    %27 = sbr.rel (0) target = $region29
  $region28: #{_lambda_.3} parent=0 // pred_region
    _
  $region29: #{_lambda_.3} parent=0 // pred_fallthru
    _
  // Predicated region
  $region30: #{_lambda_.3} parent=0 // pred_check
    _
  $region31: #{_lambda_.3} parent=0 // pred_check_branch
    %29 = sbr.rel (0) target = $region33
  $region32: #{_lambda_.3} parent=0 // pred_region
    _
  $region33: #{_lambda_.3} parent=0 // pred_fallthru
    _
  // Predicated region
  $region34: #{_lambda_.3} parent=0 // pred_check
    _
  $region35: #{_lambda_.3} parent=0 // pred_check_branch
    %31 = sbr.rel (0) target = $region37
  $region36: #{_lambda_.3} parent=0 // pred_region
    _
  $region37: #{_lambda_.3} parent=0 // pred_fallthru
    _
  %vm33 = vcmask 390144
  %34 = vst.msk [vmem:[#allocation2] sm:$0x3f] %vm33, 0.0
  %35 = vst.msk [vmem:[#allocation2 + $0x8] sm:$0x3f] %vm33, 0.0
  %v36 = vld [vmem:[%s0] sm:$0x3]
  %v37 = vld [vmem:[%s1] sm:$0xff]
  %v38 = vld [vmem:[%s1 + $0x8] sm:$0xff]
  %v39 = vld [vmem:[%s2] sm:$0x1]
  %v41 = vlaneseq
  %v42 = vshrl.u32 %v41, 7
  %v43 = vsub.s32 0, %v42
  %v44 = vrot.slane %v39, %v43
  %vm46 = vcmask 130048
  %v48 = vsel %vm46, %v36, 0
  %50 = vmatprep.subr.mxu0 0.0
  %51 = vmatpush1.msra.mxu0 0.0
  %52 = vmatprep.subr.mxu0 0.0
  %53 = vmatpush1.msra.mxu0 0.0
  %54 = vmatprep.subr.mxu0 0.0
  %55 = vmatpush1.msra.mxu0 0.0
  %56 = vmatprep.subr.mxu0 0.0
  %57 = vmatpush1.msra.mxu0 0.0
  %58 = vmatprep.subr.mxu0 0.0
  %59 = vmatpush1.msra.mxu0 0.0
  %60 = vmatprep.subr.mxu0 0.0
  %61 = vmatpush1.msra.mxu0 0.0
  %62 = vmatprep.subr.mxu0 0.0
  %63 = vmatpush1.msra.mxu0 0.0
  %64 = vmatprep.subr.mxu0 0.0
  %65 = vmatpush1.msra.mxu0 0.0
  %66 = vmatprep.subr.mxu0 0.0
  %67 = vmatpush1.msra.mxu0 0.0
  %68 = vmatprep.subr.mxu0 0.0
  %69 = vmatpush1.msra.mxu0 0.0
  %70 = vmatprep.subr.mxu0 0.0
  %71 = vmatpush1.msra.mxu0 0.0
  %72 = vmatprep.subr.mxu0 0.0
  %73 = vmatpush1.msra.mxu0 0.0
  %74 = vmatprep.subr.mxu0 0.0
  %75 = vmatpush1.msra.mxu0 0.0
  %76 = vmatprep.subr.mxu0 0.0
  %77 = vmatpush1.msra.mxu0 0.0
  %78 = vmatprep.subr.mxu0 0.0
  %79 = vmatpush1.msra.mxu0 %v38
  %80 = vmatprep.subr.mxu0 0.0
  %81 = vmatpush1.msra.mxu0 %v37
  %82 = vmatprep.subr.mxu0 0.0
  %83 = vmatpush2.msra.mxu0 0.0
  %84 = vmatprep.subr.mxu0 0.0
  %85 = vmatpush2.msra.mxu0 0.0
  %86 = vmatprep.subr.mxu0 0.0
  %87 = vmatpush2.msra.mxu0 0.0
  %88 = vmatprep.subr.mxu0 0.0
  %89 = vmatpush2.msra.mxu0 0.0
  %90 = vmatprep.subr.mxu0 0.0
  %91 = vmatpush2.msra.mxu0 0.0
  %92 = vmatprep.subr.mxu0 0.0
  %93 = vmatpush2.msra.mxu0 0.0
  %94 = vmatprep.subr.mxu0 0.0
  %95 = vmatpush2.msra.mxu0 0.0
  %96 = vmatprep.subr.mxu0 0.0
  %97 = vmatpush2.msra.mxu0 0.0
  %98 = vmatprep.subr.mxu0 0.0
  %99 = vmatpush2.msra.mxu0 0.0
  %100 = vmatprep.subr.mxu0 0.0
  %101 = vmatpush2.msra.mxu0 0.0
  %102 = vmatprep.subr.mxu0 0.0
  %103 = vmatpush2.msra.mxu0 0.0
  %104 = vmatprep.subr.mxu0 0.0
  %105 = vmatpush2.msra.mxu0 0.0
  %106 = vmatprep.subr.mxu0 0.0
  %107 = vmatpush2.msra.mxu0 0.0
  %108 = vmatprep.subr.mxu0 0.0
  %109 = vmatpush2.msra.mxu0 0.0
  %110 = vmatprep.subr.mxu0 0.0
  %111 = vmatpush2.msra.mxu0 0.0
  %112 = vmatprep.subr.mxu0 0.0
  %113 = vmatpush2.msra.mxu0 0.0
  %114 = vmatprep.mubr.f32.mxu0 0.0
  %115 = vmatmul.mubr.f32.gmra.mxu0 %v48
  %v116 = vpop.f32.mrf.mxu0
  %v117 = vadd.f32 %v44, %v116
  %v118 = vpop.f32.mrf.mxu0
  %119 = vdwg.mxu0
  %v122 = vunpack.c.l.s4 1966171168
  %v123 = vunpack.c.0.s8 %v122
  %v124 = vlaneseq
  %v125 = vshrl.u32 %v124, 7
  %v126 = vsub.s32 %v123, %v125
  %v127 = vrot.slane %v117, %v126
  %v128 = vcombine.high %v127, %v127
  %v130 = vunpack.c.l.s4 1966171168
  %v131 = vunpack.c.0.s8 %v130
  %v132 = vlaneseq
  %v133 = vshrl.u32 %v132, 7
  %v134 = vsub.s32 %v131, %v133
  %v135 = vrot.slane %v127, %v134
  %v137 = vunpack.c.l.s4 1966171168
  %v138 = vunpack.c.0.s8 %v137
  %v139 = vlaneseq
  %v140 = vshrl.u32 %v139, 7
  %v141 = vsub.s32 %v138, %v140
  %v142 = vrot.slane %v128, %v141
  %v143 = vlaneseq
  %v144 = vshrl.u32 %v143, 7
  %v145 = vsub.s32 0, %v144
  %v146 = vrot.slane %v135, %v145
  %v147 = vlaneseq
  %v148 = vshrl.u32 %v147, 7
  %v149 = vsub.s32 0, %v148
  %v150 = vrot.slane %v142, %v149
  %151 = vrot.lane.b32.xlu0 %v146, 8
  %v152 = vpop.permute.xlu0 %151
  %153 = vrot.lane.b32.xlu0 %v150, 8
  %v154 = vpop.permute.xlu0 %153
  %vm157 = vcmask 319552
  %158 = vst.msk [vmem:[#allocation2 + $0x1] sm:$0x1] %vm157, %v152
  %159 = vst.msk [vmem:[#allocation2 + $0x9] sm:$0x1] %vm157, %v154
  %160 = vrot.lane.b32.xlu0 %v146, 104
  %v161 = vpop.permute.xlu0 %160
  %162 = vrot.lane.b32.xlu0 %v150, 104
  %v163 = vpop.permute.xlu0 %162
  %166 = vst.msk [vmem:[#allocation2 + $0x2] sm:$0x1] %vm157, %v161
  %167 = vst.msk [vmem:[#allocation2 + $0xa] sm:$0x1] %vm157, %v163
  %168 = vrot.lane.b32.xlu0 %v146, 72
  %v169 = vpop.permute.xlu0 %168
  %170 = vrot.lane.b32.xlu0 %v150, 72
  %v171 = vpop.permute.xlu0 %170
  %174 = vst.msk [vmem:[#allocation2 + $0x3] sm:$0x1] %vm157, %v169
  %175 = vst.msk [vmem:[#allocation2 + $0xb] sm:$0x1] %vm157, %v171
  %176 = vrot.lane.b32.xlu0 %v146, 40
  %v177 = vpop.permute.xlu0 %176
  %178 = vrot.lane.b32.xlu0 %v150, 40
  %v179 = vpop.permute.xlu0 %178
  %182 = vst.msk [vmem:[#allocation2 + $0x4] sm:$0x1] %vm157, %v177
  %183 = vst.msk [vmem:[#allocation2 + $0xc] sm:$0x1] %vm157, %v179
  %v184 = vld [vmem:[#allocation2] sm:$0x3f]
  %v185 = vld [vmem:[#allocation2 + $0x8] sm:$0x3f]
  %v186 = vld [vmem:[%s7] sm:$0xff]
  %v187 = vld [vmem:[%s7 + $0x8] sm:$0xff]
  %v188 = vld [vmem:[%s8] sm:$0xf]
  %v189 = vld [vmem:[%s4] sm:$0x1]
  %v190 = vld [vmem:[%s5] sm:$0x1]
  %v191 = vld [vmem:[%s6] sm:$0x1]
  %v192 = vpack.c.bf16 %v184, %v184
  %v193 = vpack.c.bf16 %v185, %v185
  %v194 = vld [vmem:[%s3] sm:$0xf]
  %v195 = vld [vmem:[%s3 + $0x4] sm:$0xf]
  %v196 = vld [vmem:[%s3 + $0x8] sm:$0xf]
  %v197 = vld [vmem:[%s3 + $0xc] sm:$0xf]
  %v198 = vld [vmem:[%s3 + $0x10] sm:$0xf]
  %s199 = scalar_lea.vmem %s3, 20
  %v200 = vld [vmem:[%s199] sm:$0xf]
  %v201 = vld [vmem:[%s199 + $0x4] sm:$0xf]
  %v202 = vld [vmem:[%s199 + $0x8] sm:$0xf]
  %v203 = vld [vmem:[%s199 + $0xc] sm:$0xf]
  %v204 = vld [vmem:[%s199 + $0x10] sm:$0xf]
  %v210 = vunpack.c.l.b16 %v200
  %v211 = vunpack.c.l.b16 %v201
  %v212 = vunpack.c.l.b16 %v202
  %v213 = vunpack.c.l.b16 %v203
  %v214 = vunpack.c.l.b16 %v204
  %v215 = vpack.c.b16 %v211, %v210
  %v216 = vpack.c.b16 %v213, %v212
  %v217 = vpack.c.b16 %v214, %v214
  %vm220 = vcmask 326656
  %v222 = vsel %vm220, %v192, 0
  %vm224 = vcmask 1043456
  %v226 = vsel %vm224, %v217, 0
  %228 = vmatprep.subr.bf16.mxu0 0
  %229 = vmatpush1.bf16.msra.mxu0 0
  %230 = vmatprep.subr.bf16.mxu0 0
  %231 = vmatpush1.bf16.msra.mxu0 0
  %232 = vmatprep.subr.bf16.mxu0 0
  %233 = vmatpush1.bf16.msra.mxu0 0
  %234 = vmatprep.subr.bf16.mxu0 0
  %235 = vmatpush1.bf16.msra.mxu0 0
  %236 = vmatprep.subr.bf16.mxu0 0
  %237 = vmatpush1.bf16.msra.mxu0 0
  %238 = vmatprep.subr.bf16.mxu0 0
  %239 = vmatpush1.bf16.msra.mxu0 %v226
  %240 = vmatprep.subr.bf16.mxu0 0
  %241 = vmatpush1.bf16.msra.mxu0 %v216
  %242 = vmatprep.subr.bf16.mxu0 0
  %243 = vmatpush1.bf16.msra.mxu0 %v215
  %244 = vmatprep.subr.bf16.mxu0 0
  %245 = vmatpush2.bf16.msra.mxu0 0
  %246 = vmatprep.subr.bf16.mxu0 0
  %247 = vmatpush2.bf16.msra.mxu0 0
  %248 = vmatprep.subr.bf16.mxu0 0
  %249 = vmatpush2.bf16.msra.mxu0 0
  %250 = vmatprep.subr.bf16.mxu0 0
  %251 = vmatpush2.bf16.msra.mxu0 0
  %252 = vmatprep.subr.bf16.mxu0 0
  %253 = vmatpush2.bf16.msra.mxu0 0
  %254 = vmatprep.subr.bf16.mxu0 0
  %255 = vmatpush2.bf16.msra.mxu0 0
  %256 = vmatprep.subr.bf16.mxu0 0
  %257 = vmatpush2.bf16.msra.mxu0 0
  %258 = vmatprep.subr.bf16.mxu0 0
  %259 = vmatpush2.bf16.msra.mxu0 0
  %260 = vmatprep.mubr.bf16.mxu0 0
  %261 = vmatmul.mubr.bf16.gmra.mxu0 %v222
  %v262 = vpop.f32.mrf.mxu0
  %v263 = vadd.f32 0.0, %v262
  %v264 = vpop.f32.mrf.mxu0
  %v265 = vpop.f32.mrf.mxu0
  %v266 = vpop.f32.mrf.mxu0
  %267 = vdwg.mxu0
  %v269 = vsel %vm220, %v193, 0
  %271 = vmatprep.subr.bf16.mxu0 0
  %272 = vmatpush1.bf16.msra.mxu0 0
  %273 = vmatprep.subr.bf16.mxu0 0
  %274 = vmatpush1.bf16.msra.mxu0 0
  %275 = vmatprep.subr.bf16.mxu0 0
  %276 = vmatpush1.bf16.msra.mxu0 0
  %277 = vmatprep.subr.bf16.mxu0 0
  %278 = vmatpush1.bf16.msra.mxu0 0
  %279 = vmatprep.subr.bf16.mxu0 0
  %280 = vmatpush1.bf16.msra.mxu0 0
  %281 = vmatprep.subr.bf16.mxu0 0
  %282 = vmatpush1.bf16.msra.mxu0 %v226
  %283 = vmatprep.subr.bf16.mxu0 0
  %284 = vmatpush1.bf16.msra.mxu0 %v216
  %285 = vmatprep.subr.bf16.mxu0 0
  %286 = vmatpush1.bf16.msra.mxu0 %v215
  %287 = vmatprep.subr.bf16.mxu0 0
  %288 = vmatpush2.bf16.msra.mxu0 0
  %289 = vmatprep.subr.bf16.mxu0 0
  %290 = vmatpush2.bf16.msra.mxu0 0
  %291 = vmatprep.subr.bf16.mxu0 0
  %292 = vmatpush2.bf16.msra.mxu0 0
  %293 = vmatprep.subr.bf16.mxu0 0
  %294 = vmatpush2.bf16.msra.mxu0 0
  %295 = vmatprep.subr.bf16.mxu0 0
  %296 = vmatpush2.bf16.msra.mxu0 0
  %297 = vmatprep.subr.bf16.mxu0 0
  %298 = vmatpush2.bf16.msra.mxu0 0
  %299 = vmatprep.subr.bf16.mxu0 0
  %300 = vmatpush2.bf16.msra.mxu0 0
  %301 = vmatprep.subr.bf16.mxu0 0
  %302 = vmatpush2.bf16.msra.mxu0 0
  %303 = vmatprep.mubr.bf16.mxu0 0
  %304 = vmatmul.mubr.bf16.gmra.mxu0 %v269
  %v305 = vpop.f32.mrf.mxu0
  %v306 = vadd.f32 0.0, %v305
  %v307 = vpop.f32.mrf.mxu0
  %v308 = vpop.f32.mrf.mxu0
  %v309 = vpop.f32.mrf.mxu0
  %310 = vdwg.mxu0
  %v311 = vshrl.u32 %v192, 16
  %v313 = vshll.u32 %v192, 16
  %v315 = vrot.slane %v313, 1
  %v316 = vor.u32 %v311, %v315
  %v322 = vunpack.c.l.b16 %v194
  %v323 = vunpack.c.l.b16 %v195
  %v324 = vunpack.c.l.b16 %v196
  %v325 = vunpack.c.l.b16 %v197
  %v326 = vunpack.c.l.b16 %v198
  %v327 = vpack.c.b16 %v323, %v322
  %v328 = vpack.c.b16 %v325, %v324
  %v329 = vpack.c.b16 %v326, %v326
  %v333 = vsel %vm220, %v316, 0
  %v336 = vsel %vm224, %v329, 0
  %338 = vmatprep.subr.bf16.mxu0 0
  %339 = vmatpush1.bf16.msra.mxu0 0
  %340 = vmatprep.subr.bf16.mxu0 0
  %341 = vmatpush1.bf16.msra.mxu0 0
  %342 = vmatprep.subr.bf16.mxu0 0
  %343 = vmatpush1.bf16.msra.mxu0 0
  %344 = vmatprep.subr.bf16.mxu0 0
  %345 = vmatpush1.bf16.msra.mxu0 0
  %346 = vmatprep.subr.bf16.mxu0 0
  %347 = vmatpush1.bf16.msra.mxu0 0
  %348 = vmatprep.subr.bf16.mxu0 0
  %349 = vmatpush1.bf16.msra.mxu0 %v336
  %350 = vmatprep.subr.bf16.mxu0 0
  %351 = vmatpush1.bf16.msra.mxu0 %v328
  %352 = vmatprep.subr.bf16.mxu0 0
  %353 = vmatpush1.bf16.msra.mxu0 %v327
  %354 = vmatprep.subr.bf16.mxu0 0
  %355 = vmatpush2.bf16.msra.mxu0 0
  %356 = vmatprep.subr.bf16.mxu0 0
  %357 = vmatpush2.bf16.msra.mxu0 0
  %358 = vmatprep.subr.bf16.mxu0 0
  %359 = vmatpush2.bf16.msra.mxu0 0
  %360 = vmatprep.subr.bf16.mxu0 0
  %361 = vmatpush2.bf16.msra.mxu0 0
  %362 = vmatprep.subr.bf16.mxu0 0
  %363 = vmatpush2.bf16.msra.mxu0 0
  %364 = vmatprep.subr.bf16.mxu0 0
  %365 = vmatpush2.bf16.msra.mxu0 0
  %366 = vmatprep.subr.bf16.mxu0 0
  %367 = vmatpush2.bf16.msra.mxu0 0
  %368 = vmatprep.subr.bf16.mxu0 0
  %369 = vmatpush2.bf16.msra.mxu0 0
  %370 = vmatprep.mubr.bf16.mxu0 0
  %371 = vmatmul.mubr.bf16.gmra.mxu0 %v333
  %v372 = vpop.f32.mrf.mxu0
  %v373 = vadd.f32 %v263, %v372
  %v374 = vpop.f32.mrf.mxu0
  %v375 = vpop.f32.mrf.mxu0
  %v376 = vpop.f32.mrf.mxu0
  %377 = vdwg.mxu0
  %v378 = vshrl.u32 %v193, 16
  %v380 = vshll.u32 %v193, 16
  %v382 = vrot.slane %v380, 1
  %v383 = vor.u32 %v378, %v382
  %v385 = vsel %vm220, %v383, 0
  %387 = vmatprep.subr.bf16.mxu0 0
  %388 = vmatpush1.bf16.msra.mxu0 0
  %389 = vmatprep.subr.bf16.mxu0 0
  %390 = vmatpush1.bf16.msra.mxu0 0
  %391 = vmatprep.subr.bf16.mxu0 0
  %392 = vmatpush1.bf16.msra.mxu0 0
  %393 = vmatprep.subr.bf16.mxu0 0
  %394 = vmatpush1.bf16.msra.mxu0 0
  %395 = vmatprep.subr.bf16.mxu0 0
  %396 = vmatpush1.bf16.msra.mxu0 0
  %397 = vmatprep.subr.bf16.mxu0 0
  %398 = vmatpush1.bf16.msra.mxu0 %v336
  %399 = vmatprep.subr.bf16.mxu0 0
  %400 = vmatpush1.bf16.msra.mxu0 %v328
  %401 = vmatprep.subr.bf16.mxu0 0
  %402 = vmatpush1.bf16.msra.mxu0 %v327
  %403 = vmatprep.subr.bf16.mxu0 0
  %404 = vmatpush2.bf16.msra.mxu0 0
  %405 = vmatprep.subr.bf16.mxu0 0
  %406 = vmatpush2.bf16.msra.mxu0 0
  %407 = vmatprep.subr.bf16.mxu0 0
  %408 = vmatpush2.bf16.msra.mxu0 0
  %409 = vmatprep.subr.bf16.mxu0 0
  %410 = vmatpush2.bf16.msra.mxu0 0
  %411 = vmatprep.subr.bf16.mxu0 0
  %412 = vmatpush2.bf16.msra.mxu0 0
  %413 = vmatprep.subr.bf16.mxu0 0
  %414 = vmatpush2.bf16.msra.mxu0 0
  %415 = vmatprep.subr.bf16.mxu0 0
  %416 = vmatpush2.bf16.msra.mxu0 0
  %417 = vmatprep.subr.bf16.mxu0 0
  %418 = vmatpush2.bf16.msra.mxu0 0
  %419 = vmatprep.mubr.bf16.mxu0 0
  %420 = vmatmul.mubr.bf16.gmra.mxu0 %v385
  %v421 = vpop.f32.mrf.mxu0
  %v422 = vadd.f32 %v306, %v421
  %v423 = vpop.f32.mrf.mxu0
  %v424 = vpop.f32.mrf.mxu0
  %v425 = vpop.f32.mrf.mxu0
  %426 = vdwg.mxu0
  %v428 = vlaneseq
  %v429 = vshrl.u32 %v428, 7
  %v430 = vsub.s32 0, %v429
  %v431 = vrot.slane %v189, %v430
  %v433 = vadd.f32 %v373, %v431
  %v434 = vadd.f32 %v422, %v431
  %vm435 = vcmask 125952
  %v436 = vsel %vm435, %v433, 0.0
  %v437 = vsel %vm435, %v434, 0.0
  %v438 = vadd.f32 %v436, %v437
  %v439 = vsel %vm435, %v438, 0.0
  %v440 = vrot.slane %v439, 4
  %v441 = vadd.f32 %v439, %v440
  %v442 = vrot.slane %v441, 2
  %v443 = vadd.f32 %v441, %v442
  %v444 = vrot.slane %v443, 1
  %v445 = vadd.f32 %v443, %v444
  %s446 = scalar_lea.vmem %s3, 40
  %v447 = vld [vmem:[%s446] sm:$0xf]
  %v448 = vld [vmem:[%s446 + $0x4] sm:$0xf]
  %v449 = vld [vmem:[%s446 + $0x8] sm:$0xf]
  %v450 = vld [vmem:[%s446 + $0xc] sm:$0xf]
  %v451 = vld [vmem:[%s446 + $0x10] sm:$0xf]
  %s452 = scalar_lea.vmem %s3, 60
  %v453 = vld [vmem:[%s452] sm:$0xf]
  %v454 = vld [vmem:[%s452 + $0x4] sm:$0xf]
  %v455 = vld [vmem:[%s452 + $0x8] sm:$0xf]
  %v456 = vld [vmem:[%s452 + $0xc] sm:$0xf]
  %v457 = vld [vmem:[%s452 + $0x10] sm:$0xf]
  %459 = vrot.lane.b32.xlu0 %v192, 120
  %v460 = vpop.permute.xlu0 %459
  %v466 = vunpack.c.l.b16 %v453
  %v467 = vunpack.c.l.b16 %v454
  %v468 = vunpack.c.l.b16 %v455
  %v469 = vunpack.c.l.b16 %v456
  %v470 = vunpack.c.l.b16 %v457
  %v471 = vpack.c.b16 %v467, %v466
  %v472 = vpack.c.b16 %v469, %v468
  %v473 = vpack.c.b16 %v470, %v470
  %v477 = vsel %vm220, %v460, 0
  %v480 = vsel %vm224, %v473, 0
  %482 = vmatprep.subr.bf16.mxu0 0
  %483 = vmatpush1.bf16.msra.mxu0 0
  %484 = vmatprep.subr.bf16.mxu0 0
  %485 = vmatpush1.bf16.msra.mxu0 0
  %486 = vmatprep.subr.bf16.mxu0 0
  %487 = vmatpush1.bf16.msra.mxu0 0
  %488 = vmatprep.subr.bf16.mxu0 0
  %489 = vmatpush1.bf16.msra.mxu0 0
  %490 = vmatprep.subr.bf16.mxu0 0
  %491 = vmatpush1.bf16.msra.mxu0 0
  %492 = vmatprep.subr.bf16.mxu0 0
  %493 = vmatpush1.bf16.msra.mxu0 %v480
  %494 = vmatprep.subr.bf16.mxu0 0
  %495 = vmatpush1.bf16.msra.mxu0 %v472
  %496 = vmatprep.subr.bf16.mxu0 0
  %497 = vmatpush1.bf16.msra.mxu0 %v471
  %498 = vmatprep.subr.bf16.mxu0 0
  %499 = vmatpush2.bf16.msra.mxu0 0
  %500 = vmatprep.subr.bf16.mxu0 0
  %501 = vmatpush2.bf16.msra.mxu0 0
  %502 = vmatprep.subr.bf16.mxu0 0
  %503 = vmatpush2.bf16.msra.mxu0 0
  %504 = vmatprep.subr.bf16.mxu0 0
  %505 = vmatpush2.bf16.msra.mxu0 0
  %506 = vmatprep.subr.bf16.mxu0 0
  %507 = vmatpush2.bf16.msra.mxu0 0
  %508 = vmatprep.subr.bf16.mxu0 0
  %509 = vmatpush2.bf16.msra.mxu0 0
  %510 = vmatprep.subr.bf16.mxu0 0
  %511 = vmatpush2.bf16.msra.mxu0 0
  %512 = vmatprep.subr.bf16.mxu0 0
  %513 = vmatpush2.bf16.msra.mxu0 0
  %514 = vmatprep.mubr.bf16.mxu0 0
  %515 = vmatmul.mubr.bf16.gmra.mxu0 %v477
  %v516 = vpop.f32.mrf.mxu0
  %v517 = vadd.f32 0.0, %v516
  %v518 = vpop.f32.mrf.mxu0
  %v519 = vpop.f32.mrf.mxu0
  %v520 = vpop.f32.mrf.mxu0
  %521 = vdwg.mxu0
  %523 = vrot.lane.b32.xlu0 %v193, 120
  %v524 = vpop.permute.xlu0 %523
  %v526 = vsel %vm220, %v524, 0
  %528 = vmatprep.subr.bf16.mxu0 0
  %529 = vmatpush1.bf16.msra.mxu0 0
  %530 = vmatprep.subr.bf16.mxu0 0
  %531 = vmatpush1.bf16.msra.mxu0 0
  %532 = vmatprep.subr.bf16.mxu0 0
  %533 = vmatpush1.bf16.msra.mxu0 0
  %534 = vmatprep.subr.bf16.mxu0 0
  %535 = vmatpush1.bf16.msra.mxu0 0
  %536 = vmatprep.subr.bf16.mxu0 0
  %537 = vmatpush1.bf16.msra.mxu0 0
  %538 = vmatprep.subr.bf16.mxu0 0
  %539 = vmatpush1.bf16.msra.mxu0 %v480
  %540 = vmatprep.subr.bf16.mxu0 0
  %541 = vmatpush1.bf16.msra.mxu0 %v472
  %542 = vmatprep.subr.bf16.mxu0 0
  %543 = vmatpush1.bf16.msra.mxu0 %v471
  %544 = vmatprep.subr.bf16.mxu0 0
  %545 = vmatpush2.bf16.msra.mxu0 0
  %546 = vmatprep.subr.bf16.mxu0 0
  %547 = vmatpush2.bf16.msra.mxu0 0
  %548 = vmatprep.subr.bf16.mxu0 0
  %549 = vmatpush2.bf16.msra.mxu0 0
  %550 = vmatprep.subr.bf16.mxu0 0
  %551 = vmatpush2.bf16.msra.mxu0 0
  %552 = vmatprep.subr.bf16.mxu0 0
  %553 = vmatpush2.bf16.msra.mxu0 0
  %554 = vmatprep.subr.bf16.mxu0 0
  %555 = vmatpush2.bf16.msra.mxu0 0
  %556 = vmatprep.subr.bf16.mxu0 0
  %557 = vmatpush2.bf16.msra.mxu0 0
  %558 = vmatprep.subr.bf16.mxu0 0
  %559 = vmatpush2.bf16.msra.mxu0 0
  %560 = vmatprep.mubr.bf16.mxu0 0
  %561 = vmatmul.mubr.bf16.gmra.mxu0 %v526
  %v562 = vpop.f32.mrf.mxu0
  %v563 = vadd.f32 0.0, %v562
  %v564 = vpop.f32.mrf.mxu0
  %v565 = vpop.f32.mrf.mxu0
  %v566 = vpop.f32.mrf.mxu0
  %567 = vdwg.mxu0
  %568 = vrot.lane.b32.xlu0 %v316, 120
  %v569 = vpop.permute.xlu0 %568
  %v575 = vunpack.c.l.b16 %v447
  %v576 = vunpack.c.l.b16 %v448
  %v577 = vunpack.c.l.b16 %v449
  %v578 = vunpack.c.l.b16 %v450
  %v579 = vunpack.c.l.b16 %v451
  %v580 = vpack.c.b16 %v576, %v575
  %v581 = vpack.c.b16 %v578, %v577
  %v582 = vpack.c.b16 %v579, %v579
  %v586 = vsel %vm220, %v569, 0
  %v589 = vsel %vm224, %v582, 0
  %591 = vmatprep.subr.bf16.mxu0 0
  %592 = vmatpush1.bf16.msra.mxu0 0
  %593 = vmatprep.subr.bf16.mxu0 0
  %594 = vmatpush1.bf16.msra.mxu0 0
  %595 = vmatprep.subr.bf16.mxu0 0
  %596 = vmatpush1.bf16.msra.mxu0 0
  %597 = vmatprep.subr.bf16.mxu0 0
  %598 = vmatpush1.bf16.msra.mxu0 0
  %599 = vmatprep.subr.bf16.mxu0 0
  %600 = vmatpush1.bf16.msra.mxu0 0
  %601 = vmatprep.subr.bf16.mxu0 0
  %602 = vmatpush1.bf16.msra.mxu0 %v589
  %603 = vmatprep.subr.bf16.mxu0 0
  %604 = vmatpush1.bf16.msra.mxu0 %v581
  %605 = vmatprep.subr.bf16.mxu0 0
  %606 = vmatpush1.bf16.msra.mxu0 %v580
  %607 = vmatprep.subr.bf16.mxu0 0
  %608 = vmatpush2.bf16.msra.mxu0 0
  %609 = vmatprep.subr.bf16.mxu0 0
  %610 = vmatpush2.bf16.msra.mxu0 0
  %611 = vmatprep.subr.bf16.mxu0 0
  %612 = vmatpush2.bf16.msra.mxu0 0
  %613 = vmatprep.subr.bf16.mxu0 0
  %614 = vmatpush2.bf16.msra.mxu0 0
  %615 = vmatprep.subr.bf16.mxu0 0
  %616 = vmatpush2.bf16.msra.mxu0 0
  %617 = vmatprep.subr.bf16.mxu0 0
  %618 = vmatpush2.bf16.msra.mxu0 0
  %619 = vmatprep.subr.bf16.mxu0 0
  %620 = vmatpush2.bf16.msra.mxu0 0
  %621 = vmatprep.subr.bf16.mxu0 0
  %622 = vmatpush2.bf16.msra.mxu0 0
  %623 = vmatprep.mubr.bf16.mxu0 0
  %624 = vmatmul.mubr.bf16.gmra.mxu0 %v586
  %v625 = vpop.f32.mrf.mxu0
  %v626 = vadd.f32 %v517, %v625
  %v627 = vpop.f32.mrf.mxu0
  %v628 = vpop.f32.mrf.mxu0
  %v629 = vpop.f32.mrf.mxu0
  %630 = vdwg.mxu0
  %631 = vrot.lane.b32.xlu0 %v383, 120
  %v632 = vpop.permute.xlu0 %631
  %v634 = vsel %vm220, %v632, 0
  %636 = vmatprep.subr.bf16.mxu0 0
  %637 = vmatpush1.bf16.msra.mxu0 0
  %638 = vmatprep.subr.bf16.mxu0 0
  %639 = vmatpush1.bf16.msra.mxu0 0
  %640 = vmatprep.subr.bf16.mxu0 0
  %641 = vmatpush1.bf16.msra.mxu0 0
  %642 = vmatprep.subr.bf16.mxu0 0
  %643 = vmatpush1.bf16.msra.mxu0 0
  %644 = vmatprep.subr.bf16.mxu0 0
  %645 = vmatpush1.bf16.msra.mxu0 0
  %646 = vmatprep.subr.bf16.mxu0 0
  %647 = vmatpush1.bf16.msra.mxu0 %v589
  %648 = vmatprep.subr.bf16.mxu0 0
  %649 = vmatpush1.bf16.msra.mxu0 %v581
  %650 = vmatprep.subr.bf16.mxu0 0
  %651 = vmatpush1.bf16.msra.mxu0 %v580
  %652 = vmatprep.subr.bf16.mxu0 0
  %653 = vmatpush2.bf16.msra.mxu0 0
  %654 = vmatprep.subr.bf16.mxu0 0
  %655 = vmatpush2.bf16.msra.mxu0 0
  %656 = vmatprep.subr.bf16.mxu0 0
  %657 = vmatpush2.bf16.msra.mxu0 0
  %658 = vmatprep.subr.bf16.mxu0 0
  %659 = vmatpush2.bf16.msra.mxu0 0
  %660 = vmatprep.subr.bf16.mxu0 0
  %661 = vmatpush2.bf16.msra.mxu0 0
  %662 = vmatprep.subr.bf16.mxu0 0
  %663 = vmatpush2.bf16.msra.mxu0 0
  %664 = vmatprep.subr.bf16.mxu0 0
  %665 = vmatpush2.bf16.msra.mxu0 0
  %666 = vmatprep.subr.bf16.mxu0 0
  %667 = vmatpush2.bf16.msra.mxu0 0
  %668 = vmatprep.mubr.bf16.mxu0 0
  %669 = vmatmul.mubr.bf16.gmra.mxu0 %v634
  %v670 = vpop.f32.mrf.mxu0
  %v671 = vadd.f32 %v563, %v670
  %v672 = vpop.f32.mrf.mxu0
  %v673 = vpop.f32.mrf.mxu0
  %v674 = vpop.f32.mrf.mxu0
  %675 = vdwg.mxu0
  %v676 = vadd.f32 %v626, %v431
  %v677 = vadd.f32 %v671, %v431
  %v678 = vsel %vm435, %v676, 0.0
  %v679 = vsel %vm435, %v677, 0.0
  %v680 = vadd.f32 %v678, %v679
  %v681 = vsel %vm435, %v680, 0.0
  %v682 = vrot.slane %v681, 4
  %v683 = vadd.f32 %v681, %v682
  %v684 = vrot.slane %v683, 2
  %v685 = vadd.f32 %v683, %v684
  %v686 = vrot.slane %v685, 1
  %v687 = vadd.f32 %v685, %v686
  %v689 = vsel %vm46, %v687, 0
  %691 = vmatprep.subr.mxu0 0.0
  %692 = vmatpush1.msra.mxu0 0.0
  %693 = vmatprep.subr.mxu0 0.0
  %694 = vmatpush1.msra.mxu0 0.0
  %695 = vmatprep.subr.mxu0 0.0
  %696 = vmatpush1.msra.mxu0 0.0
  %697 = vmatprep.subr.mxu0 0.0
  %698 = vmatpush1.msra.mxu0 0.0
  %699 = vmatprep.subr.mxu0 0.0
  %700 = vmatpush1.msra.mxu0 0.0
  %701 = vmatprep.subr.mxu0 0.0
  %702 = vmatpush1.msra.mxu0 0.0
  %703 = vmatprep.subr.mxu0 0.0
  %704 = vmatpush1.msra.mxu0 0.0
  %705 = vmatprep.subr.mxu0 0.0
  %706 = vmatpush1.msra.mxu0 0.0
  %707 = vmatprep.subr.mxu0 0.0
  %708 = vmatpush1.msra.mxu0 0.0
  %709 = vmatprep.subr.mxu0 0.0
  %710 = vmatpush1.msra.mxu0 0.0
  %711 = vmatprep.subr.mxu0 0.0
  %712 = vmatpush1.msra.mxu0 0.0
  %713 = vmatprep.subr.mxu0 0.0
  %714 = vmatpush1.msra.mxu0 0.0
  %715 = vmatprep.subr.mxu0 0.0
  %716 = vmatpush1.msra.mxu0 0.0
  %717 = vmatprep.subr.mxu0 0.0
  %718 = vmatpush1.msra.mxu0 0.0
  %719 = vmatprep.subr.mxu0 0.0
  %720 = vmatpush1.msra.mxu0 %v187
  %721 = vmatprep.subr.mxu0 0.0
  %722 = vmatpush1.msra.mxu0 %v186
  %723 = vmatprep.subr.mxu0 0.0
  %724 = vmatpush2.msra.mxu0 0.0
  %725 = vmatprep.subr.mxu0 0.0
  %726 = vmatpush2.msra.mxu0 0.0
  %727 = vmatprep.subr.mxu0 0.0
  %728 = vmatpush2.msra.mxu0 0.0
  %729 = vmatprep.subr.mxu0 0.0
  %730 = vmatpush2.msra.mxu0 0.0
  %731 = vmatprep.subr.mxu0 0.0
  %732 = vmatpush2.msra.mxu0 0.0
  %733 = vmatprep.subr.mxu0 0.0
  %734 = vmatpush2.msra.mxu0 0.0
  %735 = vmatprep.subr.mxu0 0.0
  %736 = vmatpush2.msra.mxu0 0.0
  %737 = vmatprep.subr.mxu0 0.0
  %738 = vmatpush2.msra.mxu0 0.0
  %739 = vmatprep.subr.mxu0 0.0
  %740 = vmatpush2.msra.mxu0 0.0
  %741 = vmatprep.subr.mxu0 0.0
  %742 = vmatpush2.msra.mxu0 0.0
  %743 = vmatprep.subr.mxu0 0.0
  %744 = vmatpush2.msra.mxu0 0.0
  %745 = vmatprep.subr.mxu0 0.0
  %746 = vmatpush2.msra.mxu0 0.0
  %747 = vmatprep.subr.mxu0 0.0
  %748 = vmatpush2.msra.mxu0 0.0
  %749 = vmatprep.subr.mxu0 0.0
  %750 = vmatpush2.msra.mxu0 0.0
  %751 = vmatprep.subr.mxu0 0.0
  %752 = vmatpush2.msra.mxu0 0.0
  %753 = vmatprep.subr.mxu0 0.0
  %754 = vmatpush2.msra.mxu0 0.0
  %755 = vmatprep.mubr.f32.mxu0 0.0
  %756 = vmatmul.mubr.f32.gmra.mxu0 %v689
  %v757 = vpop.f32.mrf.mxu0
  %v758 = vadd.f32 0.0, %v757
  %v759 = vpop.f32.mrf.mxu0
  %760 = vdwg.mxu0
  %v762 = vsel %vm46, %v445, 0
  %764 = vmatprep.subr.mxu0 0.0
  %765 = vmatpush1.msra.mxu0 0.0
  %766 = vmatprep.subr.mxu0 0.0
  %767 = vmatpush1.msra.mxu0 0.0
  %768 = vmatprep.subr.mxu0 0.0
  %769 = vmatpush1.msra.mxu0 0.0
  %770 = vmatprep.subr.mxu0 0.0
  %771 = vmatpush1.msra.mxu0 0.0
  %772 = vmatprep.subr.mxu0 0.0
  %773 = vmatpush1.msra.mxu0 0.0
  %774 = vmatprep.subr.mxu0 0.0
  %775 = vmatpush1.msra.mxu0 0.0
  %776 = vmatprep.subr.mxu0 0.0
  %777 = vmatpush1.msra.mxu0 0.0
  %778 = vmatprep.subr.mxu0 0.0
  %779 = vmatpush1.msra.mxu0 0.0
  %780 = vmatprep.subr.mxu0 0.0
  %781 = vmatpush1.msra.mxu0 0.0
  %782 = vmatprep.subr.mxu0 0.0
  %783 = vmatpush1.msra.mxu0 0.0
  %784 = vmatprep.subr.mxu0 0.0
  %785 = vmatpush1.msra.mxu0 0.0
  %786 = vmatprep.subr.mxu0 0.0
  %787 = vmatpush1.msra.mxu0 0.0
  %788 = vmatprep.subr.mxu0 0.0
  %789 = vmatpush1.msra.mxu0 0.0
  %790 = vmatprep.subr.mxu0 0.0
  %791 = vmatpush1.msra.mxu0 0.0
  %792 = vmatprep.subr.mxu0 0.0
  %793 = vmatpush1.msra.mxu0 %v187
  %794 = vmatprep.subr.mxu0 0.0
  %795 = vmatpush1.msra.mxu0 %v186
  %796 = vmatprep.subr.mxu0 0.0
  %797 = vmatpush2.msra.mxu0 0.0
  %798 = vmatprep.subr.mxu0 0.0
  %799 = vmatpush2.msra.mxu0 0.0
  %800 = vmatprep.subr.mxu0 0.0
  %801 = vmatpush2.msra.mxu0 0.0
  %802 = vmatprep.subr.mxu0 0.0
  %803 = vmatpush2.msra.mxu0 0.0
  %804 = vmatprep.subr.mxu0 0.0
  %805 = vmatpush2.msra.mxu0 0.0
  %806 = vmatprep.subr.mxu0 0.0
  %807 = vmatpush2.msra.mxu0 0.0
  %808 = vmatprep.subr.mxu0 0.0
  %809 = vmatpush2.msra.mxu0 0.0
  %810 = vmatprep.subr.mxu0 0.0
  %811 = vmatpush2.msra.mxu0 0.0
  %812 = vmatprep.subr.mxu0 0.0
  %813 = vmatpush2.msra.mxu0 0.0
  %814 = vmatprep.subr.mxu0 0.0
  %815 = vmatpush2.msra.mxu0 0.0
  %816 = vmatprep.subr.mxu0 0.0
  %817 = vmatpush2.msra.mxu0 0.0
  %818 = vmatprep.subr.mxu0 0.0
  %819 = vmatpush2.msra.mxu0 0.0
  %820 = vmatprep.subr.mxu0 0.0
  %821 = vmatpush2.msra.mxu0 0.0
  %822 = vmatprep.subr.mxu0 0.0
  %823 = vmatpush2.msra.mxu0 0.0
  %824 = vmatprep.subr.mxu0 0.0
  %825 = vmatpush2.msra.mxu0 0.0
  %826 = vmatprep.subr.mxu0 0.0
  %827 = vmatpush2.msra.mxu0 0.0
  %828 = vmatprep.mubr.f32.mxu0 0.0
  %829 = vmatmul.mubr.f32.gmra.mxu0 %v762
  %v830 = vpop.f32.mrf.mxu0
  %v831 = vadd.f32 %v758, %v830
  %v832 = vpop.f32.mrf.mxu0
  %833 = vdwg.mxu0
  %s834 = scalar_lea.vmem %s3, 80
  %v835 = vld [vmem:[%s834] sm:$0xf]
  %v836 = vld [vmem:[%s834 + $0x4] sm:$0xf]
  %v837 = vld [vmem:[%s834 + $0x8] sm:$0xf]
  %v838 = vld [vmem:[%s834 + $0xc] sm:$0xf]
  %v839 = vld [vmem:[%s834 + $0x10] sm:$0xf]
  %s840 = scalar_lea.vmem %s3, 100
  %v841 = vld [vmem:[%s840] sm:$0xf]
  %v842 = vld [vmem:[%s840 + $0x4] sm:$0xf]
  %v843 = vld [vmem:[%s840 + $0x8] sm:$0xf]
  %v844 = vld [vmem:[%s840 + $0xc] sm:$0xf]
  %v845 = vld [vmem:[%s840 + $0x10] sm:$0xf]
  %v851 = vunpack.c.l.b16 %v841
  %v852 = vunpack.c.l.b16 %v842
  %v853 = vunpack.c.l.b16 %v843
  %v854 = vunpack.c.l.b16 %v844
  %v855 = vunpack.c.l.b16 %v845
  %v856 = vpack.c.b16 %v852, %v851
  %v857 = vpack.c.b16 %v854, %v853
  %v858 = vpack.c.b16 %v855, %v855
  %v862 = vsel %vm224, %v858, 0
  %864 = vmatprep.subr.bf16.mxu0 0
  %865 = vmatpush1.bf16.msra.mxu0 0
  %866 = vmatprep.subr.bf16.mxu0 0
  %867 = vmatpush1.bf16.msra.mxu0 0
  %868 = vmatprep.subr.bf16.mxu0 0
  %869 = vmatpush1.bf16.msra.mxu0 0
  %870 = vmatprep.subr.bf16.mxu0 0
  %871 = vmatpush1.bf16.msra.mxu0 0
  %872 = vmatprep.subr.bf16.mxu0 0
  %873 = vmatpush1.bf16.msra.mxu0 0
  %874 = vmatprep.subr.bf16.mxu0 0
  %875 = vmatpush1.bf16.msra.mxu0 %v862
  %876 = vmatprep.subr.bf16.mxu0 0
  %877 = vmatpush1.bf16.msra.mxu0 %v857
  %878 = vmatprep.subr.bf16.mxu0 0
  %879 = vmatpush1.bf16.msra.mxu0 %v856
  %880 = vmatprep.subr.bf16.mxu0 0
  %881 = vmatpush2.bf16.msra.mxu0 0
  %882 = vmatprep.subr.bf16.mxu0 0
  %883 = vmatpush2.bf16.msra.mxu0 0
  %884 = vmatprep.subr.bf16.mxu0 0
  %885 = vmatpush2.bf16.msra.mxu0 0
  %886 = vmatprep.subr.bf16.mxu0 0
  %887 = vmatpush2.bf16.msra.mxu0 0
  %888 = vmatprep.subr.bf16.mxu0 0
  %889 = vmatpush2.bf16.msra.mxu0 0
  %890 = vmatprep.subr.bf16.mxu0 0
  %891 = vmatpush2.bf16.msra.mxu0 0
  %892 = vmatprep.subr.bf16.mxu0 0
  %893 = vmatpush2.bf16.msra.mxu0 0
  %894 = vmatprep.subr.bf16.mxu0 0
  %895 = vmatpush2.bf16.msra.mxu0 0
  %896 = vmatprep.mubr.bf16.mxu0 0
  %897 = vmatmul.mubr.bf16.gmra.mxu0 %v333
  %v898 = vpop.f32.mrf.mxu0
  %v899 = vadd.f32 0.0, %v898
  %v900 = vpop.f32.mrf.mxu0
  %v901 = vpop.f32.mrf.mxu0
  %v902 = vpop.f32.mrf.mxu0
  %903 = vdwg.mxu0
  %904 = vmatprep.subr.bf16.mxu0 0
  %905 = vmatpush1.bf16.msra.mxu0 0
  %906 = vmatprep.subr.bf16.mxu0 0
  %907 = vmatpush1.bf16.msra.mxu0 0
  %908 = vmatprep.subr.bf16.mxu0 0
  %909 = vmatpush1.bf16.msra.mxu0 0
  %910 = vmatprep.subr.bf16.mxu0 0
  %911 = vmatpush1.bf16.msra.mxu0 0
  %912 = vmatprep.subr.bf16.mxu0 0
  %913 = vmatpush1.bf16.msra.mxu0 0
  %914 = vmatprep.subr.bf16.mxu0 0
  %915 = vmatpush1.bf16.msra.mxu0 %v862
  %916 = vmatprep.subr.bf16.mxu0 0
  %917 = vmatpush1.bf16.msra.mxu0 %v857
  %918 = vmatprep.subr.bf16.mxu0 0
  %919 = vmatpush1.bf16.msra.mxu0 %v856
  %920 = vmatprep.subr.bf16.mxu0 0
  %921 = vmatpush2.bf16.msra.mxu0 0
  %922 = vmatprep.subr.bf16.mxu0 0
  %923 = vmatpush2.bf16.msra.mxu0 0
  %924 = vmatprep.subr.bf16.mxu0 0
  %925 = vmatpush2.bf16.msra.mxu0 0
  %926 = vmatprep.subr.bf16.mxu0 0
  %927 = vmatpush2.bf16.msra.mxu0 0
  %928 = vmatprep.subr.bf16.mxu0 0
  %929 = vmatpush2.bf16.msra.mxu0 0
  %930 = vmatprep.subr.bf16.mxu0 0
  %931 = vmatpush2.bf16.msra.mxu0 0
  %932 = vmatprep.subr.bf16.mxu0 0
  %933 = vmatpush2.bf16.msra.mxu0 0
  %934 = vmatprep.subr.bf16.mxu0 0
  %935 = vmatpush2.bf16.msra.mxu0 0
  %936 = vmatprep.mubr.bf16.mxu0 0
  %937 = vmatmul.mubr.bf16.gmra.mxu0 %v385
  %v938 = vpop.f32.mrf.mxu0
  %v939 = vadd.f32 0.0, %v938
  %v940 = vpop.f32.mrf.mxu0
  %v941 = vpop.f32.mrf.mxu0
  %v942 = vpop.f32.mrf.mxu0
  %943 = vdwg.mxu0
  %v944 = vrot.slane %v192, 1
  %v950 = vunpack.c.l.b16 %v835
  %v951 = vunpack.c.l.b16 %v836
  %v952 = vunpack.c.l.b16 %v837
  %v953 = vunpack.c.l.b16 %v838
  %v954 = vunpack.c.l.b16 %v839
  %v955 = vpack.c.b16 %v951, %v950
  %v956 = vpack.c.b16 %v953, %v952
  %v957 = vpack.c.b16 %v954, %v954
  %v961 = vsel %vm220, %v944, 0
  %v964 = vsel %vm224, %v957, 0
  %966 = vmatprep.subr.bf16.mxu0 0
  %967 = vmatpush1.bf16.msra.mxu0 0
  %968 = vmatprep.subr.bf16.mxu0 0
  %969 = vmatpush1.bf16.msra.mxu0 0
  %970 = vmatprep.subr.bf16.mxu0 0
  %971 = vmatpush1.bf16.msra.mxu0 0
  %972 = vmatprep.subr.bf16.mxu0 0
  %973 = vmatpush1.bf16.msra.mxu0 0
  %974 = vmatprep.subr.bf16.mxu0 0
  %975 = vmatpush1.bf16.msra.mxu0 0
  %976 = vmatprep.subr.bf16.mxu0 0
  %977 = vmatpush1.bf16.msra.mxu0 %v964
  %978 = vmatprep.subr.bf16.mxu0 0
  %979 = vmatpush1.bf16.msra.mxu0 %v956
  %980 = vmatprep.subr.bf16.mxu0 0
  %981 = vmatpush1.bf16.msra.mxu0 %v955
  %982 = vmatprep.subr.bf16.mxu0 0
  %983 = vmatpush2.bf16.msra.mxu0 0
  %984 = vmatprep.subr.bf16.mxu0 0
  %985 = vmatpush2.bf16.msra.mxu0 0
  %986 = vmatprep.subr.bf16.mxu0 0
  %987 = vmatpush2.bf16.msra.mxu0 0
  %988 = vmatprep.subr.bf16.mxu0 0
  %989 = vmatpush2.bf16.msra.mxu0 0
  %990 = vmatprep.subr.bf16.mxu0 0
  %991 = vmatpush2.bf16.msra.mxu0 0
  %992 = vmatprep.subr.bf16.mxu0 0
  %993 = vmatpush2.bf16.msra.mxu0 0
  %994 = vmatprep.subr.bf16.mxu0 0
  %995 = vmatpush2.bf16.msra.mxu0 0
  %996 = vmatprep.subr.bf16.mxu0 0
  %997 = vmatpush2.bf16.msra.mxu0 0
  %998 = vmatprep.mubr.bf16.mxu0 0
  %999 = vmatmul.mubr.bf16.gmra.mxu0 %v961
  %v1000 = vpop.f32.mrf.mxu0
  %v1001 = vadd.f32 %v899, %v1000
  %v1002 = vpop.f32.mrf.mxu0
  %v1003 = vpop.f32.mrf.mxu0
  %v1004 = vpop.f32.mrf.mxu0
  %1005 = vdwg.mxu0
  %v1006 = vrot.slane %v193, 1
  %v1008 = vsel %vm220, %v1006, 0
  %1010 = vmatprep.subr.bf16.mxu0 0
  %1011 = vmatpush1.bf16.msra.mxu0 0
  %1012 = vmatprep.subr.bf16.mxu0 0
  %1013 = vmatpush1.bf16.msra.mxu0 0
  %1014 = vmatprep.subr.bf16.mxu0 0
  %1015 = vmatpush1.bf16.msra.mxu0 0
  %1016 = vmatprep.subr.bf16.mxu0 0
  %1017 = vmatpush1.bf16.msra.mxu0 0
  %1018 = vmatprep.subr.bf16.mxu0 0
  %1019 = vmatpush1.bf16.msra.mxu0 0
  %1020 = vmatprep.subr.bf16.mxu0 0
  %1021 = vmatpush1.bf16.msra.mxu0 %v964
  %1022 = vmatprep.subr.bf16.mxu0 0
  %1023 = vmatpush1.bf16.msra.mxu0 %v956
  %1024 = vmatprep.subr.bf16.mxu0 0
  %1025 = vmatpush1.bf16.msra.mxu0 %v955
  %1026 = vmatprep.subr.bf16.mxu0 0
  %1027 = vmatpush2.bf16.msra.mxu0 0
  %1028 = vmatprep.subr.bf16.mxu0 0
  %1029 = vmatpush2.bf16.msra.mxu0 0
  %1030 = vmatprep.subr.bf16.mxu0 0
  %1031 = vmatpush2.bf16.msra.mxu0 0
  %1032 = vmatprep.subr.bf16.mxu0 0
  %1033 = vmatpush2.bf16.msra.mxu0 0
  %1034 = vmatprep.subr.bf16.mxu0 0
  %1035 = vmatpush2.bf16.msra.mxu0 0
  %1036 = vmatprep.subr.bf16.mxu0 0
  %1037 = vmatpush2.bf16.msra.mxu0 0
  %1038 = vmatprep.subr.bf16.mxu0 0
  %1039 = vmatpush2.bf16.msra.mxu0 0
  %1040 = vmatprep.subr.bf16.mxu0 0
  %1041 = vmatpush2.bf16.msra.mxu0 0
  %1042 = vmatprep.mubr.bf16.mxu0 0
  %1043 = vmatmul.mubr.bf16.gmra.mxu0 %v1008
  %v1044 = vpop.f32.mrf.mxu0
  %v1045 = vadd.f32 %v939, %v1044
  %v1046 = vpop.f32.mrf.mxu0
  %v1047 = vpop.f32.mrf.mxu0
  %v1048 = vpop.f32.mrf.mxu0
  %1049 = vdwg.mxu0
  %v1050 = vadd.f32 %v1001, %v431
  %v1051 = vadd.f32 %v1045, %v431
  %v1052 = vsel %vm435, %v1050, 0.0
  %v1053 = vsel %vm435, %v1051, 0.0
  %v1054 = vadd.f32 %v1052, %v1053
  %v1055 = vsel %vm435, %v1054, 0.0
  %v1056 = vrot.slane %v1055, 4
  %v1057 = vadd.f32 %v1055, %v1056
  %v1058 = vrot.slane %v1057, 2
  %v1059 = vadd.f32 %v1057, %v1058
  %v1060 = vrot.slane %v1059, 1
  %v1061 = vadd.f32 %v1059, %v1060
  %v1063 = vsel %vm46, %v1061, 0
  %1065 = vmatprep.subr.mxu0 0.0
  %1066 = vmatpush1.msra.mxu0 0.0
  %1067 = vmatprep.subr.mxu0 0.0
  %1068 = vmatpush1.msra.mxu0 0.0
  %1069 = vmatprep.subr.mxu0 0.0
  %1070 = vmatpush1.msra.mxu0 0.0
  %1071 = vmatprep.subr.mxu0 0.0
  %1072 = vmatpush1.msra.mxu0 0.0
  %1073 = vmatprep.subr.mxu0 0.0
  %1074 = vmatpush1.msra.mxu0 0.0
  %1075 = vmatprep.subr.mxu0 0.0
  %1076 = vmatpush1.msra.mxu0 0.0
  %1077 = vmatprep.subr.mxu0 0.0
  %1078 = vmatpush1.msra.mxu0 0.0
  %1079 = vmatprep.subr.mxu0 0.0
  %1080 = vmatpush1.msra.mxu0 0.0
  %1081 = vmatprep.subr.mxu0 0.0
  %1082 = vmatpush1.msra.mxu0 0.0
  %1083 = vmatprep.subr.mxu0 0.0
  %1084 = vmatpush1.msra.mxu0 0.0
  %1085 = vmatprep.subr.mxu0 0.0
  %1086 = vmatpush1.msra.mxu0 0.0
  %1087 = vmatprep.subr.mxu0 0.0
  %1088 = vmatpush1.msra.mxu0 0.0
  %1089 = vmatprep.subr.mxu0 0.0
  %1090 = vmatpush1.msra.mxu0 0.0
  %1091 = vmatprep.subr.mxu0 0.0
  %1092 = vmatpush1.msra.mxu0 0.0
  %1093 = vmatprep.subr.mxu0 0.0
  %1094 = vmatpush1.msra.mxu0 %v187
  %1095 = vmatprep.subr.mxu0 0.0
  %1096 = vmatpush1.msra.mxu0 %v186
  %1097 = vmatprep.subr.mxu0 0.0
  %1098 = vmatpush2.msra.mxu0 0.0
  %1099 = vmatprep.subr.mxu0 0.0
  %1100 = vmatpush2.msra.mxu0 0.0
  %1101 = vmatprep.subr.mxu0 0.0
  %1102 = vmatpush2.msra.mxu0 0.0
  %1103 = vmatprep.subr.mxu0 0.0
  %1104 = vmatpush2.msra.mxu0 0.0
  %1105 = vmatprep.subr.mxu0 0.0
  %1106 = vmatpush2.msra.mxu0 0.0
  %1107 = vmatprep.subr.mxu0 0.0
  %1108 = vmatpush2.msra.mxu0 0.0
  %1109 = vmatprep.subr.mxu0 0.0
  %1110 = vmatpush2.msra.mxu0 0.0
  %1111 = vmatprep.subr.mxu0 0.0
  %1112 = vmatpush2.msra.mxu0 0.0
  %1113 = vmatprep.subr.mxu0 0.0
  %1114 = vmatpush2.msra.mxu0 0.0
  %1115 = vmatprep.subr.mxu0 0.0
  %1116 = vmatpush2.msra.mxu0 0.0
  %1117 = vmatprep.subr.mxu0 0.0
  %1118 = vmatpush2.msra.mxu0 0.0
  %1119 = vmatprep.subr.mxu0 0.0
  %1120 = vmatpush2.msra.mxu0 0.0
  %1121 = vmatprep.subr.mxu0 0.0
  %1122 = vmatpush2.msra.mxu0 0.0
  %1123 = vmatprep.subr.mxu0 0.0
  %1124 = vmatpush2.msra.mxu0 0.0
  %1125 = vmatprep.subr.mxu0 0.0
  %1126 = vmatpush2.msra.mxu0 0.0
  %1127 = vmatprep.subr.mxu0 0.0
  %1128 = vmatpush2.msra.mxu0 0.0
  %1129 = vmatprep.mubr.f32.mxu0 0.0
  %1130 = vmatmul.mubr.f32.gmra.mxu0 %v1063
  %v1131 = vpop.f32.mrf.mxu0
  %v1132 = vadd.f32 0.0, %v1131
  %v1133 = vpop.f32.mrf.mxu0
  %1134 = vdwg.mxu0
  %v1135 = vadd.f32 %v831, %v1132
  %s1136 = scalar_lea.vmem %s3, 120
  %v1137 = vld [vmem:[%s1136] sm:$0xf]
  %v1138 = vld [vmem:[%s1136 + $0x4] sm:$0xf]
  %v1139 = vld [vmem:[%s1136 + $0x8] sm:$0xf]
  %v1140 = vld [vmem:[%s1136 + $0xc] sm:$0xf]
  %v1141 = vld [vmem:[%s1136 + $0x10] sm:$0xf]
  %s1142 = scalar_lea.vmem %s3, 140
  %v1143 = vld [vmem:[%s1142] sm:$0xf]
  %v1144 = vld [vmem:[%s1142 + $0x4] sm:$0xf]
  %v1145 = vld [vmem:[%s1142 + $0x8] sm:$0xf]
  %v1146 = vld [vmem:[%s1142 + $0xc] sm:$0xf]
  %v1147 = vld [vmem:[%s1142 + $0x10] sm:$0xf]
  %v1153 = vunpack.c.l.b16 %v1143
  %v1154 = vunpack.c.l.b16 %v1144
  %v1155 = vunpack.c.l.b16 %v1145
  %v1156 = vunpack.c.l.b16 %v1146
  %v1157 = vunpack.c.l.b16 %v1147
  %v1158 = vpack.c.b16 %v1154, %v1153
  %v1159 = vpack.c.b16 %v1156, %v1155
  %v1160 = vpack.c.b16 %v1157, %v1157
  %v1164 = vsel %vm224, %v1160, 0
  %1166 = vmatprep.subr.bf16.mxu0 0
  %1167 = vmatpush1.bf16.msra.mxu0 0
  %1168 = vmatprep.subr.bf16.mxu0 0
  %1169 = vmatpush1.bf16.msra.mxu0 0
  %1170 = vmatprep.subr.bf16.mxu0 0
  %1171 = vmatpush1.bf16.msra.mxu0 0
  %1172 = vmatprep.subr.bf16.mxu0 0
  %1173 = vmatpush1.bf16.msra.mxu0 0
  %1174 = vmatprep.subr.bf16.mxu0 0
  %1175 = vmatpush1.bf16.msra.mxu0 0
  %1176 = vmatprep.subr.bf16.mxu0 0
  %1177 = vmatpush1.bf16.msra.mxu0 %v1164
  %1178 = vmatprep.subr.bf16.mxu0 0
  %1179 = vmatpush1.bf16.msra.mxu0 %v1159
  %1180 = vmatprep.subr.bf16.mxu0 0
  %1181 = vmatpush1.bf16.msra.mxu0 %v1158
  %1182 = vmatprep.subr.bf16.mxu0 0
  %1183 = vmatpush2.bf16.msra.mxu0 0
  %1184 = vmatprep.subr.bf16.mxu0 0
  %1185 = vmatpush2.bf16.msra.mxu0 0
  %1186 = vmatprep.subr.bf16.mxu0 0
  %1187 = vmatpush2.bf16.msra.mxu0 0
  %1188 = vmatprep.subr.bf16.mxu0 0
  %1189 = vmatpush2.bf16.msra.mxu0 0
  %1190 = vmatprep.subr.bf16.mxu0 0
  %1191 = vmatpush2.bf16.msra.mxu0 0
  %1192 = vmatprep.subr.bf16.mxu0 0
  %1193 = vmatpush2.bf16.msra.mxu0 0
  %1194 = vmatprep.subr.bf16.mxu0 0
  %1195 = vmatpush2.bf16.msra.mxu0 0
  %1196 = vmatprep.subr.bf16.mxu0 0
  %1197 = vmatpush2.bf16.msra.mxu0 0
  %1198 = vmatprep.mubr.bf16.mxu0 0
  %1199 = vmatmul.mubr.bf16.gmra.mxu0 %v586
  %v1200 = vpop.f32.mrf.mxu0
  %v1201 = vadd.f32 0.0, %v1200
  %v1202 = vpop.f32.mrf.mxu0
  %v1203 = vpop.f32.mrf.mxu0
  %v1204 = vpop.f32.mrf.mxu0
  %1205 = vdwg.mxu0
  %1206 = vmatprep.subr.bf16.mxu0 0
  %1207 = vmatpush1.bf16.msra.mxu0 0
  %1208 = vmatprep.subr.bf16.mxu0 0
  %1209 = vmatpush1.bf16.msra.mxu0 0
  %1210 = vmatprep.subr.bf16.mxu0 0
  %1211 = vmatpush1.bf16.msra.mxu0 0
  %1212 = vmatprep.subr.bf16.mxu0 0
  %1213 = vmatpush1.bf16.msra.mxu0 0
  %1214 = vmatprep.subr.bf16.mxu0 0
  %1215 = vmatpush1.bf16.msra.mxu0 0
  %1216 = vmatprep.subr.bf16.mxu0 0
  %1217 = vmatpush1.bf16.msra.mxu0 %v1164
  %1218 = vmatprep.subr.bf16.mxu0 0
  %1219 = vmatpush1.bf16.msra.mxu0 %v1159
  %1220 = vmatprep.subr.bf16.mxu0 0
  %1221 = vmatpush1.bf16.msra.mxu0 %v1158
  %1222 = vmatprep.subr.bf16.mxu0 0
  %1223 = vmatpush2.bf16.msra.mxu0 0
  %1224 = vmatprep.subr.bf16.mxu0 0
  %1225 = vmatpush2.bf16.msra.mxu0 0
  %1226 = vmatprep.subr.bf16.mxu0 0
  %1227 = vmatpush2.bf16.msra.mxu0 0
  %1228 = vmatprep.subr.bf16.mxu0 0
  %1229 = vmatpush2.bf16.msra.mxu0 0
  %1230 = vmatprep.subr.bf16.mxu0 0
  %1231 = vmatpush2.bf16.msra.mxu0 0
  %1232 = vmatprep.subr.bf16.mxu0 0
  %1233 = vmatpush2.bf16.msra.mxu0 0
  %1234 = vmatprep.subr.bf16.mxu0 0
  %1235 = vmatpush2.bf16.msra.mxu0 0
  %1236 = vmatprep.subr.bf16.mxu0 0
  %1237 = vmatpush2.bf16.msra.mxu0 0
  %1238 = vmatprep.mubr.bf16.mxu0 0
  %1239 = vmatmul.mubr.bf16.gmra.mxu0 %v634
  %v1240 = vpop.f32.mrf.mxu0
  %v1241 = vadd.f32 0.0, %v1240
  %v1242 = vpop.f32.mrf.mxu0
  %v1243 = vpop.f32.mrf.mxu0
  %v1244 = vpop.f32.mrf.mxu0
  %1245 = vdwg.mxu0
  %1246 = vrot.lane.b32.xlu0 %v944, 120
  %v1247 = vpop.permute.xlu0 %1246
  %v1253 = vunpack.c.l.b16 %v1137
  %v1254 = vunpack.c.l.b16 %v1138
  %v1255 = vunpack.c.l.b16 %v1139
  %v1256 = vunpack.c.l.b16 %v1140
  %v1257 = vunpack.c.l.b16 %v1141
  %v1258 = vpack.c.b16 %v1254, %v1253
  %v1259 = vpack.c.b16 %v1256, %v1255
  %v1260 = vpack.c.b16 %v1257, %v1257
  %v1264 = vsel %vm220, %v1247, 0
  %v1267 = vsel %vm224, %v1260, 0
  %1269 = vmatprep.subr.bf16.mxu0 0
  %1270 = vmatpush1.bf16.msra.mxu0 0
  %1271 = vmatprep.subr.bf16.mxu0 0
  %1272 = vmatpush1.bf16.msra.mxu0 0
  %1273 = vmatprep.subr.bf16.mxu0 0
  %1274 = vmatpush1.bf16.msra.mxu0 0
  %1275 = vmatprep.subr.bf16.mxu0 0
  %1276 = vmatpush1.bf16.msra.mxu0 0
  %1277 = vmatprep.subr.bf16.mxu0 0
  %1278 = vmatpush1.bf16.msra.mxu0 0
  %1279 = vmatprep.subr.bf16.mxu0 0
  %1280 = vmatpush1.bf16.msra.mxu0 %v1267
  %1281 = vmatprep.subr.bf16.mxu0 0
  %1282 = vmatpush1.bf16.msra.mxu0 %v1259
  %1283 = vmatprep.subr.bf16.mxu0 0
  %1284 = vmatpush1.bf16.msra.mxu0 %v1258
  %1285 = vmatprep.subr.bf16.mxu0 0
  %1286 = vmatpush2.bf16.msra.mxu0 0
  %1287 = vmatprep.subr.bf16.mxu0 0
  %1288 = vmatpush2.bf16.msra.mxu0 0
  %1289 = vmatprep.subr.bf16.mxu0 0
  %1290 = vmatpush2.bf16.msra.mxu0 0
  %1291 = vmatprep.subr.bf16.mxu0 0
  %1292 = vmatpush2.bf16.msra.mxu0 0
  %1293 = vmatprep.subr.bf16.mxu0 0
  %1294 = vmatpush2.bf16.msra.mxu0 0
  %1295 = vmatprep.subr.bf16.mxu0 0
  %1296 = vmatpush2.bf16.msra.mxu0 0
  %1297 = vmatprep.subr.bf16.mxu0 0
  %1298 = vmatpush2.bf16.msra.mxu0 0
  %1299 = vmatprep.subr.bf16.mxu0 0
  %1300 = vmatpush2.bf16.msra.mxu0 0
  %1301 = vmatprep.mubr.bf16.mxu0 0
  %1302 = vmatmul.mubr.bf16.gmra.mxu0 %v1264
  %v1303 = vpop.f32.mrf.mxu0
  %v1304 = vadd.f32 %v1201, %v1303
  %v1305 = vpop.f32.mrf.mxu0
  %v1306 = vpop.f32.mrf.mxu0
  %v1307 = vpop.f32.mrf.mxu0
  %1308 = vdwg.mxu0
  %1309 = vrot.lane.b32.xlu0 %v1006, 120
  %v1310 = vpop.permute.xlu0 %1309
  %v1312 = vsel %vm220, %v1310, 0
  %1314 = vmatprep.subr.bf16.mxu0 0
  %1315 = vmatpush1.bf16.msra.mxu0 0
  %1316 = vmatprep.subr.bf16.mxu0 0
  %1317 = vmatpush1.bf16.msra.mxu0 0
  %1318 = vmatprep.subr.bf16.mxu0 0
  %1319 = vmatpush1.bf16.msra.mxu0 0
  %1320 = vmatprep.subr.bf16.mxu0 0
  %1321 = vmatpush1.bf16.msra.mxu0 0
  %1322 = vmatprep.subr.bf16.mxu0 0
  %1323 = vmatpush1.bf16.msra.mxu0 0
  %1324 = vmatprep.subr.bf16.mxu0 0
  %1325 = vmatpush1.bf16.msra.mxu0 %v1267
  %1326 = vmatprep.subr.bf16.mxu0 0
  %1327 = vmatpush1.bf16.msra.mxu0 %v1259
  %1328 = vmatprep.subr.bf16.mxu0 0
  %1329 = vmatpush1.bf16.msra.mxu0 %v1258
  %1330 = vmatprep.subr.bf16.mxu0 0
  %1331 = vmatpush2.bf16.msra.mxu0 0
  %1332 = vmatprep.subr.bf16.mxu0 0
  %1333 = vmatpush2.bf16.msra.mxu0 0
  %1334 = vmatprep.subr.bf16.mxu0 0
  %1335 = vmatpush2.bf16.msra.mxu0 0
  %1336 = vmatprep.subr.bf16.mxu0 0
  %1337 = vmatpush2.bf16.msra.mxu0 0
  %1338 = vmatprep.subr.bf16.mxu0 0
  %1339 = vmatpush2.bf16.msra.mxu0 0
  %1340 = vmatprep.subr.bf16.mxu0 0
  %1341 = vmatpush2.bf16.msra.mxu0 0
  %1342 = vmatprep.subr.bf16.mxu0 0
  %1343 = vmatpush2.bf16.msra.mxu0 0
  %1344 = vmatprep.subr.bf16.mxu0 0
  %1345 = vmatpush2.bf16.msra.mxu0 0
  %1346 = vmatprep.mubr.bf16.mxu0 0
  %1347 = vmatmul.mubr.bf16.gmra.mxu0 %v1312
  %v1348 = vpop.f32.mrf.mxu0
  %v1349 = vadd.f32 %v1241, %v1348
  %v1350 = vpop.f32.mrf.mxu0
  %v1351 = vpop.f32.mrf.mxu0
  %v1352 = vpop.f32.mrf.mxu0
  %1353 = vdwg.mxu0
  %v1354 = vadd.f32 %v1304, %v431
  %v1355 = vadd.f32 %v1349, %v431
  %v1356 = vsel %vm435, %v1354, 0.0
  %v1357 = vsel %vm435, %v1355, 0.0
  %v1358 = vadd.f32 %v1356, %v1357
  %v1359 = vsel %vm435, %v1358, 0.0
  %v1360 = vrot.slane %v1359, 4
  %v1361 = vadd.f32 %v1359, %v1360
  %v1362 = vrot.slane %v1361, 2
  %v1363 = vadd.f32 %v1361, %v1362
  %v1364 = vrot.slane %v1363, 1
  %v1365 = vadd.f32 %v1363, %v1364
  %v1367 = vsel %vm46, %v1365, 0
  %1369 = vmatprep.subr.mxu0 0.0
  %1370 = vmatpush1.msra.mxu0 0.0
  %1371 = vmatprep.subr.mxu0 0.0
  %1372 = vmatpush1.msra.mxu0 0.0
  %1373 = vmatprep.subr.mxu0 0.0
  %1374 = vmatpush1.msra.mxu0 0.0
  %1375 = vmatprep.subr.mxu0 0.0
  %1376 = vmatpush1.msra.mxu0 0.0
  %1377 = vmatprep.subr.mxu0 0.0
  %1378 = vmatpush1.msra.mxu0 0.0
  %1379 = vmatprep.subr.mxu0 0.0
  %1380 = vmatpush1.msra.mxu0 0.0
  %1381 = vmatprep.subr.mxu0 0.0
  %1382 = vmatpush1.msra.mxu0 0.0
  %1383 = vmatprep.subr.mxu0 0.0
  %1384 = vmatpush1.msra.mxu0 0.0
  %1385 = vmatprep.subr.mxu0 0.0
  %1386 = vmatpush1.msra.mxu0 0.0
  %1387 = vmatprep.subr.mxu0 0.0
  %1388 = vmatpush1.msra.mxu0 0.0
  %1389 = vmatprep.subr.mxu0 0.0
  %1390 = vmatpush1.msra.mxu0 0.0
  %1391 = vmatprep.subr.mxu0 0.0
  %1392 = vmatpush1.msra.mxu0 0.0
  %1393 = vmatprep.subr.mxu0 0.0
  %1394 = vmatpush1.msra.mxu0 0.0
  %1395 = vmatprep.subr.mxu0 0.0
  %1396 = vmatpush1.msra.mxu0 0.0
  %1397 = vmatprep.subr.mxu0 0.0
  %1398 = vmatpush1.msra.mxu0 %v187
  %1399 = vmatprep.subr.mxu0 0.0
  %1400 = vmatpush1.msra.mxu0 %v186
  %1401 = vmatprep.subr.mxu0 0.0
  %1402 = vmatpush2.msra.mxu0 0.0
  %1403 = vmatprep.subr.mxu0 0.0
  %1404 = vmatpush2.msra.mxu0 0.0
  %1405 = vmatprep.subr.mxu0 0.0
  %1406 = vmatpush2.msra.mxu0 0.0
  %1407 = vmatprep.subr.mxu0 0.0
  %1408 = vmatpush2.msra.mxu0 0.0
  %1409 = vmatprep.subr.mxu0 0.0
  %1410 = vmatpush2.msra.mxu0 0.0
  %1411 = vmatprep.subr.mxu0 0.0
  %1412 = vmatpush2.msra.mxu0 0.0
  %1413 = vmatprep.subr.mxu0 0.0
  %1414 = vmatpush2.msra.mxu0 0.0
  %1415 = vmatprep.subr.mxu0 0.0
  %1416 = vmatpush2.msra.mxu0 0.0
  %1417 = vmatprep.subr.mxu0 0.0
  %1418 = vmatpush2.msra.mxu0 0.0
  %1419 = vmatprep.subr.mxu0 0.0
  %1420 = vmatpush2.msra.mxu0 0.0
  %1421 = vmatprep.subr.mxu0 0.0
  %1422 = vmatpush2.msra.mxu0 0.0
  %1423 = vmatprep.subr.mxu0 0.0
  %1424 = vmatpush2.msra.mxu0 0.0
  %1425 = vmatprep.subr.mxu0 0.0
  %1426 = vmatpush2.msra.mxu0 0.0
  %1427 = vmatprep.subr.mxu0 0.0
  %1428 = vmatpush2.msra.mxu0 0.0
  %1429 = vmatprep.subr.mxu0 0.0
  %1430 = vmatpush2.msra.mxu0 0.0
  %1431 = vmatprep.subr.mxu0 0.0
  %1432 = vmatpush2.msra.mxu0 0.0
  %1433 = vmatprep.mubr.f32.mxu0 0.0
  %1434 = vmatmul.mubr.f32.gmra.mxu0 %v1367
  %v1435 = vpop.f32.mrf.mxu0
  %v1436 = vadd.f32 0.0, %v1435
  %v1437 = vpop.f32.mrf.mxu0
  %1438 = vdwg.mxu0
  %v1439 = vadd.f32 %v1135, %v1436
  %v1440 = vmul.f32 %v1439, 0.0078125
  %vm1441 = vcmask 31744
  %v1443 = vsel %vm1441, %v1440, 0
  %v1446 = vsel %vm224, %v188, 0
  %1448 = vmatprep.subr.mxu0 0.0
  %1449 = vmatpush1.msra.mxu0 0.0
  %1450 = vmatprep.subr.mxu0 0.0
  %1451 = vmatpush1.msra.mxu0 0.0
  %1452 = vmatprep.subr.mxu0 0.0
  %1453 = vmatpush1.msra.mxu0 0.0
  %1454 = vmatprep.subr.mxu0 0.0
  %1455 = vmatpush1.msra.mxu0 0.0
  %1456 = vmatprep.subr.mxu0 0.0
  %1457 = vmatpush1.msra.mxu0 0.0
  %1458 = vmatprep.subr.mxu0 0.0
  %1459 = vmatpush1.msra.mxu0 0.0
  %1460 = vmatprep.subr.mxu0 0.0
  %1461 = vmatpush1.msra.mxu0 0.0
  %1462 = vmatprep.subr.mxu0 0.0
  %1463 = vmatpush1.msra.mxu0 0.0
  %1464 = vmatprep.subr.mxu0 0.0
  %1465 = vmatpush1.msra.mxu0 0.0
  %1466 = vmatprep.subr.mxu0 0.0
  %1467 = vmatpush1.msra.mxu0 0.0
  %1468 = vmatprep.subr.mxu0 0.0
  %1469 = vmatpush1.msra.mxu0 0.0
  %1470 = vmatprep.subr.mxu0 0.0
  %1471 = vmatpush1.msra.mxu0 0.0
  %1472 = vmatprep.subr.mxu0 0.0
  %1473 = vmatpush1.msra.mxu0 0.0
  %1474 = vmatprep.subr.mxu0 0.0
  %1475 = vmatpush1.msra.mxu0 0.0
  %1476 = vmatprep.subr.mxu0 0.0
  %1477 = vmatpush1.msra.mxu0 0.0
  %1478 = vmatprep.subr.mxu0 0.0
  %1479 = vmatpush1.msra.mxu0 %v1446
  %1480 = vmatprep.subr.mxu0 0.0
  %1481 = vmatpush2.msra.mxu0 0.0
  %1482 = vmatprep.subr.mxu0 0.0
  %1483 = vmatpush2.msra.mxu0 0.0
  %1484 = vmatprep.subr.mxu0 0.0
  %1485 = vmatpush2.msra.mxu0 0.0
  %1486 = vmatprep.subr.mxu0 0.0
  %1487 = vmatpush2.msra.mxu0 0.0
  %1488 = vmatprep.subr.mxu0 0.0
  %1489 = vmatpush2.msra.mxu0 0.0
  %1490 = vmatprep.subr.mxu0 0.0
  %1491 = vmatpush2.msra.mxu0 0.0
  %1492 = vmatprep.subr.mxu0 0.0
  %1493 = vmatpush2.msra.mxu0 0.0
  %1494 = vmatprep.subr.mxu0 0.0
  %1495 = vmatpush2.msra.mxu0 0.0
  %1496 = vmatprep.subr.mxu0 0.0
  %1497 = vmatpush2.msra.mxu0 0.0
  %1498 = vmatprep.subr.mxu0 0.0
  %1499 = vmatpush2.msra.mxu0 0.0
  %1500 = vmatprep.subr.mxu0 0.0
  %1501 = vmatpush2.msra.mxu0 0.0
  %1502 = vmatprep.subr.mxu0 0.0
  %1503 = vmatpush2.msra.mxu0 0.0
  %1504 = vmatprep.subr.mxu0 0.0
  %1505 = vmatpush2.msra.mxu0 0.0
  %1506 = vmatprep.subr.mxu0 0.0
  %1507 = vmatpush2.msra.mxu0 0.0
  %1508 = vmatprep.subr.mxu0 0.0
  %1509 = vmatpush2.msra.mxu0 0.0
  %1510 = vmatprep.subr.mxu0 0.0
  %1511 = vmatpush2.msra.mxu0 0.0
  %1512 = vmatprep.mubr.f32.mxu0 0.0
  %1513 = vmatmul.mubr.f32.gmra.mxu0 %v1443
  %v1514 = vpop.f32.mrf.mxu0
  %v1515 = vadd.f32 0.0, %v1514
  %v1516 = vpop.f32.mrf.mxu0
  %1517 = vdwg.mxu0
  %v1518 = vlaneseq
  %v1519 = vshrl.u32 %v1518, 7
  %v1520 = vsub.s32 0, %v1519
  %v1521 = vrot.slane %v1515, %v1520
  %v1522 = vsub.f32 %v433, %v1521
  %v1523 = vsub.f32 %v434, %v1521
  %v1524 = vmul.f32 %v1522, %v1522
  %v1525 = vmul.f32 %v1523, %v1523
  %v1526 = vsel %vm435, %v1524, 0.0
  %v1527 = vsel %vm435, %v1525, 0.0
  %v1528 = vadd.f32 %v1526, %v1527
  %v1529 = vsel %vm435, %v1528, 0.0
  %v1530 = vrot.slane %v1529, 4
  %v1531 = vadd.f32 %v1529, %v1530
  %v1532 = vrot.slane %v1531, 2
  %v1533 = vadd.f32 %v1531, %v1532
  %v1534 = vrot.slane %v1533, 1
  %v1535 = vadd.f32 %v1533, %v1534
  %v1536 = vsub.f32 %v676, %v1521
  %v1537 = vsub.f32 %v677, %v1521
  %v1538 = vmul.f32 %v1536, %v1536
  %v1539 = vmul.f32 %v1537, %v1537
  %v1540 = vsel %vm435, %v1538, 0.0
  %v1541 = vsel %vm435, %v1539, 0.0
  %v1542 = vadd.f32 %v1540, %v1541
  %v1543 = vsel %vm435, %v1542, 0.0
  %v1544 = vrot.slane %v1543, 4
  %v1545 = vadd.f32 %v1543, %v1544
  %v1546 = vrot.slane %v1545, 2
  %v1547 = vadd.f32 %v1545, %v1546
  %v1548 = vrot.slane %v1547, 1
  %v1549 = vadd.f32 %v1547, %v1548
  %v1551 = vsel %vm46, %v1549, 0
  %1553 = vmatprep.subr.mxu0 0.0
  %1554 = vmatpush1.msra.mxu0 0.0
  %1555 = vmatprep.subr.mxu0 0.0
  %1556 = vmatpush1.msra.mxu0 0.0
  %1557 = vmatprep.subr.mxu0 0.0
  %1558 = vmatpush1.msra.mxu0 0.0
  %1559 = vmatprep.subr.mxu0 0.0
  %1560 = vmatpush1.msra.mxu0 0.0
  %1561 = vmatprep.subr.mxu0 0.0
  %1562 = vmatpush1.msra.mxu0 0.0
  %1563 = vmatprep.subr.mxu0 0.0
  %1564 = vmatpush1.msra.mxu0 0.0
  %1565 = vmatprep.subr.mxu0 0.0
  %1566 = vmatpush1.msra.mxu0 0.0
  %1567 = vmatprep.subr.mxu0 0.0
  %1568 = vmatpush1.msra.mxu0 0.0
  %1569 = vmatprep.subr.mxu0 0.0
  %1570 = vmatpush1.msra.mxu0 0.0
  %1571 = vmatprep.subr.mxu0 0.0
  %1572 = vmatpush1.msra.mxu0 0.0
  %1573 = vmatprep.subr.mxu0 0.0
  %1574 = vmatpush1.msra.mxu0 0.0
  %1575 = vmatprep.subr.mxu0 0.0
  %1576 = vmatpush1.msra.mxu0 0.0
  %1577 = vmatprep.subr.mxu0 0.0
  %1578 = vmatpush1.msra.mxu0 0.0
  %1579 = vmatprep.subr.mxu0 0.0
  %1580 = vmatpush1.msra.mxu0 0.0
  %1581 = vmatprep.subr.mxu0 0.0
  %1582 = vmatpush1.msra.mxu0 %v187
  %1583 = vmatprep.subr.mxu0 0.0
  %1584 = vmatpush1.msra.mxu0 %v186
  %1585 = vmatprep.subr.mxu0 0.0
  %1586 = vmatpush2.msra.mxu0 0.0
  %1587 = vmatprep.subr.mxu0 0.0
  %1588 = vmatpush2.msra.mxu0 0.0
  %1589 = vmatprep.subr.mxu0 0.0
  %1590 = vmatpush2.msra.mxu0 0.0
  %1591 = vmatprep.subr.mxu0 0.0
  %1592 = vmatpush2.msra.mxu0 0.0
  %1593 = vmatprep.subr.mxu0 0.0
  %1594 = vmatpush2.msra.mxu0 0.0
  %1595 = vmatprep.subr.mxu0 0.0
  %1596 = vmatpush2.msra.mxu0 0.0
  %1597 = vmatprep.subr.mxu0 0.0
  %1598 = vmatpush2.msra.mxu0 0.0
  %1599 = vmatprep.subr.mxu0 0.0
  %1600 = vmatpush2.msra.mxu0 0.0
  %1601 = vmatprep.subr.mxu0 0.0
  %1602 = vmatpush2.msra.mxu0 0.0
  %1603 = vmatprep.subr.mxu0 0.0
  %1604 = vmatpush2.msra.mxu0 0.0
  %1605 = vmatprep.subr.mxu0 0.0
  %1606 = vmatpush2.msra.mxu0 0.0
  %1607 = vmatprep.subr.mxu0 0.0
  %1608 = vmatpush2.msra.mxu0 0.0
  %1609 = vmatprep.subr.mxu0 0.0
  %1610 = vmatpush2.msra.mxu0 0.0
  %1611 = vmatprep.subr.mxu0 0.0
  %1612 = vmatpush2.msra.mxu0 0.0
  %1613 = vmatprep.subr.mxu0 0.0
  %1614 = vmatpush2.msra.mxu0 0.0
  %1615 = vmatprep.subr.mxu0 0.0
  %1616 = vmatpush2.msra.mxu0 0.0
  %1617 = vmatprep.mubr.f32.mxu0 0.0
  %1618 = vmatmul.mubr.f32.gmra.mxu0 %v1551
  %v1619 = vpop.f32.mrf.mxu0
  %v1620 = vadd.f32 0.0, %v1619
  %v1621 = vpop.f32.mrf.mxu0
  %1622 = vdwg.mxu0
  %v1624 = vsel %vm46, %v1535, 0
  %1626 = vmatprep.subr.mxu0 0.0
  %1627 = vmatpush1.msra.mxu0 0.0
  %1628 = vmatprep.subr.mxu0 0.0
  %1629 = vmatpush1.msra.mxu0 0.0
  %1630 = vmatprep.subr.mxu0 0.0
  %1631 = vmatpush1.msra.mxu0 0.0
  %1632 = vmatprep.subr.mxu0 0.0
  %1633 = vmatpush1.msra.mxu0 0.0
  %1634 = vmatprep.subr.mxu0 0.0
  %1635 = vmatpush1.msra.mxu0 0.0
  %1636 = vmatprep.subr.mxu0 0.0
  %1637 = vmatpush1.msra.mxu0 0.0
  %1638 = vmatprep.subr.mxu0 0.0
  %1639 = vmatpush1.msra.mxu0 0.0
  %1640 = vmatprep.subr.mxu0 0.0
  %1641 = vmatpush1.msra.mxu0 0.0
  %1642 = vmatprep.subr.mxu0 0.0
  %1643 = vmatpush1.msra.mxu0 0.0
  %1644 = vmatprep.subr.mxu0 0.0
  %1645 = vmatpush1.msra.mxu0 0.0
  %1646 = vmatprep.subr.mxu0 0.0
  %1647 = vmatpush1.msra.mxu0 0.0
  %1648 = vmatprep.subr.mxu0 0.0
  %1649 = vmatpush1.msra.mxu0 0.0
  %1650 = vmatprep.subr.mxu0 0.0
  %1651 = vmatpush1.msra.mxu0 0.0
  %1652 = vmatprep.subr.mxu0 0.0
  %1653 = vmatpush1.msra.mxu0 0.0
  %1654 = vmatprep.subr.mxu0 0.0
  %1655 = vmatpush1.msra.mxu0 %v187
  %1656 = vmatprep.subr.mxu0 0.0
  %1657 = vmatpush1.msra.mxu0 %v186
  %1658 = vmatprep.subr.mxu0 0.0
  %1659 = vmatpush2.msra.mxu0 0.0
  %1660 = vmatprep.subr.mxu0 0.0
  %1661 = vmatpush2.msra.mxu0 0.0
  %1662 = vmatprep.subr.mxu0 0.0
  %1663 = vmatpush2.msra.mxu0 0.0
  %1664 = vmatprep.subr.mxu0 0.0
  %1665 = vmatpush2.msra.mxu0 0.0
  %1666 = vmatprep.subr.mxu0 0.0
  %1667 = vmatpush2.msra.mxu0 0.0
  %1668 = vmatprep.subr.mxu0 0.0
  %1669 = vmatpush2.msra.mxu0 0.0
  %1670 = vmatprep.subr.mxu0 0.0
  %1671 = vmatpush2.msra.mxu0 0.0
  %1672 = vmatprep.subr.mxu0 0.0
  %1673 = vmatpush2.msra.mxu0 0.0
  %1674 = vmatprep.subr.mxu0 0.0
  %1675 = vmatpush2.msra.mxu0 0.0
  %1676 = vmatprep.subr.mxu0 0.0
  %1677 = vmatpush2.msra.mxu0 0.0
  %1678 = vmatprep.subr.mxu0 0.0
  %1679 = vmatpush2.msra.mxu0 0.0
  %1680 = vmatprep.subr.mxu0 0.0
  %1681 = vmatpush2.msra.mxu0 0.0
  %1682 = vmatprep.subr.mxu0 0.0
  %1683 = vmatpush2.msra.mxu0 0.0
  %1684 = vmatprep.subr.mxu0 0.0
  %1685 = vmatpush2.msra.mxu0 0.0
  %1686 = vmatprep.subr.mxu0 0.0
  %1687 = vmatpush2.msra.mxu0 0.0
  %1688 = vmatprep.subr.mxu0 0.0
  %1689 = vmatpush2.msra.mxu0 0.0
  %1690 = vmatprep.mubr.f32.mxu0 0.0
  %1691 = vmatmul.mubr.f32.gmra.mxu0 %v1624
  %v1692 = vpop.f32.mrf.mxu0
  %v1693 = vadd.f32 %v1620, %v1692
  %v1694 = vpop.f32.mrf.mxu0
  %1695 = vdwg.mxu0
  %v1696 = vsub.f32 %v1050, %v1521
  %v1697 = vsub.f32 %v1051, %v1521
  %v1698 = vmul.f32 %v1696, %v1696
  %v1699 = vmul.f32 %v1697, %v1697
  %v1700 = vsel %vm435, %v1698, 0.0
  %v1701 = vsel %vm435, %v1699, 0.0
  %v1702 = vadd.f32 %v1700, %v1701
  %v1703 = vsel %vm435, %v1702, 0.0
  %v1704 = vrot.slane %v1703, 4
  %v1705 = vadd.f32 %v1703, %v1704
  %v1706 = vrot.slane %v1705, 2
  %v1707 = vadd.f32 %v1705, %v1706
  %v1708 = vrot.slane %v1707, 1
  %v1709 = vadd.f32 %v1707, %v1708
  %v1711 = vsel %vm46, %v1709, 0
  %1713 = vmatprep.subr.mxu0 0.0
  %1714 = vmatpush1.msra.mxu0 0.0
  %1715 = vmatprep.subr.mxu0 0.0
  %1716 = vmatpush1.msra.mxu0 0.0
  %1717 = vmatprep.subr.mxu0 0.0
  %1718 = vmatpush1.msra.mxu0 0.0
  %1719 = vmatprep.subr.mxu0 0.0
  %1720 = vmatpush1.msra.mxu0 0.0
  %1721 = vmatprep.subr.mxu0 0.0
  %1722 = vmatpush1.msra.mxu0 0.0
  %1723 = vmatprep.subr.mxu0 0.0
  %1724 = vmatpush1.msra.mxu0 0.0
  %1725 = vmatprep.subr.mxu0 0.0
  %1726 = vmatpush1.msra.mxu0 0.0
  %1727 = vmatprep.subr.mxu0 0.0
  %1728 = vmatpush1.msra.mxu0 0.0
  %1729 = vmatprep.subr.mxu0 0.0
  %1730 = vmatpush1.msra.mxu0 0.0
  %1731 = vmatprep.subr.mxu0 0.0
  %1732 = vmatpush1.msra.mxu0 0.0
  %1733 = vmatprep.subr.mxu0 0.0
  %1734 = vmatpush1.msra.mxu0 0.0
  %1735 = vmatprep.subr.mxu0 0.0
  %1736 = vmatpush1.msra.mxu0 0.0
  %1737 = vmatprep.subr.mxu0 0.0
  %1738 = vmatpush1.msra.mxu0 0.0
  %1739 = vmatprep.subr.mxu0 0.0
  %1740 = vmatpush1.msra.mxu0 0.0
  %1741 = vmatprep.subr.mxu0 0.0
  %1742 = vmatpush1.msra.mxu0 %v187
  %1743 = vmatprep.subr.mxu0 0.0
  %1744 = vmatpush1.msra.mxu0 %v186
  %1745 = vmatprep.subr.mxu0 0.0
  %1746 = vmatpush2.msra.mxu0 0.0
  %1747 = vmatprep.subr.mxu0 0.0
  %1748 = vmatpush2.msra.mxu0 0.0
  %1749 = vmatprep.subr.mxu0 0.0
  %1750 = vmatpush2.msra.mxu0 0.0
  %1751 = vmatprep.subr.mxu0 0.0
  %1752 = vmatpush2.msra.mxu0 0.0
  %1753 = vmatprep.subr.mxu0 0.0
  %1754 = vmatpush2.msra.mxu0 0.0
  %1755 = vmatprep.subr.mxu0 0.0
  %1756 = vmatpush2.msra.mxu0 0.0
  %1757 = vmatprep.subr.mxu0 0.0
  %1758 = vmatpush2.msra.mxu0 0.0
  %1759 = vmatprep.subr.mxu0 0.0
  %1760 = vmatpush2.msra.mxu0 0.0
  %1761 = vmatprep.subr.mxu0 0.0
  %1762 = vmatpush2.msra.mxu0 0.0
  %1763 = vmatprep.subr.mxu0 0.0
  %1764 = vmatpush2.msra.mxu0 0.0
  %1765 = vmatprep.subr.mxu0 0.0
  %1766 = vmatpush2.msra.mxu0 0.0
  %1767 = vmatprep.subr.mxu0 0.0
  %1768 = vmatpush2.msra.mxu0 0.0
  %1769 = vmatprep.subr.mxu0 0.0
  %1770 = vmatpush2.msra.mxu0 0.0
  %1771 = vmatprep.subr.mxu0 0.0
  %1772 = vmatpush2.msra.mxu0 0.0
  %1773 = vmatprep.subr.mxu0 0.0
  %1774 = vmatpush2.msra.mxu0 0.0
  %1775 = vmatprep.subr.mxu0 0.0
  %1776 = vmatpush2.msra.mxu0 0.0
  %1777 = vmatprep.mubr.f32.mxu0 0.0
  %1778 = vmatmul.mubr.f32.gmra.mxu0 %v1711
  %v1779 = vpop.f32.mrf.mxu0
  %v1780 = vadd.f32 0.0, %v1779
  %v1781 = vpop.f32.mrf.mxu0
  %1782 = vdwg.mxu0
  %v1783 = vadd.f32 %v1693, %v1780
  %v1784 = vsub.f32 %v1354, %v1521
  %v1785 = vsub.f32 %v1355, %v1521
  %v1786 = vmul.f32 %v1784, %v1784
  %v1787 = vmul.f32 %v1785, %v1785
  %v1788 = vsel %vm435, %v1786, 0.0
  %v1789 = vsel %vm435, %v1787, 0.0
  %v1790 = vadd.f32 %v1788, %v1789
  %v1791 = vsel %vm435, %v1790, 0.0
  %v1792 = vrot.slane %v1791, 4
  %v1793 = vadd.f32 %v1791, %v1792
  %v1794 = vrot.slane %v1793, 2
  %v1795 = vadd.f32 %v1793, %v1794
  %v1796 = vrot.slane %v1795, 1
  %v1797 = vadd.f32 %v1795, %v1796
  %v1799 = vsel %vm46, %v1797, 0
  %1801 = vmatprep.subr.mxu0 0.0
  %1802 = vmatpush1.msra.mxu0 0.0
  %1803 = vmatprep.subr.mxu0 0.0
  %1804 = vmatpush1.msra.mxu0 0.0
  %1805 = vmatprep.subr.mxu0 0.0
  %1806 = vmatpush1.msra.mxu0 0.0
  %1807 = vmatprep.subr.mxu0 0.0
  %1808 = vmatpush1.msra.mxu0 0.0
  %1809 = vmatprep.subr.mxu0 0.0
  %1810 = vmatpush1.msra.mxu0 0.0
  %1811 = vmatprep.subr.mxu0 0.0
  %1812 = vmatpush1.msra.mxu0 0.0
  %1813 = vmatprep.subr.mxu0 0.0
  %1814 = vmatpush1.msra.mxu0 0.0
  %1815 = vmatprep.subr.mxu0 0.0
  %1816 = vmatpush1.msra.mxu0 0.0
  %1817 = vmatprep.subr.mxu0 0.0
  %1818 = vmatpush1.msra.mxu0 0.0
  %1819 = vmatprep.subr.mxu0 0.0
  %1820 = vmatpush1.msra.mxu0 0.0
  %1821 = vmatprep.subr.mxu0 0.0
  %1822 = vmatpush1.msra.mxu0 0.0
  %1823 = vmatprep.subr.mxu0 0.0
  %1824 = vmatpush1.msra.mxu0 0.0
  %1825 = vmatprep.subr.mxu0 0.0
  %1826 = vmatpush1.msra.mxu0 0.0
  %1827 = vmatprep.subr.mxu0 0.0
  %1828 = vmatpush1.msra.mxu0 0.0
  %1829 = vmatprep.subr.mxu0 0.0
  %1830 = vmatpush1.msra.mxu0 %v187
  %1831 = vmatprep.subr.mxu0 0.0
  %1832 = vmatpush1.msra.mxu0 %v186
  %1833 = vmatprep.subr.mxu0 0.0
  %1834 = vmatpush2.msra.mxu0 0.0
  %1835 = vmatprep.subr.mxu0 0.0
  %1836 = vmatpush2.msra.mxu0 0.0
  %1837 = vmatprep.subr.mxu0 0.0
  %1838 = vmatpush2.msra.mxu0 0.0
  %1839 = vmatprep.subr.mxu0 0.0
  %1840 = vmatpush2.msra.mxu0 0.0
  %1841 = vmatprep.subr.mxu0 0.0
  %1842 = vmatpush2.msra.mxu0 0.0
  %1843 = vmatprep.subr.mxu0 0.0
  %1844 = vmatpush2.msra.mxu0 0.0
  %1845 = vmatprep.subr.mxu0 0.0
  %1846 = vmatpush2.msra.mxu0 0.0
  %1847 = vmatprep.subr.mxu0 0.0
  %1848 = vmatpush2.msra.mxu0 0.0
  %1849 = vmatprep.subr.mxu0 0.0
  %1850 = vmatpush2.msra.mxu0 0.0
  %1851 = vmatprep.subr.mxu0 0.0
  %1852 = vmatpush2.msra.mxu0 0.0
  %1853 = vmatprep.subr.mxu0 0.0
  %1854 = vmatpush2.msra.mxu0 0.0
  %1855 = vmatprep.subr.mxu0 0.0
  %1856 = vmatpush2.msra.mxu0 0.0
  %1857 = vmatprep.subr.mxu0 0.0
  %1858 = vmatpush2.msra.mxu0 0.0
  %1859 = vmatprep.subr.mxu0 0.0
  %1860 = vmatpush2.msra.mxu0 0.0
  %1861 = vmatprep.subr.mxu0 0.0
  %1862 = vmatpush2.msra.mxu0 0.0
  %1863 = vmatprep.subr.mxu0 0.0
  %1864 = vmatpush2.msra.mxu0 0.0
  %1865 = vmatprep.mubr.f32.mxu0 0.0
  %1866 = vmatmul.mubr.f32.gmra.mxu0 %v1799
  %v1867 = vpop.f32.mrf.mxu0
  %v1868 = vadd.f32 0.0, %v1867
  %v1869 = vpop.f32.mrf.mxu0
  %1870 = vdwg.mxu0
  %v1871 = vadd.f32 %v1783, %v1868
  %v1872 = vmul.f32 %v1871, 0.0078125
  %v1873 = vadd.f32 %v1872, 1e-05
  %v1874 = vrsqrt.pop %v1873
  %v1876 = vsel %vm1441, %v1874, 0
  %1878 = vmatprep.subr.mxu0 0.0
  %1879 = vmatpush1.msra.mxu0 0.0
  %1880 = vmatprep.subr.mxu0 0.0
  %1881 = vmatpush1.msra.mxu0 0.0
  %1882 = vmatprep.subr.mxu0 0.0
  %1883 = vmatpush1.msra.mxu0 0.0
  %1884 = vmatprep.subr.mxu0 0.0
  %1885 = vmatpush1.msra.mxu0 0.0
  %1886 = vmatprep.subr.mxu0 0.0
  %1887 = vmatpush1.msra.mxu0 0.0
  %1888 = vmatprep.subr.mxu0 0.0
  %1889 = vmatpush1.msra.mxu0 0.0
  %1890 = vmatprep.subr.mxu0 0.0
  %1891 = vmatpush1.msra.mxu0 0.0
  %1892 = vmatprep.subr.mxu0 0.0
  %1893 = vmatpush1.msra.mxu0 0.0
  %1894 = vmatprep.subr.mxu0 0.0
  %1895 = vmatpush1.msra.mxu0 0.0
  %1896 = vmatprep.subr.mxu0 0.0
  %1897 = vmatpush1.msra.mxu0 0.0
  %1898 = vmatprep.subr.mxu0 0.0
  %1899 = vmatpush1.msra.mxu0 0.0
  %1900 = vmatprep.subr.mxu0 0.0
  %1901 = vmatpush1.msra.mxu0 0.0
  %1902 = vmatprep.subr.mxu0 0.0
  %1903 = vmatpush1.msra.mxu0 0.0
  %1904 = vmatprep.subr.mxu0 0.0
  %1905 = vmatpush1.msra.mxu0 0.0
  %1906 = vmatprep.subr.mxu0 0.0
  %1907 = vmatpush1.msra.mxu0 0.0
  %1908 = vmatprep.subr.mxu0 0.0
  %1909 = vmatpush1.msra.mxu0 %v1446
  %1910 = vmatprep.subr.mxu0 0.0
  %1911 = vmatpush2.msra.mxu0 0.0
  %1912 = vmatprep.subr.mxu0 0.0
  %1913 = vmatpush2.msra.mxu0 0.0
  %1914 = vmatprep.subr.mxu0 0.0
  %1915 = vmatpush2.msra.mxu0 0.0
  %1916 = vmatprep.subr.mxu0 0.0
  %1917 = vmatpush2.msra.mxu0 0.0
  %1918 = vmatprep.subr.mxu0 0.0
  %1919 = vmatpush2.msra.mxu0 0.0
  %1920 = vmatprep.subr.mxu0 0.0
  %1921 = vmatpush2.msra.mxu0 0.0
  %1922 = vmatprep.subr.mxu0 0.0
  %1923 = vmatpush2.msra.mxu0 0.0
  %1924 = vmatprep.subr.mxu0 0.0
  %1925 = vmatpush2.msra.mxu0 0.0
  %1926 = vmatprep.subr.mxu0 0.0
  %1927 = vmatpush2.msra.mxu0 0.0
  %1928 = vmatprep.subr.mxu0 0.0
  %1929 = vmatpush2.msra.mxu0 0.0
  %1930 = vmatprep.subr.mxu0 0.0
  %1931 = vmatpush2.msra.mxu0 0.0
  %1932 = vmatprep.subr.mxu0 0.0
  %1933 = vmatpush2.msra.mxu0 0.0
  %1934 = vmatprep.subr.mxu0 0.0
  %1935 = vmatpush2.msra.mxu0 0.0
  %1936 = vmatprep.subr.mxu0 0.0
  %1937 = vmatpush2.msra.mxu0 0.0
  %1938 = vmatprep.subr.mxu0 0.0
  %1939 = vmatpush2.msra.mxu0 0.0
  %1940 = vmatprep.subr.mxu0 0.0
  %1941 = vmatpush2.msra.mxu0 0.0
  %1942 = vmatprep.mubr.f32.mxu0 0.0
  %1943 = vmatmul.mubr.f32.gmra.mxu0 %v1876
  %v1944 = vpop.f32.mrf.mxu0
  %v1945 = vadd.f32 0.0, %v1944
  %v1946 = vpop.f32.mrf.mxu0
  %1947 = vdwg.mxu0
  %v1948 = vmul.f32 %v1945, %v190
  %v1949 = vlaneseq
  %v1950 = vshrl.u32 %v1949, 7
  %v1951 = vsub.s32 0, %v1950
  %v1952 = vrot.slane %v1948, %v1951
  %v1953 = vmul.f32 %v1522, %v1952
  %v1954 = vmul.f32 %v1523, %v1952
  %v1956 = vlaneseq
  %v1957 = vshrl.u32 %v1956, 7
  %v1958 = vsub.s32 0, %v1957
  %v1959 = vrot.slane %v191, %v1958
  %v1961 = vadd.f32 %v1953, %v1959
  %v1962 = vadd.f32 %v1954, %v1959
  %v1963 = vtanh.pop %v1961
  %v1964 = vtanh.pop %v1962
  %1965 = vst.msk [vmem:[%s9] sm:$0xf] %vm435, %v1963
  %1966 = vst.msk [vmem:[%s9 + $0x4] sm:$0xf] %vm435, %v1964
  %v1967 = vmul.f32 %v1536, %v1952
  %v1968 = vmul.f32 %v1537, %v1952
  %v1969 = vadd.f32 %v1967, %v1959
  %v1970 = vadd.f32 %v1968, %v1959
  %v1971 = vtanh.pop %v1969
  %v1972 = vtanh.pop %v1970
  %s1973 = scalar_lea.vmem %s9, 8
  %1974 = vst.msk [vmem:[%s1973] sm:$0xf] %vm435, %v1971
  %1975 = vst.msk [vmem:[%s1973 + $0x4] sm:$0xf] %vm435, %v1972
  %v1976 = vmul.f32 %v1696, %v1952
  %v1977 = vmul.f32 %v1697, %v1952
  %v1978 = vadd.f32 %v1976, %v1959
  %v1979 = vadd.f32 %v1977, %v1959
  %v1980 = vtanh.pop %v1978
  %v1981 = vtanh.pop %v1979
  %s1982 = scalar_lea.vmem %s9, 16
  %1983 = vst.msk [vmem:[%s1982] sm:$0xf] %vm435, %v1980
  %1984 = vst.msk [vmem:[%s1982 + $0x4] sm:$0xf] %vm435, %v1981
  %v1985 = vmul.f32 %v1784, %v1952
  %v1986 = vmul.f32 %v1785, %v1952
  %v1987 = vadd.f32 %v1985, %v1959
  %v1988 = vadd.f32 %v1986, %v1959
  %v1989 = vtanh.pop %v1987
  %v1990 = vtanh.pop %v1988
  %s1991 = scalar_lea.vmem %s9, 24
  %1992 = vst.msk [vmem:[%s1991] sm:$0xf] %vm435, %v1989
  %1993 = vst.msk [vmem:[%s1991 + $0x4] sm:$0xf] %vm435, %v1990
  // Predicated region
  $region38: #{_lambda_.3} parent=0 // pred_check
    _
  $region39: #{_lambda_.3} parent=0 // pred_check_branch
    %1995 = sbr.rel (0) target = $region41
  $region40: #{_lambda_.3} parent=0 // pred_region
    _
  $region41: #{_lambda_.3} parent=0 // pred_fallthru
    _
  // Predicated region
  $region42: #{_lambda_.3} parent=0 // pred_check
    _
  $region43: #{_lambda_.3} parent=0 // pred_check_branch
    %1997 = sbr.rel (0) target = $region45
  $region44: #{_lambda_.3} parent=0 // pred_region
    _
  $region45: #{_lambda_.3} parent=0 // pred_fallthru
    _

</llo_original>
